<compile_context>
chip_gen: v6e
topology: v6e:2x2x1
jax: 0.10.0
libtpu: 0.0.40
codegen_flags: <defaults>
</compile_context>

<pallas_src>
import functools

import jax
import jax.numpy as jnp
from jax import lax
from jax.experimental import pallas as pl
from jax.experimental.pallas import tpu as pltpu

LN_EPS = 1e-5
NEG_INF = -1e9


def _layernorm(y, gamma, beta):
    mu = jnp.mean(y, axis=-1, keepdims=True)
    var = jnp.mean((y - mu) ** 2, axis=-1, keepdims=True)
    return (y - mu) * lax.rsqrt(var + LN_EPS) * gamma + beta


def _mxu_dot(a, b):
    # bf16 operands, f32 accumulation on the MXU.
    return jnp.dot(a.astype(jnp.bfloat16), b.astype(jnp.bfloat16),
                   preferred_element_type=jnp.float32)


# ----------------------------------------------------------------------------
# In-kernel attention sub-layer (projections + softmax + residual + LayerNorm)
# ----------------------------------------------------------------------------
def _attention_sublayer(xq, xkv, mask, wq_ref, bq_ref, wkv_ref, bkv_ref,
                        wo_ref, bo_ref, gamma_ref, beta_ref, slab_ref,
                        num_heads):
    _, d_model = xq.shape
    d_head = d_model // num_heads
    scale = d_head ** -0.5

    # Additive mask bias computed ONCE (not per head): 0 = keep, -1e9 = masked.
    bias = jnp.where(mask > 0.0, 0.0, NEG_INF)

    # Full-D projections: Q as one matmul, K|V fused into one (D, 2D) matmul.
    q = _mxu_dot(xq, wq_ref[...]) + bq_ref[...]            # (Sq, D)   f32
    kv = _mxu_dot(xkv, wkv_ref[...]) + bkv_ref[...]        # (Skv, 2D) f32
    k = kv[:, :d_model]
    v = kv[:, d_model:]

    # Per-head attention; head outputs go into a VMEM slab so the output
    # projection below is a single (Sq, D) @ (D, D) MXU matmul.
    for h in range(num_heads):
        sl = slice(h * d_head, (h + 1) * d_head)
        qh = q[:, sl].astype(jnp.bfloat16)
        kh = k[:, sl].astype(jnp.bfloat16)
        vh = v[:, sl].astype(jnp.bfloat16)
        # NT dot (contract the last dims of both) — no per-head K transpose.
        s = lax.dot_general(qh, kh, (((1,), (1,)), ((), ())),
                            preferred_element_type=jnp.float32)
        s = s * scale + bias
        s = s - jnp.max(s, axis=-1, keepdims=True)
        p = jnp.exp(s)
        p = p * pl.reciprocal(jnp.sum(p, axis=-1, keepdims=True), approx=True)
        slab_ref[:, sl] = jnp.dot(p.astype(jnp.bfloat16), vh,
                                  preferred_element_type=jnp.float32)

    attn = _mxu_dot(slab_ref[...], wo_ref[...]) + bo_ref[...]
    y = xq + attn                                          # residual (post-norm)
    return _layernorm(y, gamma_ref[...], beta_ref[...])


# ----------------------------------------------------------------------------
# Fused decoder-block kernel (one batch row per grid step)
# ----------------------------------------------------------------------------
def decoder_block_kernel(x_ref, enc_ref, tmask_ref, smask_ref,
                         wq1, bq1, wkv1, bkv1, wo1, bo1, g1, be1,
                         wq2, bq2, wkv2, bkv2, wo2, bo2, g2, be2,
                         w1, b1, w2, b2, g3, be3,
                         o_ref, slab_ref, *, num_heads):
    x = x_ref[0]        # (S_tgt, D)
    enc = enc_ref[0]    # (S_src, D)

    # 1) masked self-attention + residual + LayerNorm
    x = _attention_sublayer(x, x, tmask_ref[...], wq1, bq1, wkv1, bkv1,
                            wo1, bo1, g1, be1, slab_ref, num_heads)
    # 2) cross-attention over encoder output + residual + LayerNorm
    x = _attention_sublayer(x, enc, smask_ref[...], wq2, bq2, wkv2, bkv2,
                            wo2, bo2, g2, be2, slab_ref, num_heads)
    # 3) feed-forward (Linear -> ReLU -> Linear) + residual + LayerNorm
    h = _mxu_dot(x, w1[...]) + b1[...]
    h = jnp.maximum(h, 0.0)
    ff = _mxu_dot(h, w2[...]) + b2[...]
    o_ref[0] = _layernorm(x + ff, g3[...], be3[...])


# ----------------------------------------------------------------------------
# Wrapper
# ----------------------------------------------------------------------------
def _fixed(shape):
    # Grid-invariant block (weights / biases / masks): constant index_map, so
    # the block is fetched once and revisited across the batch grid.
    return pl.BlockSpec(shape, lambda b: (0,) * len(shape))


def decoder_block(x, encoder_output, src_mask, target_mask, params, num_heads):
    B, St, D = x.shape
    _, Ss, _ = encoder_output.shape
    pa, pc, pf = params["self_attn"], params["cross_attn"], params["ff"]
    Dff = pf["w1"].shape[1]

    def pack_attn(p):
        # Fuse K and V projection weights into one (D, 2D) matmul operand.
        wkv = jnp.concatenate([p["wk"], p["wv"]], axis=1)
        bkv = jnp.concatenate([p["bk"], p["bv"]], axis=1)
        return (p["wq"], p["bq"], wkv, bkv, p["wo"], p["bo"],
                p["gamma"], p["beta"])

    attn_specs = [
        _fixed((D, D)), _fixed((1, D)),
        _fixed((D, 2 * D)), _fixed((1, 2 * D)),
        _fixed((D, D)), _fixed((1, D)),
        _fixed((1, D)), _fixed((1, D)),
    ]
    in_specs = (
        [pl.BlockSpec((1, St, D), lambda b: (b, 0, 0)),
         pl.BlockSpec((1, Ss, D), lambda b: (b, 0, 0)),
         _fixed((St, St)),            # target mask
         _fixed((St, Ss))]            # source mask
        + attn_specs + attn_specs
        + [_fixed((D, Dff)), _fixed((1, Dff)),
           _fixed((Dff, D)), _fixed((1, D)),
           _fixed((1, D)), _fixed((1, D))]
    )

    kernel = functools.partial(decoder_block_kernel, num_heads=num_heads)
    return pl.pallas_call(
        kernel,
        out_shape=jax.ShapeDtypeStruct((B, St, D), jnp.float32),
        grid_spec=pltpu.PrefetchScalarGridSpec(
            num_scalar_prefetch=0,
            grid=(B,),
            in_specs=in_specs,
            out_specs=pl.BlockSpec((1, St, D), lambda b: (b, 0, 0)),
            scratch_shapes=[pltpu.VMEM((St, D), jnp.float32)]),
        compiler_params=pltpu.CompilerParams(
            dimension_semantics=("parallel",)),
    )(x, encoder_output, target_mask, src_mask,
      *pack_attn(pa), *pack_attn(pc),
      pf["w1"], pf["b1"], pf["w2"], pf["b2"], pf["gamma"], pf["beta"])


# ----------------------------------------------------------------------------
# Pure-JAX reference (mirrors the bf16-operand / f32-accumulate matmuls)
# ----------------------------------------------------------------------------
def _ref_dot(a, b):
    return jnp.dot(a.astype(jnp.bfloat16), b.astype(jnp.bfloat16),
                   preferred_element_type=jnp.float32)


def _ref_mha(xq, xkv, mask, p, num_heads):
    B, Sq, D = xq.shape
    Skv = xkv.shape[1]
    dh = D // num_heads
    q = _ref_dot(xq, p["wq"]) + p["bq"]
    k = _ref_dot(xkv, p["wk"]) + p["bk"]
    v = _ref_dot(xkv, p["wv"]) + p["bv"]
    q = q.reshape(B, Sq, num_heads, dh).transpose(0, 2, 1, 3)
    k = k.reshape(B, Skv, num_heads, dh).transpose(0, 2, 1, 3)
    v = v.reshape(B, Skv, num_heads, dh).transpose(0, 2, 1, 3)
    s = jnp.einsum("bhqd,bhkd->bhqk",
                   q.astype(jnp.bfloat16), k.astype(jnp.bfloat16),
                   preferred_element_type=jnp.float32) / jnp.sqrt(jnp.float32(dh))
    s = s + jnp.where(mask[None, None] > 0, 0.0, NEG_INF)
    a = jax.nn.softmax(s, axis=-1)
    o = jnp.einsum("bhqk,bhkd->bhqd",
                   a.astype(jnp.bfloat16), v.astype(jnp.bfloat16),
                   preferred_element_type=jnp.float32)
    o = o.transpose(0, 2, 1, 3).reshape(B, Sq, D)
    o = _ref_dot(o, p["wo"]) + p["bo"]
    return _layernorm(xq + o, p["gamma"], p["beta"])


def _ref_ff(x, p):
    h = jnp.maximum(_ref_dot(x, p["w1"]) + p["b1"], 0.0)
    o = _ref_dot(h, p["w2"]) + p["b2"]
    return _layernorm(x + o, p["gamma"], p["beta"])


def _ref_decoder(x, enc, src_mask, tgt_mask, params, num_heads):
    x = _ref_mha(x, x, tgt_mask, params["self_attn"], num_heads)
    x = _ref_mha(x, enc, src_mask, params["cross_attn"], num_heads)
    return _ref_ff(x, params["ff"])


# ----------------------------------------------------------------------------
# Deterministic parameter construction
# ----------------------------------------------------------------------------
def make_params(key, d_model, d_ff):
    ks = jax.random.split(key, 12)

    def lin(k, shape):
        return jax.random.normal(k, shape, jnp.float32) * 0.02

    def attn_params(k0, k1, k2, k3):
        return {
            "wq": lin(k0, (d_model, d_model)), "bq": jnp.zeros((1, d_model), jnp.float32),
            "wk": lin(k1, (d_model, d_model)), "bk": jnp.zeros((1, d_model), jnp.float32),
            "wv": lin(k2, (d_model, d_model)), "bv": jnp.zeros((1, d_model), jnp.float32),
            "wo": lin(k3, (d_model, d_model)), "bo": jnp.zeros((1, d_model), jnp.float32),
            "gamma": jnp.ones((1, d_model), jnp.float32),
            "beta": jnp.zeros((1, d_model), jnp.float32),
        }

    return {
        "self_attn": attn_params(ks[0], ks[1], ks[2], ks[3]),
        "cross_attn": attn_params(ks[4], ks[5], ks[6], ks[7]),
        "ff": {
            "w1": lin(ks[8], (d_model, d_ff)), "b1": jnp.zeros((1, d_ff), jnp.float32),
            "w2": lin(ks[9], (d_ff, d_model)), "b2": jnp.zeros((1, d_model), jnp.float32),
            "gamma": jnp.ones((1, d_model), jnp.float32),
            "beta": jnp.zeros((1, d_model), jnp.float32),
        },
    }


if __name__ == "__main__":
    # Lane-dense small shapes: D multiple of 128, S multiple of 8.
    B, S_TGT, S_SRC, D_MODEL, N_HEADS, D_FF = 2, 8, 8, 128, 4, 256

    key = jax.random.PRNGKey(0)
    k_x, k_enc, k_p = jax.random.split(key, 3)

    x = jax.random.normal(k_x, (B, S_TGT, D_MODEL), jnp.float32)
    encoder_output = jax.random.normal(k_enc, (B, S_SRC, D_MODEL), jnp.float32)
    target_mask = jnp.tril(jnp.ones((S_TGT, S_TGT), jnp.float32))   # causal
    src_mask = jnp.ones((S_TGT, S_SRC), jnp.float32)                # no padding

    params = make_params(k_p, D_MODEL, D_FF)

    out = decoder_block(x, encoder_output, src_mask, target_mask, params, N_HEADS)
    out = jax.block_until_ready(out)

    ref = _ref_decoder(x, encoder_output, src_mask, target_mask, params, N_HEADS)
    assert out.shape == (B, S_TGT, D_MODEL)
    # Tolerance covers the approx-reciprocal softmax denominator and bf16
    # accumulation-order differences (reference mirrors the bf16 matmuls).
    assert jnp.allclose(out, ref, atol=2e-2, rtol=2e-2), "mismatch vs reference"

    print("KERNEL_OK")
</pallas_src>

<mosaic_0001>
module attributes {stable_mosaic.version = 11 : i64} {
  func.func @decoder_block_kernel(%arg0: i32, %arg1: memref<1x8x128xf32, #tpu.memory_space<vmem>>, %arg2: memref<1x8x128xf32, #tpu.memory_space<vmem>>, %arg3: memref<8x8xf32, #tpu.memory_space<vmem>>, %arg4: memref<8x8xf32, #tpu.memory_space<vmem>>, %arg5: memref<128x128xf32, #tpu.memory_space<vmem>>, %arg6: memref<1x128xf32, #tpu.memory_space<vmem>>, %arg7: memref<128x256xf32, #tpu.memory_space<vmem>>, %arg8: memref<1x256xf32, #tpu.memory_space<vmem>>, %arg9: memref<128x128xf32, #tpu.memory_space<vmem>>, %arg10: memref<1x128xf32, #tpu.memory_space<vmem>>, %arg11: memref<1x128xf32, #tpu.memory_space<vmem>>, %arg12: memref<1x128xf32, #tpu.memory_space<vmem>>, %arg13: memref<128x128xf32, #tpu.memory_space<vmem>>, %arg14: memref<1x128xf32, #tpu.memory_space<vmem>>, %arg15: memref<128x256xf32, #tpu.memory_space<vmem>>, %arg16: memref<1x256xf32, #tpu.memory_space<vmem>>, %arg17: memref<128x128xf32, #tpu.memory_space<vmem>>, %arg18: memref<1x128xf32, #tpu.memory_space<vmem>>, %arg19: memref<1x128xf32, #tpu.memory_space<vmem>>, %arg20: memref<1x128xf32, #tpu.memory_space<vmem>>, %arg21: memref<128x256xf32, #tpu.memory_space<vmem>>, %arg22: memref<1x256xf32, #tpu.memory_space<vmem>>, %arg23: memref<256x128xf32, #tpu.memory_space<vmem>>, %arg24: memref<1x128xf32, #tpu.memory_space<vmem>>, %arg25: memref<1x128xf32, #tpu.memory_space<vmem>>, %arg26: memref<1x128xf32, #tpu.memory_space<vmem>>, %arg27: memref<1x8x128xf32, #tpu.memory_space<vmem>>, %arg28: memref<8x128xf32, #tpu.memory_space<vmem>>) attributes {dimension_semantics = [#tpu.dimension_semantics<parallel>], iteration_bounds = array<i64: 2>, scalar_prefetch = 0 : i64, scratch_operands = 1 : i64, tpu.core_type = #tpu.core_type<tc>, window_params = [{transform_indices = @transform_0, window_bounds = array<i64: 1, 8, 128>}, {transform_indices = @transform_1, window_bounds = array<i64: 1, 8, 128>}, {pipeline_mode = #tpu.pipeline_mode<synchronous>, transform_indices = @transform_2, window_bounds = array<i64: 8, 8>}, {pipeline_mode = #tpu.pipeline_mode<synchronous>, transform_indices = @transform_3, window_bounds = array<i64: 8, 8>}, {pipeline_mode = #tpu.pipeline_mode<synchronous>, transform_indices = @transform_4, window_bounds = array<i64: 128, 128>}, {pipeline_mode = #tpu.pipeline_mode<synchronous>, transform_indices = @transform_5, window_bounds = array<i64: 1, 128>}, {pipeline_mode = #tpu.pipeline_mode<synchronous>, transform_indices = @transform_6, window_bounds = array<i64: 128, 256>}, {pipeline_mode = #tpu.pipeline_mode<synchronous>, transform_indices = @transform_7, window_bounds = array<i64: 1, 256>}, {pipeline_mode = #tpu.pipeline_mode<synchronous>, transform_indices = @transform_8, window_bounds = array<i64: 128, 128>}, {pipeline_mode = #tpu.pipeline_mode<synchronous>, transform_indices = @transform_9, window_bounds = array<i64: 1, 128>}, {pipeline_mode = #tpu.pipeline_mode<synchronous>, transform_indices = @transform_10, window_bounds = array<i64: 1, 128>}, {pipeline_mode = #tpu.pipeline_mode<synchronous>, transform_indices = @transform_11, window_bounds = array<i64: 1, 128>}, {pipeline_mode = #tpu.pipeline_mode<synchronous>, transform_indices = @transform_12, window_bounds = array<i64: 128, 128>}, {pipeline_mode = #tpu.pipeline_mode<synchronous>, transform_indices = @transform_13, window_bounds = array<i64: 1, 128>}, {pipeline_mode = #tpu.pipeline_mode<synchronous>, transform_indices = @transform_14, window_bounds = array<i64: 128, 256>}, {pipeline_mode = #tpu.pipeline_mode<synchronous>, transform_indices = @transform_15, window_bounds = array<i64: 1, 256>}, {pipeline_mode = #tpu.pipeline_mode<synchronous>, transform_indices = @transform_16, window_bounds = array<i64: 128, 128>}, {pipeline_mode = #tpu.pipeline_mode<synchronous>, transform_indices = @transform_17, window_bounds = array<i64: 1, 128>}, {pipeline_mode = #tpu.pipeline_mode<synchronous>, transform_indices = @transform_18, window_bounds = array<i64: 1, 128>}, {pipeline_mode = #tpu.pipeline_mode<synchronous>, transform_indices = @transform_19, window_bounds = array<i64: 1, 128>}, {pipeline_mode = #tpu.pipeline_mode<synchronous>, transform_indices = @transform_20, window_bounds = array<i64: 128, 256>}, {pipeline_mode = #tpu.pipeline_mode<synchronous>, transform_indices = @transform_21, window_bounds = array<i64: 1, 256>}, {pipeline_mode = #tpu.pipeline_mode<synchronous>, transform_indices = @transform_22, window_bounds = array<i64: 256, 128>}, {pipeline_mode = #tpu.pipeline_mode<synchronous>, transform_indices = @transform_23, window_bounds = array<i64: 1, 128>}, {pipeline_mode = #tpu.pipeline_mode<synchronous>, transform_indices = @transform_24, window_bounds = array<i64: 1, 128>}, {pipeline_mode = #tpu.pipeline_mode<synchronous>, transform_indices = @transform_25, window_bounds = array<i64: 1, 128>}, {transform_indices = @transform_26, window_bounds = array<i64: 1, 8, 128>}]} {
    %c0 = arith.constant 0 : index
    %c0_0 = arith.constant 0 : index
    %c0_1 = arith.constant 0 : index
    %0 = vector.load %arg1[%c0, %c0_0, %c0_1] : memref<1x8x128xf32, #tpu.memory_space<vmem>>, vector<1x8x128xf32>
    %1 = vector.shape_cast %0 : vector<1x8x128xf32> to vector<8x128xf32>
    %c0_2 = arith.constant 0 : index
    %c0_3 = arith.constant 0 : index
    %c0_4 = arith.constant 0 : index
    %2 = vector.load %arg2[%c0_2, %c0_3, %c0_4] : memref<1x8x128xf32, #tpu.memory_space<vmem>>, vector<1x8x128xf32>
    %3 = vector.shape_cast %2 : vector<1x8x128xf32> to vector<8x128xf32>
    %c0_5 = arith.constant 0 : index
    %c0_6 = arith.constant 0 : index
    %4 = vector.load %arg3[%c0_5, %c0_6] : memref<8x8xf32, #tpu.memory_space<vmem>>, vector<8x8xf32>
    %cst = arith.constant 0.000000e+00 : f32
    %5 = vector.broadcast %cst : f32 to vector<8x8xf32>
    %6 = arith.cmpf ogt, %4, %5 : vector<8x8xf32>
    %cst_7 = arith.constant 0.000000e+00 : f32
    %cst_8 = arith.constant -1.000000e+09 : f32
    %7 = vector.broadcast %cst_7 : f32 to vector<8x8xf32>
    %8 = vector.broadcast %cst_8 : f32 to vector<8x8xf32>
    %9 = arith.select %6, %7, %8 : vector<8x8xi1>, vector<8x8xf32>
    %c0_9 = arith.constant 0 : index
    %c0_10 = arith.constant 0 : index
    %10 = vector.load %arg5[%c0_9, %c0_10] : memref<128x128xf32, #tpu.memory_space<vmem>>, vector<128x128xf32>
    %11 = arith.truncf %1 : vector<8x128xf32> to vector<8x128xbf16>
    %12 = arith.truncf %10 : vector<128x128xf32> to vector<128x128xbf16>
    %cst_11 = arith.constant dense<0.000000e+00> : vector<8x128xf32>
    %13 = tpu.matmul %11, %12, %cst_11 {dimension_numbers = #tpu.dot_dimension_numbers<[1], [0], [0], [1], [0, 0, 1, 1], [], []>} : vector<8x128xbf16>, vector<128x128xbf16>, vector<8x128xf32> -> vector<8x128xf32>
    %c0_12 = arith.constant 0 : index
    %c0_13 = arith.constant 0 : index
    %14 = vector.load %arg6[%c0_12, %c0_13] : memref<1x128xf32, #tpu.memory_space<vmem>>, vector<1x128xf32>
    %15 = vector.broadcast %14 : vector<1x128xf32> to vector<8x128xf32>
    %16 = arith.addf %13, %15 : vector<8x128xf32>
    %c0_14 = arith.constant 0 : index
    %c0_15 = arith.constant 0 : index
    %17 = vector.load %arg7[%c0_14, %c0_15] : memref<128x256xf32, #tpu.memory_space<vmem>>, vector<128x256xf32>
    %18 = arith.truncf %1 : vector<8x128xf32> to vector<8x128xbf16>
    %19 = arith.truncf %17 : vector<128x256xf32> to vector<128x256xbf16>
    %cst_16 = arith.constant dense<0.000000e+00> : vector<8x256xf32>
    %20 = tpu.matmul %18, %19, %cst_16 {dimension_numbers = #tpu.dot_dimension_numbers<[1], [0], [0], [1], [0, 0, 1, 1], [], []>} : vector<8x128xbf16>, vector<128x256xbf16>, vector<8x256xf32> -> vector<8x256xf32>
    %c0_17 = arith.constant 0 : index
    %c0_18 = arith.constant 0 : index
    %21 = vector.load %arg8[%c0_17, %c0_18] : memref<1x256xf32, #tpu.memory_space<vmem>>, vector<1x256xf32>
    %22 = vector.broadcast %21 : vector<1x256xf32> to vector<8x256xf32>
    %23 = arith.addf %20, %22 : vector<8x256xf32>
    %24 = vector.extract_strided_slice %23 {offsets = [0, 0], sizes = [8, 128], strides = [1, 1]} : vector<8x256xf32> to vector<8x128xf32>
    %25 = vector.extract_strided_slice %23 {offsets = [0, 128], sizes = [8, 128], strides = [1, 1]} : vector<8x256xf32> to vector<8x128xf32>
    %26 = vector.extract_strided_slice %16 {offsets = [0, 0], sizes = [8, 32], strides = [1, 1]} : vector<8x128xf32> to vector<8x32xf32>
    %27 = arith.truncf %26 : vector<8x32xf32> to vector<8x32xbf16>
    %28 = vector.extract_strided_slice %24 {offsets = [0, 0], sizes = [8, 32], strides = [1, 1]} : vector<8x128xf32> to vector<8x32xf32>
    %29 = arith.truncf %28 : vector<8x32xf32> to vector<8x32xbf16>
    %30 = vector.extract_strided_slice %25 {offsets = [0, 0], sizes = [8, 32], strides = [1, 1]} : vector<8x128xf32> to vector<8x32xf32>
    %31 = arith.truncf %30 : vector<8x32xf32> to vector<8x32xbf16>
    %cst_19 = arith.constant dense<0.000000e+00> : vector<8x8xf32>
    %32 = tpu.matmul %27, %29, %cst_19 {dimension_numbers = #tpu.dot_dimension_numbers<[1], [1], [0], [0], [0, 0, 1, 0], [], []>} : vector<8x32xbf16>, vector<8x32xbf16>, vector<8x8xf32> -> vector<8x8xf32>
    %cst_20 = arith.constant 0.176776692 : f32
    %33 = vector.broadcast %cst_20 : f32 to vector<8x8xf32>
    %34 = arith.mulf %32, %33 : vector<8x8xf32>
    %35 = arith.addf %34, %9 : vector<8x8xf32>
    %cst_21 = arith.constant dense<0xFF800000> : vector<8xf32>
    %36 = vector.multi_reduction <maximumf>, %35, %cst_21 [1] : vector<8x8xf32> to vector<8xf32>
    %37 = vector.shape_cast %36 : vector<8xf32> to vector<8x1xf32>
    %38 = vector.broadcast %37 : vector<8x1xf32> to vector<8x8xf32>
    %39 = arith.subf %35, %38 : vector<8x8xf32>
    %40 = math.exp %39 : vector<8x8xf32>
    %cst_22 = arith.constant dense<0.000000e+00> : vector<8xf32>
    %41 = vector.multi_reduction <add>, %40, %cst_22 [1] : vector<8x8xf32> to vector<8xf32>
    %42 = vector.shape_cast %41 : vector<8xf32> to vector<8x1xf32>
    %43 = tpu.reciprocal %42 {approx = true} : vector<8x1xf32> -> vector<8x1xf32>
    %44 = vector.broadcast %43 : vector<8x1xf32> to vector<8x8xf32>
    %45 = arith.mulf %40, %44 : vector<8x8xf32>
    %46 = arith.truncf %45 : vector<8x8xf32> to vector<8x8xbf16>
    %cst_23 = arith.constant dense<0.000000e+00> : vector<8x32xf32>
    %47 = tpu.matmul %46, %31, %cst_23 {dimension_numbers = #tpu.dot_dimension_numbers<[1], [0], [0], [1], [0, 0, 1, 1], [], []>} : vector<8x8xbf16>, vector<8x32xbf16>, vector<8x32xf32> -> vector<8x32xf32>
    %c0_24 = arith.constant 0 : index
    %c0_25 = arith.constant 0 : index
    %48 = vector.load %arg28[%c0_24, %c0_25] : memref<8x128xf32, #tpu.memory_space<vmem>>, vector<8x32xf32>
    tpu.vector_store %arg28[%c0_24, %c0_25], %47 {strides = array<i32>} : memref<8x128xf32, #tpu.memory_space<vmem>>, vector<8x32xf32>,
    %49 = vector.extract_strided_slice %16 {offsets = [0, 32], sizes = [8, 32], strides = [1, 1]} : vector<8x128xf32> to vector<8x32xf32>
    %50 = arith.truncf %49 : vector<8x32xf32> to vector<8x32xbf16>
    %51 = vector.extract_strided_slice %24 {offsets = [0, 32], sizes = [8, 32], strides = [1, 1]} : vector<8x128xf32> to vector<8x32xf32>
    %52 = arith.truncf %51 : vector<8x32xf32> to vector<8x32xbf16>
    %53 = vector.extract_strided_slice %25 {offsets = [0, 32], sizes = [8, 32], strides = [1, 1]} : vector<8x128xf32> to vector<8x32xf32>
    %54 = arith.truncf %53 : vector<8x32xf32> to vector<8x32xbf16>
    %cst_26 = arith.constant dense<0.000000e+00> : vector<8x8xf32>
    %55 = tpu.matmul %50, %52, %cst_26 {dimension_numbers = #tpu.dot_dimension_numbers<[1], [1], [0], [0], [0, 0, 1, 0], [], []>} : vector<8x32xbf16>, vector<8x32xbf16>, vector<8x8xf32> -> vector<8x8xf32>
    %cst_27 = arith.constant 0.176776692 : f32
    %56 = vector.broadcast %cst_27 : f32 to vector<8x8xf32>
    %57 = arith.mulf %55, %56 : vector<8x8xf32>
    %58 = arith.addf %57, %9 : vector<8x8xf32>
    %cst_28 = arith.constant dense<0xFF800000> : vector<8xf32>
    %59 = vector.multi_reduction <maximumf>, %58, %cst_28 [1] : vector<8x8xf32> to vector<8xf32>
    %60 = vector.shape_cast %59 : vector<8xf32> to vector<8x1xf32>
    %61 = vector.broadcast %60 : vector<8x1xf32> to vector<8x8xf32>
    %62 = arith.subf %58, %61 : vector<8x8xf32>
    %63 = math.exp %62 : vector<8x8xf32>
    %cst_29 = arith.constant dense<0.000000e+00> : vector<8xf32>
    %64 = vector.multi_reduction <add>, %63, %cst_29 [1] : vector<8x8xf32> to vector<8xf32>
    %65 = vector.shape_cast %64 : vector<8xf32> to vector<8x1xf32>
    %66 = tpu.reciprocal %65 {approx = true} : vector<8x1xf32> -> vector<8x1xf32>
    %67 = vector.broadcast %66 : vector<8x1xf32> to vector<8x8xf32>
    %68 = arith.mulf %63, %67 : vector<8x8xf32>
    %69 = arith.truncf %68 : vector<8x8xf32> to vector<8x8xbf16>
    %cst_30 = arith.constant dense<0.000000e+00> : vector<8x32xf32>
    %70 = tpu.matmul %69, %54, %cst_30 {dimension_numbers = #tpu.dot_dimension_numbers<[1], [0], [0], [1], [0, 0, 1, 1], [], []>} : vector<8x8xbf16>, vector<8x32xbf16>, vector<8x32xf32> -> vector<8x32xf32>
    %c0_31 = arith.constant 0 : index
    %c32 = arith.constant 32 : index
    %71 = vector.load %arg28[%c0_31, %c32] : memref<8x128xf32, #tpu.memory_space<vmem>>, vector<8x32xf32>
    tpu.vector_store %arg28[%c0_31, %c32], %70 {strides = array<i32>} : memref<8x128xf32, #tpu.memory_space<vmem>>, vector<8x32xf32>,
    %72 = vector.extract_strided_slice %16 {offsets = [0, 64], sizes = [8, 32], strides = [1, 1]} : vector<8x128xf32> to vector<8x32xf32>
    %73 = arith.truncf %72 : vector<8x32xf32> to vector<8x32xbf16>
    %74 = vector.extract_strided_slice %24 {offsets = [0, 64], sizes = [8, 32], strides = [1, 1]} : vector<8x128xf32> to vector<8x32xf32>
    %75 = arith.truncf %74 : vector<8x32xf32> to vector<8x32xbf16>
    %76 = vector.extract_strided_slice %25 {offsets = [0, 64], sizes = [8, 32], strides = [1, 1]} : vector<8x128xf32> to vector<8x32xf32>
    %77 = arith.truncf %76 : vector<8x32xf32> to vector<8x32xbf16>
    %cst_32 = arith.constant dense<0.000000e+00> : vector<8x8xf32>
    %78 = tpu.matmul %73, %75, %cst_32 {dimension_numbers = #tpu.dot_dimension_numbers<[1], [1], [0], [0], [0, 0, 1, 0], [], []>} : vector<8x32xbf16>, vector<8x32xbf16>, vector<8x8xf32> -> vector<8x8xf32>
    %cst_33 = arith.constant 0.176776692 : f32
    %79 = vector.broadcast %cst_33 : f32 to vector<8x8xf32>
    %80 = arith.mulf %78, %79 : vector<8x8xf32>
    %81 = arith.addf %80, %9 : vector<8x8xf32>
    %cst_34 = arith.constant dense<0xFF800000> : vector<8xf32>
    %82 = vector.multi_reduction <maximumf>, %81, %cst_34 [1] : vector<8x8xf32> to vector<8xf32>
    %83 = vector.shape_cast %82 : vector<8xf32> to vector<8x1xf32>
    %84 = vector.broadcast %83 : vector<8x1xf32> to vector<8x8xf32>
    %85 = arith.subf %81, %84 : vector<8x8xf32>
    %86 = math.exp %85 : vector<8x8xf32>
    %cst_35 = arith.constant dense<0.000000e+00> : vector<8xf32>
    %87 = vector.multi_reduction <add>, %86, %cst_35 [1] : vector<8x8xf32> to vector<8xf32>
    %88 = vector.shape_cast %87 : vector<8xf32> to vector<8x1xf32>
    %89 = tpu.reciprocal %88 {approx = true} : vector<8x1xf32> -> vector<8x1xf32>
    %90 = vector.broadcast %89 : vector<8x1xf32> to vector<8x8xf32>
    %91 = arith.mulf %86, %90 : vector<8x8xf32>
    %92 = arith.truncf %91 : vector<8x8xf32> to vector<8x8xbf16>
    %cst_36 = arith.constant dense<0.000000e+00> : vector<8x32xf32>
    %93 = tpu.matmul %92, %77, %cst_36 {dimension_numbers = #tpu.dot_dimension_numbers<[1], [0], [0], [1], [0, 0, 1, 1], [], []>} : vector<8x8xbf16>, vector<8x32xbf16>, vector<8x32xf32> -> vector<8x32xf32>
    %c0_37 = arith.constant 0 : index
    %c64 = arith.constant 64 : index
    %94 = vector.load %arg28[%c0_37, %c64] : memref<8x128xf32, #tpu.memory_space<vmem>>, vector<8x32xf32>
    tpu.vector_store %arg28[%c0_37, %c64], %93 {strides = array<i32>} : memref<8x128xf32, #tpu.memory_space<vmem>>, vector<8x32xf32>,
    %95 = vector.extract_strided_slice %16 {offsets = [0, 96], sizes = [8, 32], strides = [1, 1]} : vector<8x128xf32> to vector<8x32xf32>
    %96 = arith.truncf %95 : vector<8x32xf32> to vector<8x32xbf16>
    %97 = vector.extract_strided_slice %24 {offsets = [0, 96], sizes = [8, 32], strides = [1, 1]} : vector<8x128xf32> to vector<8x32xf32>
    %98 = arith.truncf %97 : vector<8x32xf32> to vector<8x32xbf16>
    %99 = vector.extract_strided_slice %25 {offsets = [0, 96], sizes = [8, 32], strides = [1, 1]} : vector<8x128xf32> to vector<8x32xf32>
    %100 = arith.truncf %99 : vector<8x32xf32> to vector<8x32xbf16>
    %cst_38 = arith.constant dense<0.000000e+00> : vector<8x8xf32>
    %101 = tpu.matmul %96, %98, %cst_38 {dimension_numbers = #tpu.dot_dimension_numbers<[1], [1], [0], [0], [0, 0, 1, 0], [], []>} : vector<8x32xbf16>, vector<8x32xbf16>, vector<8x8xf32> -> vector<8x8xf32>
    %cst_39 = arith.constant 0.176776692 : f32
    %102 = vector.broadcast %cst_39 : f32 to vector<8x8xf32>
    %103 = arith.mulf %101, %102 : vector<8x8xf32>
    %104 = arith.addf %103, %9 : vector<8x8xf32>
    %cst_40 = arith.constant dense<0xFF800000> : vector<8xf32>
    %105 = vector.multi_reduction <maximumf>, %104, %cst_40 [1] : vector<8x8xf32> to vector<8xf32>
    %106 = vector.shape_cast %105 : vector<8xf32> to vector<8x1xf32>
    %107 = vector.broadcast %106 : vector<8x1xf32> to vector<8x8xf32>
    %108 = arith.subf %104, %107 : vector<8x8xf32>
    %109 = math.exp %108 : vector<8x8xf32>
    %cst_41 = arith.constant dense<0.000000e+00> : vector<8xf32>
    %110 = vector.multi_reduction <add>, %109, %cst_41 [1] : vector<8x8xf32> to vector<8xf32>
    %111 = vector.shape_cast %110 : vector<8xf32> to vector<8x1xf32>
    %112 = tpu.reciprocal %111 {approx = true} : vector<8x1xf32> -> vector<8x1xf32>
    %113 = vector.broadcast %112 : vector<8x1xf32> to vector<8x8xf32>
    %114 = arith.mulf %109, %113 : vector<8x8xf32>
    %115 = arith.truncf %114 : vector<8x8xf32> to vector<8x8xbf16>
    %cst_42 = arith.constant dense<0.000000e+00> : vector<8x32xf32>
    %116 = tpu.matmul %115, %100, %cst_42 {dimension_numbers = #tpu.dot_dimension_numbers<[1], [0], [0], [1], [0, 0, 1, 1], [], []>} : vector<8x8xbf16>, vector<8x32xbf16>, vector<8x32xf32> -> vector<8x32xf32>
    %c0_43 = arith.constant 0 : index
    %c96 = arith.constant 96 : index
    %117 = vector.load %arg28[%c0_43, %c96] : memref<8x128xf32, #tpu.memory_space<vmem>>, vector<8x32xf32>
    tpu.vector_store %arg28[%c0_43, %c96], %116 {strides = array<i32>} : memref<8x128xf32, #tpu.memory_space<vmem>>, vector<8x32xf32>,
    %c0_44 = arith.constant 0 : index
    %c0_45 = arith.constant 0 : index
    %118 = vector.load %arg28[%c0_44, %c0_45] : memref<8x128xf32, #tpu.memory_space<vmem>>, vector<8x128xf32>
    %c0_46 = arith.constant 0 : index
    %c0_47 = arith.constant 0 : index
    %119 = vector.load %arg9[%c0_46, %c0_47] : memref<128x128xf32, #tpu.memory_space<vmem>>, vector<128x128xf32>
    %120 = arith.truncf %118 : vector<8x128xf32> to vector<8x128xbf16>
    %121 = arith.truncf %119 : vector<128x128xf32> to vector<128x128xbf16>
    %cst_48 = arith.constant dense<0.000000e+00> : vector<8x128xf32>
    %122 = tpu.matmul %120, %121, %cst_48 {dimension_numbers = #tpu.dot_dimension_numbers<[1], [0], [0], [1], [0, 0, 1, 1], [], []>} : vector<8x128xbf16>, vector<128x128xbf16>, vector<8x128xf32> -> vector<8x128xf32>
    %c0_49 = arith.constant 0 : index
    %c0_50 = arith.constant 0 : index
    %123 = vector.load %arg10[%c0_49, %c0_50] : memref<1x128xf32, #tpu.memory_space<vmem>>, vector<1x128xf32>
    %124 = vector.broadcast %123 : vector<1x128xf32> to vector<8x128xf32>
    %125 = arith.addf %122, %124 : vector<8x128xf32>
    %126 = arith.addf %1, %125 : vector<8x128xf32>
    %c0_51 = arith.constant 0 : index
    %c0_52 = arith.constant 0 : index
    %127 = vector.load %arg11[%c0_51, %c0_52] : memref<1x128xf32, #tpu.memory_space<vmem>>, vector<1x128xf32>
    %c0_53 = arith.constant 0 : index
    %c0_54 = arith.constant 0 : index
    %128 = vector.load %arg12[%c0_53, %c0_54] : memref<1x128xf32, #tpu.memory_space<vmem>>, vector<1x128xf32>
    %cst_55 = arith.constant dense<0.000000e+00> : vector<8xf32>
    %129 = vector.multi_reduction <add>, %126, %cst_55 [1] : vector<8x128xf32> to vector<8xf32>
    %130 = vector.shape_cast %129 : vector<8xf32> to vector<8x1xf32>
    %cst_56 = arith.constant 1.280000e+02 : f32
    %131 = vector.broadcast %cst_56 : f32 to vector<8x1xf32>
    %132 = arith.divf %130, %131 : vector<8x1xf32>
    %133 = vector.broadcast %132 : vector<8x1xf32> to vector<8x128xf32>
    %134 = arith.subf %126, %133 : vector<8x128xf32>
    %135 = arith.mulf %134, %134 : vector<8x128xf32>
    %cst_57 = arith.constant dense<0.000000e+00> : vector<8xf32>
    %136 = vector.multi_reduction <add>, %135, %cst_57 [1] : vector<8x128xf32> to vector<8xf32>
    %137 = vector.shape_cast %136 : vector<8xf32> to vector<8x1xf32>
    %cst_58 = arith.constant 1.280000e+02 : f32
    %138 = vector.broadcast %cst_58 : f32 to vector<8x1xf32>
    %139 = arith.divf %137, %138 : vector<8x1xf32>
    %140 = vector.broadcast %132 : vector<8x1xf32> to vector<8x128xf32>
    %141 = arith.subf %126, %140 : vector<8x128xf32>
    %cst_59 = arith.constant 9.99999974E-6 : f32
    %142 = vector.broadcast %cst_59 : f32 to vector<8x1xf32>
    %143 = arith.addf %139, %142 : vector<8x1xf32>
    %144 = math.rsqrt %143 : vector<8x1xf32>
    %145 = vector.broadcast %144 : vector<8x1xf32> to vector<8x128xf32>
    %146 = arith.mulf %141, %145 : vector<8x128xf32>
    %147 = vector.broadcast %127 : vector<1x128xf32> to vector<8x128xf32>
    %148 = arith.mulf %146, %147 : vector<8x128xf32>
    %149 = vector.broadcast %128 : vector<1x128xf32> to vector<8x128xf32>
    %150 = arith.addf %148, %149 : vector<8x128xf32>
    %c0_60 = arith.constant 0 : index
    %c0_61 = arith.constant 0 : index
    %151 = vector.load %arg4[%c0_60, %c0_61] : memref<8x8xf32, #tpu.memory_space<vmem>>, vector<8x8xf32>
    %cst_62 = arith.constant 0.000000e+00 : f32
    %152 = vector.broadcast %cst_62 : f32 to vector<8x8xf32>
    %153 = arith.cmpf ogt, %151, %152 : vector<8x8xf32>
    %cst_63 = arith.constant 0.000000e+00 : f32
    %cst_64 = arith.constant -1.000000e+09 : f32
    %154 = vector.broadcast %cst_63 : f32 to vector<8x8xf32>
    %155 = vector.broadcast %cst_64 : f32 to vector<8x8xf32>
    %156 = arith.select %153, %154, %155 : vector<8x8xi1>, vector<8x8xf32>
    %c0_65 = arith.constant 0 : index
    %c0_66 = arith.constant 0 : index
    %157 = vector.load %arg13[%c0_65, %c0_66] : memref<128x128xf32, #tpu.memory_space<vmem>>, vector<128x128xf32>
    %158 = arith.truncf %150 : vector<8x128xf32> to vector<8x128xbf16>
    %159 = arith.truncf %157 : vector<128x128xf32> to vector<128x128xbf16>
    %cst_67 = arith.constant dense<0.000000e+00> : vector<8x128xf32>
    %160 = tpu.matmul %158, %159, %cst_67 {dimension_numbers = #tpu.dot_dimension_numbers<[1], [0], [0], [1], [0, 0, 1, 1], [], []>} : vector<8x128xbf16>, vector<128x128xbf16>, vector<8x128xf32> -> vector<8x128xf32>
    %c0_68 = arith.constant 0 : index
    %c0_69 = arith.constant 0 : index
    %161 = vector.load %arg14[%c0_68, %c0_69] : memref<1x128xf32, #tpu.memory_space<vmem>>, vector<1x128xf32>
    %162 = vector.broadcast %161 : vector<1x128xf32> to vector<8x128xf32>
    %163 = arith.addf %160, %162 : vector<8x128xf32>
    %c0_70 = arith.constant 0 : index
    %c0_71 = arith.constant 0 : index
    %164 = vector.load %arg15[%c0_70, %c0_71] : memref<128x256xf32, #tpu.memory_space<vmem>>, vector<128x256xf32>
    %165 = arith.truncf %3 : vector<8x128xf32> to vector<8x128xbf16>
    %166 = arith.truncf %164 : vector<128x256xf32> to vector<128x256xbf16>
    %cst_72 = arith.constant dense<0.000000e+00> : vector<8x256xf32>
    %167 = tpu.matmul %165, %166, %cst_72 {dimension_numbers = #tpu.dot_dimension_numbers<[1], [0], [0], [1], [0, 0, 1, 1], [], []>} : vector<8x128xbf16>, vector<128x256xbf16>, vector<8x256xf32> -> vector<8x256xf32>
    %c0_73 = arith.constant 0 : index
    %c0_74 = arith.constant 0 : index
    %168 = vector.load %arg16[%c0_73, %c0_74] : memref<1x256xf32, #tpu.memory_space<vmem>>, vector<1x256xf32>
    %169 = vector.broadcast %168 : vector<1x256xf32> to vector<8x256xf32>
    %170 = arith.addf %167, %169 : vector<8x256xf32>
    %171 = vector.extract_strided_slice %170 {offsets = [0, 0], sizes = [8, 128], strides = [1, 1]} : vector<8x256xf32> to vector<8x128xf32>
    %172 = vector.extract_strided_slice %170 {offsets = [0, 128], sizes = [8, 128], strides = [1, 1]} : vector<8x256xf32> to vector<8x128xf32>
    %173 = vector.extract_strided_slice %163 {offsets = [0, 0], sizes = [8, 32], strides = [1, 1]} : vector<8x128xf32> to vector<8x32xf32>
    %174 = arith.truncf %173 : vector<8x32xf32> to vector<8x32xbf16>
    %175 = vector.extract_strided_slice %171 {offsets = [0, 0], sizes = [8, 32], strides = [1, 1]} : vector<8x128xf32> to vector<8x32xf32>
    %176 = arith.truncf %175 : vector<8x32xf32> to vector<8x32xbf16>
    %177 = vector.extract_strided_slice %172 {offsets = [0, 0], sizes = [8, 32], strides = [1, 1]} : vector<8x128xf32> to vector<8x32xf32>
    %178 = arith.truncf %177 : vector<8x32xf32> to vector<8x32xbf16>
    %cst_75 = arith.constant dense<0.000000e+00> : vector<8x8xf32>
    %179 = tpu.matmul %174, %176, %cst_75 {dimension_numbers = #tpu.dot_dimension_numbers<[1], [1], [0], [0], [0, 0, 1, 0], [], []>} : vector<8x32xbf16>, vector<8x32xbf16>, vector<8x8xf32> -> vector<8x8xf32>
    %cst_76 = arith.constant 0.176776692 : f32
    %180 = vector.broadcast %cst_76 : f32 to vector<8x8xf32>
    %181 = arith.mulf %179, %180 : vector<8x8xf32>
    %182 = arith.addf %181, %156 : vector<8x8xf32>
    %cst_77 = arith.constant dense<0xFF800000> : vector<8xf32>
    %183 = vector.multi_reduction <maximumf>, %182, %cst_77 [1] : vector<8x8xf32> to vector<8xf32>
    %184 = vector.shape_cast %183 : vector<8xf32> to vector<8x1xf32>
    %185 = vector.broadcast %184 : vector<8x1xf32> to vector<8x8xf32>
    %186 = arith.subf %182, %185 : vector<8x8xf32>
    %187 = math.exp %186 : vector<8x8xf32>
    %cst_78 = arith.constant dense<0.000000e+00> : vector<8xf32>
    %188 = vector.multi_reduction <add>, %187, %cst_78 [1] : vector<8x8xf32> to vector<8xf32>
    %189 = vector.shape_cast %188 : vector<8xf32> to vector<8x1xf32>
    %190 = tpu.reciprocal %189 {approx = true} : vector<8x1xf32> -> vector<8x1xf32>
    %191 = vector.broadcast %190 : vector<8x1xf32> to vector<8x8xf32>
    %192 = arith.mulf %187, %191 : vector<8x8xf32>
    %193 = arith.truncf %192 : vector<8x8xf32> to vector<8x8xbf16>
    %cst_79 = arith.constant dense<0.000000e+00> : vector<8x32xf32>
    %194 = tpu.matmul %193, %178, %cst_79 {dimension_numbers = #tpu.dot_dimension_numbers<[1], [0], [0], [1], [0, 0, 1, 1], [], []>} : vector<8x8xbf16>, vector<8x32xbf16>, vector<8x32xf32> -> vector<8x32xf32>
    %c0_80 = arith.constant 0 : index
    %c0_81 = arith.constant 0 : index
    %195 = vector.load %arg28[%c0_80, %c0_81] : memref<8x128xf32, #tpu.memory_space<vmem>>, vector<8x32xf32>
    tpu.vector_store %arg28[%c0_80, %c0_81], %194 {strides = array<i32>} : memref<8x128xf32, #tpu.memory_space<vmem>>, vector<8x32xf32>,
    %196 = vector.extract_strided_slice %163 {offsets = [0, 32], sizes = [8, 32], strides = [1, 1]} : vector<8x128xf32> to vector<8x32xf32>
    %197 = arith.truncf %196 : vector<8x32xf32> to vector<8x32xbf16>
    %198 = vector.extract_strided_slice %171 {offsets = [0, 32], sizes = [8, 32], strides = [1, 1]} : vector<8x128xf32> to vector<8x32xf32>
    %199 = arith.truncf %198 : vector<8x32xf32> to vector<8x32xbf16>
    %200 = vector.extract_strided_slice %172 {offsets = [0, 32], sizes = [8, 32], strides = [1, 1]} : vector<8x128xf32> to vector<8x32xf32>
    %201 = arith.truncf %200 : vector<8x32xf32> to vector<8x32xbf16>
    %cst_82 = arith.constant dense<0.000000e+00> : vector<8x8xf32>
    %202 = tpu.matmul %197, %199, %cst_82 {dimension_numbers = #tpu.dot_dimension_numbers<[1], [1], [0], [0], [0, 0, 1, 0], [], []>} : vector<8x32xbf16>, vector<8x32xbf16>, vector<8x8xf32> -> vector<8x8xf32>
    %cst_83 = arith.constant 0.176776692 : f32
    %203 = vector.broadcast %cst_83 : f32 to vector<8x8xf32>
    %204 = arith.mulf %202, %203 : vector<8x8xf32>
    %205 = arith.addf %204, %156 : vector<8x8xf32>
    %cst_84 = arith.constant dense<0xFF800000> : vector<8xf32>
    %206 = vector.multi_reduction <maximumf>, %205, %cst_84 [1] : vector<8x8xf32> to vector<8xf32>
    %207 = vector.shape_cast %206 : vector<8xf32> to vector<8x1xf32>
    %208 = vector.broadcast %207 : vector<8x1xf32> to vector<8x8xf32>
    %209 = arith.subf %205, %208 : vector<8x8xf32>
    %210 = math.exp %209 : vector<8x8xf32>
    %cst_85 = arith.constant dense<0.000000e+00> : vector<8xf32>
    %211 = vector.multi_reduction <add>, %210, %cst_85 [1] : vector<8x8xf32> to vector<8xf32>
    %212 = vector.shape_cast %211 : vector<8xf32> to vector<8x1xf32>
    %213 = tpu.reciprocal %212 {approx = true} : vector<8x1xf32> -> vector<8x1xf32>
    %214 = vector.broadcast %213 : vector<8x1xf32> to vector<8x8xf32>
    %215 = arith.mulf %210, %214 : vector<8x8xf32>
    %216 = arith.truncf %215 : vector<8x8xf32> to vector<8x8xbf16>
    %cst_86 = arith.constant dense<0.000000e+00> : vector<8x32xf32>
    %217 = tpu.matmul %216, %201, %cst_86 {dimension_numbers = #tpu.dot_dimension_numbers<[1], [0], [0], [1], [0, 0, 1, 1], [], []>} : vector<8x8xbf16>, vector<8x32xbf16>, vector<8x32xf32> -> vector<8x32xf32>
    %c0_87 = arith.constant 0 : index
    %c32_88 = arith.constant 32 : index
    %218 = vector.load %arg28[%c0_87, %c32_88] : memref<8x128xf32, #tpu.memory_space<vmem>>, vector<8x32xf32>
    tpu.vector_store %arg28[%c0_87, %c32_88], %217 {strides = array<i32>} : memref<8x128xf32, #tpu.memory_space<vmem>>, vector<8x32xf32>,
    %219 = vector.extract_strided_slice %163 {offsets = [0, 64], sizes = [8, 32], strides = [1, 1]} : vector<8x128xf32> to vector<8x32xf32>
    %220 = arith.truncf %219 : vector<8x32xf32> to vector<8x32xbf16>
    %221 = vector.extract_strided_slice %171 {offsets = [0, 64], sizes = [8, 32], strides = [1, 1]} : vector<8x128xf32> to vector<8x32xf32>
    %222 = arith.truncf %221 : vector<8x32xf32> to vector<8x32xbf16>
    %223 = vector.extract_strided_slice %172 {offsets = [0, 64], sizes = [8, 32], strides = [1, 1]} : vector<8x128xf32> to vector<8x32xf32>
    %224 = arith.truncf %223 : vector<8x32xf32> to vector<8x32xbf16>
    %cst_89 = arith.constant dense<0.000000e+00> : vector<8x8xf32>
    %225 = tpu.matmul %220, %222, %cst_89 {dimension_numbers = #tpu.dot_dimension_numbers<[1], [1], [0], [0], [0, 0, 1, 0], [], []>} : vector<8x32xbf16>, vector<8x32xbf16>, vector<8x8xf32> -> vector<8x8xf32>
    %cst_90 = arith.constant 0.176776692 : f32
    %226 = vector.broadcast %cst_90 : f32 to vector<8x8xf32>
    %227 = arith.mulf %225, %226 : vector<8x8xf32>
    %228 = arith.addf %227, %156 : vector<8x8xf32>
    %cst_91 = arith.constant dense<0xFF800000> : vector<8xf32>
    %229 = vector.multi_reduction <maximumf>, %228, %cst_91 [1] : vector<8x8xf32> to vector<8xf32>
    %230 = vector.shape_cast %229 : vector<8xf32> to vector<8x1xf32>
    %231 = vector.broadcast %230 : vector<8x1xf32> to vector<8x8xf32>
    %232 = arith.subf %228, %231 : vector<8x8xf32>
    %233 = math.exp %232 : vector<8x8xf32>
    %cst_92 = arith.constant dense<0.000000e+00> : vector<8xf32>
    %234 = vector.multi_reduction <add>, %233, %cst_92 [1] : vector<8x8xf32> to vector<8xf32>
    %235 = vector.shape_cast %234 : vector<8xf32> to vector<8x1xf32>
    %236 = tpu.reciprocal %235 {approx = true} : vector<8x1xf32> -> vector<8x1xf32>
    %237 = vector.broadcast %236 : vector<8x1xf32> to vector<8x8xf32>
    %238 = arith.mulf %233, %237 : vector<8x8xf32>
    %239 = arith.truncf %238 : vector<8x8xf32> to vector<8x8xbf16>
    %cst_93 = arith.constant dense<0.000000e+00> : vector<8x32xf32>
    %240 = tpu.matmul %239, %224, %cst_93 {dimension_numbers = #tpu.dot_dimension_numbers<[1], [0], [0], [1], [0, 0, 1, 1], [], []>} : vector<8x8xbf16>, vector<8x32xbf16>, vector<8x32xf32> -> vector<8x32xf32>
    %c0_94 = arith.constant 0 : index
    %c64_95 = arith.constant 64 : index
    %241 = vector.load %arg28[%c0_94, %c64_95] : memref<8x128xf32, #tpu.memory_space<vmem>>, vector<8x32xf32>
    tpu.vector_store %arg28[%c0_94, %c64_95], %240 {strides = array<i32>} : memref<8x128xf32, #tpu.memory_space<vmem>>, vector<8x32xf32>,
    %242 = vector.extract_strided_slice %163 {offsets = [0, 96], sizes = [8, 32], strides = [1, 1]} : vector<8x128xf32> to vector<8x32xf32>
    %243 = arith.truncf %242 : vector<8x32xf32> to vector<8x32xbf16>
    %244 = vector.extract_strided_slice %171 {offsets = [0, 96], sizes = [8, 32], strides = [1, 1]} : vector<8x128xf32> to vector<8x32xf32>
    %245 = arith.truncf %244 : vector<8x32xf32> to vector<8x32xbf16>
    %246 = vector.extract_strided_slice %172 {offsets = [0, 96], sizes = [8, 32], strides = [1, 1]} : vector<8x128xf32> to vector<8x32xf32>
    %247 = arith.truncf %246 : vector<8x32xf32> to vector<8x32xbf16>
    %cst_96 = arith.constant dense<0.000000e+00> : vector<8x8xf32>
    %248 = tpu.matmul %243, %245, %cst_96 {dimension_numbers = #tpu.dot_dimension_numbers<[1], [1], [0], [0], [0, 0, 1, 0], [], []>} : vector<8x32xbf16>, vector<8x32xbf16>, vector<8x8xf32> -> vector<8x8xf32>
    %cst_97 = arith.constant 0.176776692 : f32
    %249 = vector.broadcast %cst_97 : f32 to vector<8x8xf32>
    %250 = arith.mulf %248, %249 : vector<8x8xf32>
    %251 = arith.addf %250, %156 : vector<8x8xf32>
    %cst_98 = arith.constant dense<0xFF800000> : vector<8xf32>
    %252 = vector.multi_reduction <maximumf>, %251, %cst_98 [1] : vector<8x8xf32> to vector<8xf32>
    %253 = vector.shape_cast %252 : vector<8xf32> to vector<8x1xf32>
    %254 = vector.broadcast %253 : vector<8x1xf32> to vector<8x8xf32>
    %255 = arith.subf %251, %254 : vector<8x8xf32>
    %256 = math.exp %255 : vector<8x8xf32>
    %cst_99 = arith.constant dense<0.000000e+00> : vector<8xf32>
    %257 = vector.multi_reduction <add>, %256, %cst_99 [1] : vector<8x8xf32> to vector<8xf32>
    %258 = vector.shape_cast %257 : vector<8xf32> to vector<8x1xf32>
    %259 = tpu.reciprocal %258 {approx = true} : vector<8x1xf32> -> vector<8x1xf32>
    %260 = vector.broadcast %259 : vector<8x1xf32> to vector<8x8xf32>
    %261 = arith.mulf %256, %260 : vector<8x8xf32>
    %262 = arith.truncf %261 : vector<8x8xf32> to vector<8x8xbf16>
    %cst_100 = arith.constant dense<0.000000e+00> : vector<8x32xf32>
    %263 = tpu.matmul %262, %247, %cst_100 {dimension_numbers = #tpu.dot_dimension_numbers<[1], [0], [0], [1], [0, 0, 1, 1], [], []>} : vector<8x8xbf16>, vector<8x32xbf16>, vector<8x32xf32> -> vector<8x32xf32>
    %c0_101 = arith.constant 0 : index
    %c96_102 = arith.constant 96 : index
    %264 = vector.load %arg28[%c0_101, %c96_102] : memref<8x128xf32, #tpu.memory_space<vmem>>, vector<8x32xf32>
    tpu.vector_store %arg28[%c0_101, %c96_102], %263 {strides = array<i32>} : memref<8x128xf32, #tpu.memory_space<vmem>>, vector<8x32xf32>,
    %c0_103 = arith.constant 0 : index
    %c0_104 = arith.constant 0 : index
    %265 = vector.load %arg28[%c0_103, %c0_104] : memref<8x128xf32, #tpu.memory_space<vmem>>, vector<8x128xf32>
    %c0_105 = arith.constant 0 : index
    %c0_106 = arith.constant 0 : index
    %266 = vector.load %arg17[%c0_105, %c0_106] : memref<128x128xf32, #tpu.memory_space<vmem>>, vector<128x128xf32>
    %267 = arith.truncf %265 : vector<8x128xf32> to vector<8x128xbf16>
    %268 = arith.truncf %266 : vector<128x128xf32> to vector<128x128xbf16>
    %cst_107 = arith.constant dense<0.000000e+00> : vector<8x128xf32>
    %269 = tpu.matmul %267, %268, %cst_107 {dimension_numbers = #tpu.dot_dimension_numbers<[1], [0], [0], [1], [0, 0, 1, 1], [], []>} : vector<8x128xbf16>, vector<128x128xbf16>, vector<8x128xf32> -> vector<8x128xf32>
    %c0_108 = arith.constant 0 : index
    %c0_109 = arith.constant 0 : index
    %270 = vector.load %arg18[%c0_108, %c0_109] : memref<1x128xf32, #tpu.memory_space<vmem>>, vector<1x128xf32>
    %271 = vector.broadcast %270 : vector<1x128xf32> to vector<8x128xf32>
    %272 = arith.addf %269, %271 : vector<8x128xf32>
    %273 = arith.addf %150, %272 : vector<8x128xf32>
    %c0_110 = arith.constant 0 : index
    %c0_111 = arith.constant 0 : index
    %274 = vector.load %arg19[%c0_110, %c0_111] : memref<1x128xf32, #tpu.memory_space<vmem>>, vector<1x128xf32>
    %c0_112 = arith.constant 0 : index
    %c0_113 = arith.constant 0 : index
    %275 = vector.load %arg20[%c0_112, %c0_113] : memref<1x128xf32, #tpu.memory_space<vmem>>, vector<1x128xf32>
    %cst_114 = arith.constant dense<0.000000e+00> : vector<8xf32>
    %276 = vector.multi_reduction <add>, %273, %cst_114 [1] : vector<8x128xf32> to vector<8xf32>
    %277 = vector.shape_cast %276 : vector<8xf32> to vector<8x1xf32>
    %cst_115 = arith.constant 1.280000e+02 : f32
    %278 = vector.broadcast %cst_115 : f32 to vector<8x1xf32>
    %279 = arith.divf %277, %278 : vector<8x1xf32>
    %280 = vector.broadcast %279 : vector<8x1xf32> to vector<8x128xf32>
    %281 = arith.subf %273, %280 : vector<8x128xf32>
    %282 = arith.mulf %281, %281 : vector<8x128xf32>
    %cst_116 = arith.constant dense<0.000000e+00> : vector<8xf32>
    %283 = vector.multi_reduction <add>, %282, %cst_116 [1] : vector<8x128xf32> to vector<8xf32>
    %284 = vector.shape_cast %283 : vector<8xf32> to vector<8x1xf32>
    %cst_117 = arith.constant 1.280000e+02 : f32
    %285 = vector.broadcast %cst_117 : f32 to vector<8x1xf32>
    %286 = arith.divf %284, %285 : vector<8x1xf32>
    %287 = vector.broadcast %279 : vector<8x1xf32> to vector<8x128xf32>
    %288 = arith.subf %273, %287 : vector<8x128xf32>
    %cst_118 = arith.constant 9.99999974E-6 : f32
    %289 = vector.broadcast %cst_118 : f32 to vector<8x1xf32>
    %290 = arith.addf %286, %289 : vector<8x1xf32>
    %291 = math.rsqrt %290 : vector<8x1xf32>
    %292 = vector.broadcast %291 : vector<8x1xf32> to vector<8x128xf32>
    %293 = arith.mulf %288, %292 : vector<8x128xf32>
    %294 = vector.broadcast %274 : vector<1x128xf32> to vector<8x128xf32>
    %295 = arith.mulf %293, %294 : vector<8x128xf32>
    %296 = vector.broadcast %275 : vector<1x128xf32> to vector<8x128xf32>
    %297 = arith.addf %295, %296 : vector<8x128xf32>
    %c0_119 = arith.constant 0 : index
    %c0_120 = arith.constant 0 : index
    %298 = vector.load %arg21[%c0_119, %c0_120] : memref<128x256xf32, #tpu.memory_space<vmem>>, vector<128x256xf32>
    %299 = arith.truncf %297 : vector<8x128xf32> to vector<8x128xbf16>
    %300 = arith.truncf %298 : vector<128x256xf32> to vector<128x256xbf16>
    %cst_121 = arith.constant dense<0.000000e+00> : vector<8x256xf32>
    %301 = tpu.matmul %299, %300, %cst_121 {dimension_numbers = #tpu.dot_dimension_numbers<[1], [0], [0], [1], [0, 0, 1, 1], [], []>} : vector<8x128xbf16>, vector<128x256xbf16>, vector<8x256xf32> -> vector<8x256xf32>
    %c0_122 = arith.constant 0 : index
    %c0_123 = arith.constant 0 : index
    %302 = vector.load %arg22[%c0_122, %c0_123] : memref<1x256xf32, #tpu.memory_space<vmem>>, vector<1x256xf32>
    %303 = vector.broadcast %302 : vector<1x256xf32> to vector<8x256xf32>
    %304 = arith.addf %301, %303 : vector<8x256xf32>
    %cst_124 = arith.constant 0.000000e+00 : f32
    %305 = vector.broadcast %cst_124 : f32 to vector<8x256xf32>
    %306 = arith.maximumf %304, %305 : vector<8x256xf32>
    %c0_125 = arith.constant 0 : index
    %c0_126 = arith.constant 0 : index
    %307 = vector.load %arg23[%c0_125, %c0_126] : memref<256x128xf32, #tpu.memory_space<vmem>>, vector<256x128xf32>
    %308 = arith.truncf %306 : vector<8x256xf32> to vector<8x256xbf16>
    %309 = arith.truncf %307 : vector<256x128xf32> to vector<256x128xbf16>
    %cst_127 = arith.constant dense<0.000000e+00> : vector<8x128xf32>
    %310 = tpu.matmul %308, %309, %cst_127 {dimension_numbers = #tpu.dot_dimension_numbers<[1], [0], [0], [1], [0, 0, 1, 1], [], []>} : vector<8x256xbf16>, vector<256x128xbf16>, vector<8x128xf32> -> vector<8x128xf32>
    %c0_128 = arith.constant 0 : index
    %c0_129 = arith.constant 0 : index
    %311 = vector.load %arg24[%c0_128, %c0_129] : memref<1x128xf32, #tpu.memory_space<vmem>>, vector<1x128xf32>
    %312 = vector.broadcast %311 : vector<1x128xf32> to vector<8x128xf32>
    %313 = arith.addf %310, %312 : vector<8x128xf32>
    %314 = arith.addf %297, %313 : vector<8x128xf32>
    %c0_130 = arith.constant 0 : index
    %c0_131 = arith.constant 0 : index
    %315 = vector.load %arg25[%c0_130, %c0_131] : memref<1x128xf32, #tpu.memory_space<vmem>>, vector<1x128xf32>
    %c0_132 = arith.constant 0 : index
    %c0_133 = arith.constant 0 : index
    %316 = vector.load %arg26[%c0_132, %c0_133] : memref<1x128xf32, #tpu.memory_space<vmem>>, vector<1x128xf32>
    %cst_134 = arith.constant dense<0.000000e+00> : vector<8xf32>
    %317 = vector.multi_reduction <add>, %314, %cst_134 [1] : vector<8x128xf32> to vector<8xf32>
    %318 = vector.shape_cast %317 : vector<8xf32> to vector<8x1xf32>
    %cst_135 = arith.constant 1.280000e+02 : f32
    %319 = vector.broadcast %cst_135 : f32 to vector<8x1xf32>
    %320 = arith.divf %318, %319 : vector<8x1xf32>
    %321 = vector.broadcast %320 : vector<8x1xf32> to vector<8x128xf32>
    %322 = arith.subf %314, %321 : vector<8x128xf32>
    %323 = arith.mulf %322, %322 : vector<8x128xf32>
    %cst_136 = arith.constant dense<0.000000e+00> : vector<8xf32>
    %324 = vector.multi_reduction <add>, %323, %cst_136 [1] : vector<8x128xf32> to vector<8xf32>
    %325 = vector.shape_cast %324 : vector<8xf32> to vector<8x1xf32>
    %cst_137 = arith.constant 1.280000e+02 : f32
    %326 = vector.broadcast %cst_137 : f32 to vector<8x1xf32>
    %327 = arith.divf %325, %326 : vector<8x1xf32>
    %328 = vector.broadcast %320 : vector<8x1xf32> to vector<8x128xf32>
    %329 = arith.subf %314, %328 : vector<8x128xf32>
    %cst_138 = arith.constant 9.99999974E-6 : f32
    %330 = vector.broadcast %cst_138 : f32 to vector<8x1xf32>
    %331 = arith.addf %327, %330 : vector<8x1xf32>
    %332 = math.rsqrt %331 : vector<8x1xf32>
    %333 = vector.broadcast %332 : vector<8x1xf32> to vector<8x128xf32>
    %334 = arith.mulf %329, %333 : vector<8x128xf32>
    %335 = vector.broadcast %315 : vector<1x128xf32> to vector<8x128xf32>
    %336 = arith.mulf %334, %335 : vector<8x128xf32>
    %337 = vector.broadcast %316 : vector<1x128xf32> to vector<8x128xf32>
    %338 = arith.addf %336, %337 : vector<8x128xf32>
    %c0_139 = arith.constant 0 : index
    %c0_140 = arith.constant 0 : index
    %c0_141 = arith.constant 0 : index
    %339 = vector.load %arg27[%c0_139, %c0_140, %c0_141] : memref<1x8x128xf32, #tpu.memory_space<vmem>>, vector<1x8x128xf32>
    %340 = vector.shape_cast %339 : vector<1x8x128xf32> to vector<8x128xf32>
    %341 = vector.shape_cast %338 : vector<8x128xf32> to vector<1x8x128xf32>
    tpu.vector_store %arg27[%c0_139, %c0_140, %c0_141], %341 {strides = array<i32>} : memref<1x8x128xf32, #tpu.memory_space<vmem>>, vector<1x8x128xf32>,
    return
  }
  func.func @transform_0(%arg0: i32) -> (i32, i32, i32) {
    %c0_i32 = arith.constant 0 : i32
    %c0_i32_0 = arith.constant 0 : i32
    %c0_i32_1 = arith.constant 0 : i32
    return %arg0, %c0_i32, %c0_i32_0 : i32, i32, i32
  }
  func.func @transform_1(%arg0: i32) -> (i32, i32, i32) {
    %c0_i32 = arith.constant 0 : i32
    %c0_i32_0 = arith.constant 0 : i32
    %c0_i32_1 = arith.constant 0 : i32
    return %arg0, %c0_i32, %c0_i32_0 : i32, i32, i32
  }
  func.func @transform_2(%arg0: i32) -> (i32, i32) {
    %c0_i32 = arith.constant 0 : i32
    %c0_i32_0 = arith.constant 0 : i32
    %c0_i32_1 = arith.constant 0 : i32
    return %c0_i32, %c0_i32_0 : i32, i32
  }
  func.func @transform_3(%arg0: i32) -> (i32, i32) {
    %c0_i32 = arith.constant 0 : i32
    %c0_i32_0 = arith.constant 0 : i32
    %c0_i32_1 = arith.constant 0 : i32
    return %c0_i32, %c0_i32_0 : i32, i32
  }
  func.func @transform_4(%arg0: i32) -> (i32, i32) {
    %c0_i32 = arith.constant 0 : i32
    %c0_i32_0 = arith.constant 0 : i32
    %c0_i32_1 = arith.constant 0 : i32
    return %c0_i32, %c0_i32_0 : i32, i32
  }
  func.func @transform_5(%arg0: i32) -> (i32, i32) {
    %c0_i32 = arith.constant 0 : i32
    %c0_i32_0 = arith.constant 0 : i32
    %c0_i32_1 = arith.constant 0 : i32
    return %c0_i32, %c0_i32_0 : i32, i32
  }
  func.func @transform_6(%arg0: i32) -> (i32, i32) {
    %c0_i32 = arith.constant 0 : i32
    %c0_i32_0 = arith.constant 0 : i32
    %c0_i32_1 = arith.constant 0 : i32
    return %c0_i32, %c0_i32_0 : i32, i32
  }
  func.func @transform_7(%arg0: i32) -> (i32, i32) {
    %c0_i32 = arith.constant 0 : i32
    %c0_i32_0 = arith.constant 0 : i32
    %c0_i32_1 = arith.constant 0 : i32
    return %c0_i32, %c0_i32_0 : i32, i32
  }
  func.func @transform_8(%arg0: i32) -> (i32, i32) {
    %c0_i32 = arith.constant 0 : i32
    %c0_i32_0 = arith.constant 0 : i32
    %c0_i32_1 = arith.constant 0 : i32
    return %c0_i32, %c0_i32_0 : i32, i32
  }
  func.func @transform_9(%arg0: i32) -> (i32, i32) {
    %c0_i32 = arith.constant 0 : i32
    %c0_i32_0 = arith.constant 0 : i32
    %c0_i32_1 = arith.constant 0 : i32
    return %c0_i32, %c0_i32_0 : i32, i32
  }
  func.func @transform_10(%arg0: i32) -> (i32, i32) {
    %c0_i32 = arith.constant 0 : i32
    %c0_i32_0 = arith.constant 0 : i32
    %c0_i32_1 = arith.constant 0 : i32
    return %c0_i32, %c0_i32_0 : i32, i32
  }
  func.func @transform_11(%arg0: i32) -> (i32, i32) {
    %c0_i32 = arith.constant 0 : i32
    %c0_i32_0 = arith.constant 0 : i32
    %c0_i32_1 = arith.constant 0 : i32
    return %c0_i32, %c0_i32_0 : i32, i32
  }
  func.func @transform_12(%arg0: i32) -> (i32, i32) {
    %c0_i32 = arith.constant 0 : i32
    %c0_i32_0 = arith.constant 0 : i32
    %c0_i32_1 = arith.constant 0 : i32
    return %c0_i32, %c0_i32_0 : i32, i32
  }
  func.func @transform_13(%arg0: i32) -> (i32, i32) {
    %c0_i32 = arith.constant 0 : i32
    %c0_i32_0 = arith.constant 0 : i32
    %c0_i32_1 = arith.constant 0 : i32
    return %c0_i32, %c0_i32_0 : i32, i32
  }
  func.func @transform_14(%arg0: i32) -> (i32, i32) {
    %c0_i32 = arith.constant 0 : i32
    %c0_i32_0 = arith.constant 0 : i32
    %c0_i32_1 = arith.constant 0 : i32
    return %c0_i32, %c0_i32_0 : i32, i32
  }
  func.func @transform_15(%arg0: i32) -> (i32, i32) {
    %c0_i32 = arith.constant 0 : i32
    %c0_i32_0 = arith.constant 0 : i32
    %c0_i32_1 = arith.constant 0 : i32
    return %c0_i32, %c0_i32_0 : i32, i32
  }
  func.func @transform_16(%arg0: i32) -> (i32, i32) {
    %c0_i32 = arith.constant 0 : i32
    %c0_i32_0 = arith.constant 0 : i32
    %c0_i32_1 = arith.constant 0 : i32
    return %c0_i32, %c0_i32_0 : i32, i32
  }
  func.func @transform_17(%arg0: i32) -> (i32, i32) {
    %c0_i32 = arith.constant 0 : i32
    %c0_i32_0 = arith.constant 0 : i32
    %c0_i32_1 = arith.constant 0 : i32
    return %c0_i32, %c0_i32_0 : i32, i32
  }
  func.func @transform_18(%arg0: i32) -> (i32, i32) {
    %c0_i32 = arith.constant 0 : i32
    %c0_i32_0 = arith.constant 0 : i32
    %c0_i32_1 = arith.constant 0 : i32
    return %c0_i32, %c0_i32_0 : i32, i32
  }
  func.func @transform_19(%arg0: i32) -> (i32, i32) {
    %c0_i32 = arith.constant 0 : i32
    %c0_i32_0 = arith.constant 0 : i32
    %c0_i32_1 = arith.constant 0 : i32
    return %c0_i32, %c0_i32_0 : i32, i32
  }
  func.func @transform_20(%arg0: i32) -> (i32, i32) {
    %c0_i32 = arith.constant 0 : i32
    %c0_i32_0 = arith.constant 0 : i32
    %c0_i32_1 = arith.constant 0 : i32
    return %c0_i32, %c0_i32_0 : i32, i32
  }
  func.func @transform_21(%arg0: i32) -> (i32, i32) {
    %c0_i32 = arith.constant 0 : i32
    %c0_i32_0 = arith.constant 0 : i32
    %c0_i32_1 = arith.constant 0 : i32
    return %c0_i32, %c0_i32_0 : i32, i32
  }
  func.func @transform_22(%arg0: i32) -> (i32, i32) {
    %c0_i32 = arith.constant 0 : i32
    %c0_i32_0 = arith.constant 0 : i32
    %c0_i32_1 = arith.constant 0 : i32
    return %c0_i32, %c0_i32_0 : i32, i32
  }
  func.func @transform_23(%arg0: i32) -> (i32, i32) {
    %c0_i32 = arith.constant 0 : i32
    %c0_i32_0 = arith.constant 0 : i32
    %c0_i32_1 = arith.constant 0 : i32
    return %c0_i32, %c0_i32_0 : i32, i32
  }
  func.func @transform_24(%arg0: i32) -> (i32, i32) {
    %c0_i32 = arith.constant 0 : i32
    %c0_i32_0 = arith.constant 0 : i32
    %c0_i32_1 = arith.constant 0 : i32
    return %c0_i32, %c0_i32_0 : i32, i32
  }
  func.func @transform_25(%arg0: i32) -> (i32, i32) {
    %c0_i32 = arith.constant 0 : i32
    %c0_i32_0 = arith.constant 0 : i32
    %c0_i32_1 = arith.constant 0 : i32
    return %c0_i32, %c0_i32_0 : i32, i32
  }
  func.func @transform_26(%arg0: i32) -> (i32, i32, i32) {
    %c0_i32 = arith.constant 0 : i32
    %c0_i32_0 = arith.constant 0 : i32
    %c0_i32_1 = arith.constant 0 : i32
    return %arg0, %c0_i32, %c0_i32_0 : i32, i32, i32
  }
}

</mosaic_0001>

<llo_original>
// kernel: tpu_custom_call.1
$region0: #{tpu_custom_call.1}
  #allocation0 [shape = 'u32[]', space=smem, size = 0x4, offset = 0x4, fixed_abs, tag = 'smem constant byte address 0x4 - core index']
  #allocation1 [shape = 'u32[144,128]{1,0:T(1,128)}', space=vmem, size = 0x12000, scoped, tag = 'internal scratch']
  #allocation2 [shape = 'f32[8,128]{1,0:T(8,128)}', space=vmem, size = 0x1000, scoped, tag = 'scratch operand']
  %s0 = inlined_call_operand.hbm [shape: f32[2,8,128], index: 0, kind: input, shape index: {}]
  %s1 = inlined_call_operand.hbm [shape: f32[2,8,128], index: 1, kind: input, shape index: {}]
  %s2 = inlined_call_operand.hbm [shape: f32[8,8], index: 2, kind: input, shape index: {}]
  %s3 = inlined_call_operand.hbm [shape: f32[8,8], index: 3, kind: input, shape index: {}]
  %s4 = inlined_call_operand.hbm [shape: f32[128,128], index: 4, kind: input, shape index: {}]
  %s5 = inlined_call_operand.vmem [shape: f32[1,128], index: 5, kind: input, shape index: {}]
  %s6 = inlined_call_operand.hbm [shape: f32[128,256], index: 6, kind: input, shape index: {}]
  %s7 = inlined_call_operand.vmem [shape: f32[1,256], index: 7, kind: input, shape index: {}]
  %s8 = inlined_call_operand.hbm [shape: f32[128,128], index: 8, kind: input, shape index: {}]
  %s9 = inlined_call_operand.vmem [shape: f32[1,128], index: 9, kind: input, shape index: {}]
  %s10 = inlined_call_operand.vmem [shape: f32[1,128], index: 10, kind: input, shape index: {}]
  %s11 = inlined_call_operand.vmem [shape: f32[1,128], index: 11, kind: input, shape index: {}]
  %s12 = inlined_call_operand.hbm [shape: f32[128,128], index: 12, kind: input, shape index: {}]
  %s13 = inlined_call_operand.vmem [shape: f32[1,128], index: 13, kind: input, shape index: {}]
  %s14 = inlined_call_operand.hbm [shape: f32[128,256], index: 14, kind: input, shape index: {}]
  %s15 = inlined_call_operand.vmem [shape: f32[1,256], index: 15, kind: input, shape index: {}]
  %s16 = inlined_call_operand.hbm [shape: f32[128,128], index: 16, kind: input, shape index: {}]
  %s17 = inlined_call_operand.vmem [shape: f32[1,128], index: 17, kind: input, shape index: {}]
  %s18 = inlined_call_operand.vmem [shape: f32[1,128], index: 18, kind: input, shape index: {}]
  %s19 = inlined_call_operand.vmem [shape: f32[1,128], index: 19, kind: input, shape index: {}]
  %s20 = inlined_call_operand.hbm [shape: f32[128,256], index: 20, kind: input, shape index: {}]
  %s21 = inlined_call_operand.vmem [shape: f32[1,256], index: 21, kind: input, shape index: {}]
  %s22 = inlined_call_operand.hbm [shape: f32[256,128], index: 22, kind: input, shape index: {}]
  %s23 = inlined_call_operand.vmem [shape: f32[1,128], index: 23, kind: input, shape index: {}]
  %s24 = inlined_call_operand.vmem [shape: f32[1,128], index: 24, kind: input, shape index: {}]
  %s25 = inlined_call_operand.vmem [shape: f32[1,128], index: 25, kind: input, shape index: {}]
  %s26 = inlined_call_operand.hbm [shape: f32[2,8,128], index: 26, kind: output, shape index: {}]
  %s27 = sld [smem:[#allocation0]]
  $region185: #{tpu_custom_call.1} parent=0
    _
  %s29 = ssub.s32 1, %s27
  %s30 = scalar_select 0, %s29, %s27
  $region1: #{tpu_custom_call.1} parent=0
    #allocation3 [shape = 'u8[8192]{0}', space=vmem, size = 0x2000, scoped, tag = 'input window, operand 0']
    #allocation4 [shape = 's32[2]{0}', space=sflag, size = 0x8, scoped, tag = 'scoped memory for tpu_custom_call.1']
    #allocation5 [shape = 's32[2]{0}', space=sflag, size = 0x8, scoped, tag = 'scoped memory for tpu_custom_call.1']
    #allocation6 [shape = 'u8[8192]{0}', space=vmem, size = 0x2000, scoped, tag = 'input window, operand 1']
    #allocation7 [shape = 's32[2]{0}', space=sflag, size = 0x8, scoped, tag = 'scoped memory for tpu_custom_call.1']
    #allocation8 [shape = 'u8[4096]{0}', space=vmem, size = 0x1000, scoped, tag = 'input window, operand 2, single buffered']
    #allocation9 [shape = 'u8[4096]{0}', space=vmem, size = 0x1000, scoped, tag = 'input window, operand 3, single buffered']
    #allocation10 [shape = 's32[1]{0}', space=sflag, size = 0x4, scoped, tag = 'scoped memory for tpu_custom_call.1']
    #allocation11 [shape = 'u8[65536]{0}', space=vmem, size = 0x10000, scoped, tag = 'input window, operand 4, single buffered']
    #allocation12 [shape = 'u8[131072]{0}', space=vmem, size = 0x20000, scoped, tag = 'input window, operand 6, single buffered']
    #allocation13 [shape = 's32[1]{0}', space=sflag, size = 0x4, scoped, tag = 'scoped memory for tpu_custom_call.1']
    #allocation14 [shape = 'u8[65536]{0}', space=vmem, size = 0x10000, scoped, tag = 'input window, operand 8, single buffered']
    #allocation15 [shape = 'u8[65536]{0}', space=vmem, size = 0x10000, scoped, tag = 'input window, operand 12, single buffered']
    #allocation16 [shape = 's32[1]{0}', space=sflag, size = 0x4, scoped, tag = 'scoped memory for tpu_custom_call.1']
    #allocation17 [shape = 'u8[131072]{0}', space=vmem, size = 0x20000, scoped, tag = 'input window, operand 14, single buffered']
    #allocation18 [shape = 'u8[65536]{0}', space=vmem, size = 0x10000, scoped, tag = 'input window, operand 16, single buffered']
    #allocation19 [shape = 's32[1]{0}', space=sflag, size = 0x4, scoped, tag = 'scoped memory for tpu_custom_call.1']
    #allocation20 [shape = 'u8[131072]{0}', space=vmem, size = 0x20000, scoped, tag = 'input window, operand 20, single buffered']
    #allocation21 [shape = 'u8[131072]{0}', space=vmem, size = 0x20000, scoped, tag = 'input window, operand 22, single buffered']
    #allocation22 [shape = 's32[1]{0}', space=sflag, size = 0x4, scoped, tag = 'scoped memory for tpu_custom_call.1']
    #allocation23 [shape = 'u8[8192]{0}', space=vmem, size = 0x2000, scoped, tag = 'output window, operand 0']
    %31 = vsyncpa [#allocation4], 0
    %s32 = scalar_lea.sflag [#allocation4], 1
    %33 = vsyncpa %s32, 0
    %34 = vsyncpa [#allocation7], 0
    %s35 = scalar_lea.sflag [#allocation7], 1
    %36 = vsyncpa %s35, 0
    %37 = vsyncpa [#allocation10], 0
    %38 = vsyncpa [#allocation13], 0
    %39 = vsyncpa [#allocation16], 0
    %40 = vsyncpa [#allocation19], 0
    %41 = vsyncpa [#allocation22], 0
    %42 = vsyncpa [#allocation5], 0
    %s43 = scalar_lea.sflag [#allocation5], 1
    %44 = vsyncpa %s43, 0
    loop: start=0, step=1, limit=4
    $region2: #{tpu_custom_call.1} parent=1 // loop_pre_header
      _
    $region3: #{tpu_custom_call.1} parent=1 // loop_header
      %s46 = sphi 0, %s50
      %p47 = scmp.ge.s32.totalorder %s46, 4
      %s56 = sphi 0, %s58
      %s59 = sphi 0, %s56
      %s60 = sphi 0, %s59
      %s76 = sphi 0, %s60
      %s82 = sphi 0, %s84
      %s85 = sphi 0, %s82
      %s86 = sphi 0, %s85
      %s102 = sphi 0, %s86
      %s106 = sphi 0, %s106
      %s108 = sphi 0, %s106
      %s109 = sphi 0, %s108
      %s123 = sphi 0, %s109
      %s127 = sphi 0, %s127
      %s129 = sphi 0, %s127
      %s130 = sphi 0, %s129
      %s144 = sphi 0, %s130
      %s148 = sphi 0, %s148
      %s150 = sphi 0, %s148
      %s151 = sphi 0, %s150
      %s165 = sphi 0, %s151
      %s169 = sphi 0, %s169
      %s171 = sphi 0, %s169
      %s172 = sphi 0, %s171
      %s186 = sphi 0, %s172
      %s190 = sphi 0, %s190
      %s192 = sphi 0, %s190
      %s193 = sphi 0, %s192
      %s207 = sphi 0, %s193
      %s211 = sphi 0, %s211
      %s213 = sphi 0, %s211
      %s214 = sphi 0, %s213
      %s228 = sphi 0, %s214
      %s232 = sphi 0, %s232
      %s234 = sphi 0, %s232
      %s235 = sphi 0, %s234
      %s249 = sphi 0, %s235
      %s253 = sphi 0, %s253
      %s255 = sphi 0, %s253
      %s256 = sphi 0, %s255
      %s270 = sphi 0, %s256
      %s274 = sphi 0, %s274
      %s276 = sphi 0, %s274
      %s277 = sphi 0, %s276
      %s291 = sphi 0, %s277
      %s295 = sphi 0, %s295
      %s297 = sphi 0, %s295
      %s298 = sphi 0, %s297
      %s312 = sphi 0, %s298
      %s316 = sphi 0, %s316
      %s318 = sphi 0, %s316
      %s319 = sphi 0, %s318
      %s333 = sphi 0, %s319
      %s337 = sphi 0, %s337
      %s339 = sphi 0, %s337
      %s340 = sphi 0, %s339
      %s354 = sphi 0, %s340
      %s358 = sphi 0, %s358
      %s360 = sphi 0, %s358
      %s361 = sphi 0, %s360
      %s375 = sphi 0, %s361
      %s379 = sphi 0, %s379
      %s381 = sphi 0, %s379
      %s382 = sphi 0, %s381
      %s396 = sphi 0, %s382
      %s400 = sphi 0, %s400
      %s402 = sphi 0, %s400
      %s403 = sphi 0, %s402
      %s417 = sphi 0, %s403
      %s421 = sphi 0, %s421
      %s423 = sphi 0, %s421
      %s424 = sphi 0, %s423
      %s438 = sphi 0, %s424
      %s442 = sphi 0, %s442
      %s444 = sphi 0, %s442
      %s445 = sphi 0, %s444
      %s459 = sphi 0, %s445
      %s463 = sphi 0, %s463
      %s465 = sphi 0, %s463
      %s466 = sphi 0, %s465
      %s480 = sphi 0, %s466
      %s484 = sphi 0, %s484
      %s486 = sphi 0, %s484
      %s487 = sphi 0, %s486
      %s501 = sphi 0, %s487
      %s505 = sphi 0, %s505
      %s507 = sphi 0, %s505
      %s508 = sphi 0, %s507
      %s522 = sphi 0, %s508
      %s526 = sphi 0, %s526
      %s528 = sphi 0, %s526
      %s529 = sphi 0, %s528
      %s543 = sphi 0, %s529
      %s547 = sphi 0, %s547
      %s549 = sphi 0, %s547
      %s550 = sphi 0, %s549
      %s564 = sphi 0, %s550
      %s568 = sphi 0, %s568
      %s570 = sphi 0, %s568
      %s571 = sphi 0, %s570
      %s585 = sphi 0, %s571
      %s589 = sphi 0, %s589
      %s591 = sphi 0, %s589
      %s592 = sphi 0, %s591
      %s606 = sphi 0, %s592
      %s612 = sphi 0, %s614
      %s615 = sphi 0, %s612
      %s616 = sphi 0, %s615
      %s632 = sphi 0, %s616
    $region4: #{tpu_custom_call.1} parent=1 // loop_header_branch
      %49 = sbr.rel (%p47) target = $region8
    $region5: #{tpu_custom_call.1} parent=1 // loop_body
      %s51 = ssub.s32 %s46, 1
      %s52 = ssub.s32 %s46, 2
      %s53 = sadd.s32 %s46, 1
      %s54 = ssub.s32 %s46, %s53
      %p55 = scmp.eq.s32.totalorder %s54, 0
      %s57 = sadd.s32 %s56, 1
      %s58 = scalar_select %p55, %s56, %s57
      %p61 = pneg %p55
      %p62 = scmp.eq.s32.totalorder %s46, 1
      %p63 = por %p61, %p62
      %p64 = scmp.ne.s32.totalorder %s56, %s59
      %p65 = scmp.eq.s32.totalorder %s46, 0
      %p66 = por %p64, %p65
      %p67 = scmp.ne.s32.totalorder %s56, %s59
      %p68 = scmp.eq.s32.totalorder %s51, 1
      %p69 = por %p67, %p68
      %p70 = scmp.ne.s32.totalorder %s59, %s60
      %p71 = scmp.eq.s32.totalorder %s51, 0
      %p72 = por %p70, %p71
      %p73 = scmp.ne.s32.totalorder %s59, %s60
      %p74 = scmp.eq.s32.totalorder %s52, 1
      %p75 = por %p73, %p74
      %p77 = scmp.ne.s32.totalorder %s60, %s76
      %p78 = scmp.eq.s32.totalorder %s52, 0
      %p79 = por %p77, %p78
      %s80 = ssub.s32 %s46, %s53
      %p81 = scmp.eq.s32.totalorder %s80, 0
      %s83 = sadd.s32 %s82, 1
      %s84 = scalar_select %p81, %s82, %s83
      %p87 = pneg %p81
      %p88 = scmp.eq.s32.totalorder %s46, 1
      %p89 = por %p87, %p88
      %p90 = scmp.ne.s32.totalorder %s82, %s85
      %p91 = scmp.eq.s32.totalorder %s46, 0
      %p92 = por %p90, %p91
      %p93 = scmp.ne.s32.totalorder %s82, %s85
      %p94 = scmp.eq.s32.totalorder %s51, 1
      %p95 = por %p93, %p94
      %p96 = scmp.ne.s32.totalorder %s85, %s86
      %p97 = scmp.eq.s32.totalorder %s51, 0
      %p98 = por %p96, %p97
      %p99 = scmp.ne.s32.totalorder %s85, %s86
      %p100 = scmp.eq.s32.totalorder %s52, 1
      %p101 = por %p99, %p100
      %p103 = scmp.ne.s32.totalorder %s86, %s102
      %p104 = scmp.eq.s32.totalorder %s52, 0
      %p105 = por %p103, %p104
      %s107 = sadd.s32 %s106, 1
      %p110 = scmp.eq.s32.totalorder %s46, 1
      %p111 = scmp.ne.s32.totalorder %s106, %s108
      %p112 = scmp.eq.s32.totalorder %s46, 0
      %p113 = por %p111, %p112
      %p114 = scmp.ne.s32.totalorder %s106, %s108
      %p115 = scmp.eq.s32.totalorder %s51, 1
      %p116 = por %p114, %p115
      %p117 = scmp.ne.s32.totalorder %s108, %s109
      %p118 = scmp.eq.s32.totalorder %s51, 0
      %p119 = por %p117, %p118
      %p120 = scmp.ne.s32.totalorder %s108, %s109
      %p121 = scmp.eq.s32.totalorder %s52, 1
      %p122 = por %p120, %p121
      %p124 = scmp.ne.s32.totalorder %s109, %s123
      %p125 = scmp.eq.s32.totalorder %s52, 0
      %p126 = por %p124, %p125
      %s128 = sadd.s32 %s127, 1
      %p131 = scmp.eq.s32.totalorder %s46, 1
      %p132 = scmp.ne.s32.totalorder %s127, %s129
      %p133 = scmp.eq.s32.totalorder %s46, 0
      %p134 = por %p132, %p133
      %p135 = scmp.ne.s32.totalorder %s127, %s129
      %p136 = scmp.eq.s32.totalorder %s51, 1
      %p137 = por %p135, %p136
      %p138 = scmp.ne.s32.totalorder %s129, %s130
      %p139 = scmp.eq.s32.totalorder %s51, 0
      %p140 = por %p138, %p139
      %p141 = scmp.ne.s32.totalorder %s129, %s130
      %p142 = scmp.eq.s32.totalorder %s52, 1
      %p143 = por %p141, %p142
      %p145 = scmp.ne.s32.totalorder %s130, %s144
      %p146 = scmp.eq.s32.totalorder %s52, 0
      %p147 = por %p145, %p146
      %s149 = sadd.s32 %s148, 1
      %p152 = scmp.eq.s32.totalorder %s46, 1
      %p153 = scmp.ne.s32.totalorder %s148, %s150
      %p154 = scmp.eq.s32.totalorder %s46, 0
      %p155 = por %p153, %p154
      %p156 = scmp.ne.s32.totalorder %s148, %s150
      %p157 = scmp.eq.s32.totalorder %s51, 1
      %p158 = por %p156, %p157
      %p159 = scmp.ne.s32.totalorder %s150, %s151
      %p160 = scmp.eq.s32.totalorder %s51, 0
      %p161 = por %p159, %p160
      %p162 = scmp.ne.s32.totalorder %s150, %s151
      %p163 = scmp.eq.s32.totalorder %s52, 1
      %p164 = por %p162, %p163
      %p166 = scmp.ne.s32.totalorder %s151, %s165
      %p167 = scmp.eq.s32.totalorder %s52, 0
      %p168 = por %p166, %p167
      %s170 = sadd.s32 %s169, 1
      %p173 = scmp.eq.s32.totalorder %s46, 1
      %p174 = scmp.ne.s32.totalorder %s169, %s171
      %p175 = scmp.eq.s32.totalorder %s46, 0
      %p176 = por %p174, %p175
      %p177 = scmp.ne.s32.totalorder %s169, %s171
      %p178 = scmp.eq.s32.totalorder %s51, 1
      %p179 = por %p177, %p178
      %p180 = scmp.ne.s32.totalorder %s171, %s172
      %p181 = scmp.eq.s32.totalorder %s51, 0
      %p182 = por %p180, %p181
      %p183 = scmp.ne.s32.totalorder %s171, %s172
      %p184 = scmp.eq.s32.totalorder %s52, 1
      %p185 = por %p183, %p184
      %p187 = scmp.ne.s32.totalorder %s172, %s186
      %p188 = scmp.eq.s32.totalorder %s52, 0
      %p189 = por %p187, %p188
      %s191 = sadd.s32 %s190, 1
      %p194 = scmp.eq.s32.totalorder %s46, 1
      %p195 = scmp.ne.s32.totalorder %s190, %s192
      %p196 = scmp.eq.s32.totalorder %s46, 0
      %p197 = por %p195, %p196
      %p198 = scmp.ne.s32.totalorder %s190, %s192
      %p199 = scmp.eq.s32.totalorder %s51, 1
      %p200 = por %p198, %p199
      %p201 = scmp.ne.s32.totalorder %s192, %s193
      %p202 = scmp.eq.s32.totalorder %s51, 0
      %p203 = por %p201, %p202
      %p204 = scmp.ne.s32.totalorder %s192, %s193
      %p205 = scmp.eq.s32.totalorder %s52, 1
      %p206 = por %p204, %p205
      %p208 = scmp.ne.s32.totalorder %s193, %s207
      %p209 = scmp.eq.s32.totalorder %s52, 0
      %p210 = por %p208, %p209
      %s212 = sadd.s32 %s211, 1
      %p215 = scmp.eq.s32.totalorder %s46, 1
      %p216 = scmp.ne.s32.totalorder %s211, %s213
      %p217 = scmp.eq.s32.totalorder %s46, 0
      %p218 = por %p216, %p217
      %p219 = scmp.ne.s32.totalorder %s211, %s213
      %p220 = scmp.eq.s32.totalorder %s51, 1
      %p221 = por %p219, %p220
      %p222 = scmp.ne.s32.totalorder %s213, %s214
      %p223 = scmp.eq.s32.totalorder %s51, 0
      %p224 = por %p222, %p223
      %p225 = scmp.ne.s32.totalorder %s213, %s214
      %p226 = scmp.eq.s32.totalorder %s52, 1
      %p227 = por %p225, %p226
      %p229 = scmp.ne.s32.totalorder %s214, %s228
      %p230 = scmp.eq.s32.totalorder %s52, 0
      %p231 = por %p229, %p230
      %s233 = sadd.s32 %s232, 1
      %p236 = scmp.eq.s32.totalorder %s46, 1
      %p237 = scmp.ne.s32.totalorder %s232, %s234
      %p238 = scmp.eq.s32.totalorder %s46, 0
      %p239 = por %p237, %p238
      %p240 = scmp.ne.s32.totalorder %s232, %s234
      %p241 = scmp.eq.s32.totalorder %s51, 1
      %p242 = por %p240, %p241
      %p243 = scmp.ne.s32.totalorder %s234, %s235
      %p244 = scmp.eq.s32.totalorder %s51, 0
      %p245 = por %p243, %p244
      %p246 = scmp.ne.s32.totalorder %s234, %s235
      %p247 = scmp.eq.s32.totalorder %s52, 1
      %p248 = por %p246, %p247
      %p250 = scmp.ne.s32.totalorder %s235, %s249
      %p251 = scmp.eq.s32.totalorder %s52, 0
      %p252 = por %p250, %p251
      %s254 = sadd.s32 %s253, 1
      %p257 = scmp.eq.s32.totalorder %s46, 1
      %p258 = scmp.ne.s32.totalorder %s253, %s255
      %p259 = scmp.eq.s32.totalorder %s46, 0
      %p260 = por %p258, %p259
      %p261 = scmp.ne.s32.totalorder %s253, %s255
      %p262 = scmp.eq.s32.totalorder %s51, 1
      %p263 = por %p261, %p262
      %p264 = scmp.ne.s32.totalorder %s255, %s256
      %p265 = scmp.eq.s32.totalorder %s51, 0
      %p266 = por %p264, %p265
      %p267 = scmp.ne.s32.totalorder %s255, %s256
      %p268 = scmp.eq.s32.totalorder %s52, 1
      %p269 = por %p267, %p268
      %p271 = scmp.ne.s32.totalorder %s256, %s270
      %p272 = scmp.eq.s32.totalorder %s52, 0
      %p273 = por %p271, %p272
      %s275 = sadd.s32 %s274, 1
      %p278 = scmp.eq.s32.totalorder %s46, 1
      %p279 = scmp.ne.s32.totalorder %s274, %s276
      %p280 = scmp.eq.s32.totalorder %s46, 0
      %p281 = por %p279, %p280
      %p282 = scmp.ne.s32.totalorder %s274, %s276
      %p283 = scmp.eq.s32.totalorder %s51, 1
      %p284 = por %p282, %p283
      %p285 = scmp.ne.s32.totalorder %s276, %s277
      %p286 = scmp.eq.s32.totalorder %s51, 0
      %p287 = por %p285, %p286
      %p288 = scmp.ne.s32.totalorder %s276, %s277
      %p289 = scmp.eq.s32.totalorder %s52, 1
      %p290 = por %p288, %p289
      %p292 = scmp.ne.s32.totalorder %s277, %s291
      %p293 = scmp.eq.s32.totalorder %s52, 0
      %p294 = por %p292, %p293
      %s296 = sadd.s32 %s295, 1
      %p299 = scmp.eq.s32.totalorder %s46, 1
      %p300 = scmp.ne.s32.totalorder %s295, %s297
      %p301 = scmp.eq.s32.totalorder %s46, 0
      %p302 = por %p300, %p301
      %p303 = scmp.ne.s32.totalorder %s295, %s297
      %p304 = scmp.eq.s32.totalorder %s51, 1
      %p305 = por %p303, %p304
      %p306 = scmp.ne.s32.totalorder %s297, %s298
      %p307 = scmp.eq.s32.totalorder %s51, 0
      %p308 = por %p306, %p307
      %p309 = scmp.ne.s32.totalorder %s297, %s298
      %p310 = scmp.eq.s32.totalorder %s52, 1
      %p311 = por %p309, %p310
      %p313 = scmp.ne.s32.totalorder %s298, %s312
      %p314 = scmp.eq.s32.totalorder %s52, 0
      %p315 = por %p313, %p314
      %s317 = sadd.s32 %s316, 1
      %p320 = scmp.eq.s32.totalorder %s46, 1
      %p321 = scmp.ne.s32.totalorder %s316, %s318
      %p322 = scmp.eq.s32.totalorder %s46, 0
      %p323 = por %p321, %p322
      %p324 = scmp.ne.s32.totalorder %s316, %s318
      %p325 = scmp.eq.s32.totalorder %s51, 1
      %p326 = por %p324, %p325
      %p327 = scmp.ne.s32.totalorder %s318, %s319
      %p328 = scmp.eq.s32.totalorder %s51, 0
      %p329 = por %p327, %p328
      %p330 = scmp.ne.s32.totalorder %s318, %s319
      %p331 = scmp.eq.s32.totalorder %s52, 1
      %p332 = por %p330, %p331
      %p334 = scmp.ne.s32.totalorder %s319, %s333
      %p335 = scmp.eq.s32.totalorder %s52, 0
      %p336 = por %p334, %p335
      %s338 = sadd.s32 %s337, 1
      %p341 = scmp.eq.s32.totalorder %s46, 1
      %p342 = scmp.ne.s32.totalorder %s337, %s339
      %p343 = scmp.eq.s32.totalorder %s46, 0
      %p344 = por %p342, %p343
      %p345 = scmp.ne.s32.totalorder %s337, %s339
      %p346 = scmp.eq.s32.totalorder %s51, 1
      %p347 = por %p345, %p346
      %p348 = scmp.ne.s32.totalorder %s339, %s340
      %p349 = scmp.eq.s32.totalorder %s51, 0
      %p350 = por %p348, %p349
      %p351 = scmp.ne.s32.totalorder %s339, %s340
      %p352 = scmp.eq.s32.totalorder %s52, 1
      %p353 = por %p351, %p352
      %p355 = scmp.ne.s32.totalorder %s340, %s354
      %p356 = scmp.eq.s32.totalorder %s52, 0
      %p357 = por %p355, %p356
      %s359 = sadd.s32 %s358, 1
      %p362 = scmp.eq.s32.totalorder %s46, 1
      %p363 = scmp.ne.s32.totalorder %s358, %s360
      %p364 = scmp.eq.s32.totalorder %s46, 0
      %p365 = por %p363, %p364
      %p366 = scmp.ne.s32.totalorder %s358, %s360
      %p367 = scmp.eq.s32.totalorder %s51, 1
      %p368 = por %p366, %p367
      %p369 = scmp.ne.s32.totalorder %s360, %s361
      %p370 = scmp.eq.s32.totalorder %s51, 0
      %p371 = por %p369, %p370
      %p372 = scmp.ne.s32.totalorder %s360, %s361
      %p373 = scmp.eq.s32.totalorder %s52, 1
      %p374 = por %p372, %p373
      %p376 = scmp.ne.s32.totalorder %s361, %s375
      %p377 = scmp.eq.s32.totalorder %s52, 0
      %p378 = por %p376, %p377
      %s380 = sadd.s32 %s379, 1
      %p383 = scmp.eq.s32.totalorder %s46, 1
      %p384 = scmp.ne.s32.totalorder %s379, %s381
      %p385 = scmp.eq.s32.totalorder %s46, 0
      %p386 = por %p384, %p385
      %p387 = scmp.ne.s32.totalorder %s379, %s381
      %p388 = scmp.eq.s32.totalorder %s51, 1
      %p389 = por %p387, %p388
      %p390 = scmp.ne.s32.totalorder %s381, %s382
      %p391 = scmp.eq.s32.totalorder %s51, 0
      %p392 = por %p390, %p391
      %p393 = scmp.ne.s32.totalorder %s381, %s382
      %p394 = scmp.eq.s32.totalorder %s52, 1
      %p395 = por %p393, %p394
      %p397 = scmp.ne.s32.totalorder %s382, %s396
      %p398 = scmp.eq.s32.totalorder %s52, 0
      %p399 = por %p397, %p398
      %s401 = sadd.s32 %s400, 1
      %p404 = scmp.eq.s32.totalorder %s46, 1
      %p405 = scmp.ne.s32.totalorder %s400, %s402
      %p406 = scmp.eq.s32.totalorder %s46, 0
      %p407 = por %p405, %p406
      %p408 = scmp.ne.s32.totalorder %s400, %s402
      %p409 = scmp.eq.s32.totalorder %s51, 1
      %p410 = por %p408, %p409
      %p411 = scmp.ne.s32.totalorder %s402, %s403
      %p412 = scmp.eq.s32.totalorder %s51, 0
      %p413 = por %p411, %p412
      %p414 = scmp.ne.s32.totalorder %s402, %s403
      %p415 = scmp.eq.s32.totalorder %s52, 1
      %p416 = por %p414, %p415
      %p418 = scmp.ne.s32.totalorder %s403, %s417
      %p419 = scmp.eq.s32.totalorder %s52, 0
      %p420 = por %p418, %p419
      %s422 = sadd.s32 %s421, 1
      %p425 = scmp.eq.s32.totalorder %s46, 1
      %p426 = scmp.ne.s32.totalorder %s421, %s423
      %p427 = scmp.eq.s32.totalorder %s46, 0
      %p428 = por %p426, %p427
      %p429 = scmp.ne.s32.totalorder %s421, %s423
      %p430 = scmp.eq.s32.totalorder %s51, 1
      %p431 = por %p429, %p430
      %p432 = scmp.ne.s32.totalorder %s423, %s424
      %p433 = scmp.eq.s32.totalorder %s51, 0
      %p434 = por %p432, %p433
      %p435 = scmp.ne.s32.totalorder %s423, %s424
      %p436 = scmp.eq.s32.totalorder %s52, 1
      %p437 = por %p435, %p436
      %p439 = scmp.ne.s32.totalorder %s424, %s438
      %p440 = scmp.eq.s32.totalorder %s52, 0
      %p441 = por %p439, %p440
      %s443 = sadd.s32 %s442, 1
      %p446 = scmp.eq.s32.totalorder %s46, 1
      %p447 = scmp.ne.s32.totalorder %s442, %s444
      %p448 = scmp.eq.s32.totalorder %s46, 0
      %p449 = por %p447, %p448
      %p450 = scmp.ne.s32.totalorder %s442, %s444
      %p451 = scmp.eq.s32.totalorder %s51, 1
      %p452 = por %p450, %p451
      %p453 = scmp.ne.s32.totalorder %s444, %s445
      %p454 = scmp.eq.s32.totalorder %s51, 0
      %p455 = por %p453, %p454
      %p456 = scmp.ne.s32.totalorder %s444, %s445
      %p457 = scmp.eq.s32.totalorder %s52, 1
      %p458 = por %p456, %p457
      %p460 = scmp.ne.s32.totalorder %s445, %s459
      %p461 = scmp.eq.s32.totalorder %s52, 0
      %p462 = por %p460, %p461
      %s464 = sadd.s32 %s463, 1
      %p467 = scmp.eq.s32.totalorder %s46, 1
      %p468 = scmp.ne.s32.totalorder %s463, %s465
      %p469 = scmp.eq.s32.totalorder %s46, 0
      %p470 = por %p468, %p469
      %p471 = scmp.ne.s32.totalorder %s463, %s465
      %p472 = scmp.eq.s32.totalorder %s51, 1
      %p473 = por %p471, %p472
      %p474 = scmp.ne.s32.totalorder %s465, %s466
      %p475 = scmp.eq.s32.totalorder %s51, 0
      %p476 = por %p474, %p475
      %p477 = scmp.ne.s32.totalorder %s465, %s466
      %p478 = scmp.eq.s32.totalorder %s52, 1
      %p479 = por %p477, %p478
      %p481 = scmp.ne.s32.totalorder %s466, %s480
      %p482 = scmp.eq.s32.totalorder %s52, 0
      %p483 = por %p481, %p482
      %s485 = sadd.s32 %s484, 1
      %p488 = scmp.eq.s32.totalorder %s46, 1
      %p489 = scmp.ne.s32.totalorder %s484, %s486
      %p490 = scmp.eq.s32.totalorder %s46, 0
      %p491 = por %p489, %p490
      %p492 = scmp.ne.s32.totalorder %s484, %s486
      %p493 = scmp.eq.s32.totalorder %s51, 1
      %p494 = por %p492, %p493
      %p495 = scmp.ne.s32.totalorder %s486, %s487
      %p496 = scmp.eq.s32.totalorder %s51, 0
      %p497 = por %p495, %p496
      %p498 = scmp.ne.s32.totalorder %s486, %s487
      %p499 = scmp.eq.s32.totalorder %s52, 1
      %p500 = por %p498, %p499
      %p502 = scmp.ne.s32.totalorder %s487, %s501
      %p503 = scmp.eq.s32.totalorder %s52, 0
      %p504 = por %p502, %p503
      %s506 = sadd.s32 %s505, 1
      %p509 = scmp.eq.s32.totalorder %s46, 1
      %p510 = scmp.ne.s32.totalorder %s505, %s507
      %p511 = scmp.eq.s32.totalorder %s46, 0
      %p512 = por %p510, %p511
      %p513 = scmp.ne.s32.totalorder %s505, %s507
      %p514 = scmp.eq.s32.totalorder %s51, 1
      %p515 = por %p513, %p514
      %p516 = scmp.ne.s32.totalorder %s507, %s508
      %p517 = scmp.eq.s32.totalorder %s51, 0
      %p518 = por %p516, %p517
      %p519 = scmp.ne.s32.totalorder %s507, %s508
      %p520 = scmp.eq.s32.totalorder %s52, 1
      %p521 = por %p519, %p520
      %p523 = scmp.ne.s32.totalorder %s508, %s522
      %p524 = scmp.eq.s32.totalorder %s52, 0
      %p525 = por %p523, %p524
      %s527 = sadd.s32 %s526, 1
      %p530 = scmp.eq.s32.totalorder %s46, 1
      %p531 = scmp.ne.s32.totalorder %s526, %s528
      %p532 = scmp.eq.s32.totalorder %s46, 0
      %p533 = por %p531, %p532
      %p534 = scmp.ne.s32.totalorder %s526, %s528
      %p535 = scmp.eq.s32.totalorder %s51, 1
      %p536 = por %p534, %p535
      %p537 = scmp.ne.s32.totalorder %s528, %s529
      %p538 = scmp.eq.s32.totalorder %s51, 0
      %p539 = por %p537, %p538
      %p540 = scmp.ne.s32.totalorder %s528, %s529
      %p541 = scmp.eq.s32.totalorder %s52, 1
      %p542 = por %p540, %p541
      %p544 = scmp.ne.s32.totalorder %s529, %s543
      %p545 = scmp.eq.s32.totalorder %s52, 0
      %p546 = por %p544, %p545
      %s548 = sadd.s32 %s547, 1
      %p551 = scmp.eq.s32.totalorder %s46, 1
      %p552 = scmp.ne.s32.totalorder %s547, %s549
      %p553 = scmp.eq.s32.totalorder %s46, 0
      %p554 = por %p552, %p553
      %p555 = scmp.ne.s32.totalorder %s547, %s549
      %p556 = scmp.eq.s32.totalorder %s51, 1
      %p557 = por %p555, %p556
      %p558 = scmp.ne.s32.totalorder %s549, %s550
      %p559 = scmp.eq.s32.totalorder %s51, 0
      %p560 = por %p558, %p559
      %p561 = scmp.ne.s32.totalorder %s549, %s550
      %p562 = scmp.eq.s32.totalorder %s52, 1
      %p563 = por %p561, %p562
      %p565 = scmp.ne.s32.totalorder %s550, %s564
      %p566 = scmp.eq.s32.totalorder %s52, 0
      %p567 = por %p565, %p566
      %s569 = sadd.s32 %s568, 1
      %p572 = scmp.eq.s32.totalorder %s46, 1
      %p573 = scmp.ne.s32.totalorder %s568, %s570
      %p574 = scmp.eq.s32.totalorder %s46, 0
      %p575 = por %p573, %p574
      %p576 = scmp.ne.s32.totalorder %s568, %s570
      %p577 = scmp.eq.s32.totalorder %s51, 1
      %p578 = por %p576, %p577
      %p579 = scmp.ne.s32.totalorder %s570, %s571
      %p580 = scmp.eq.s32.totalorder %s51, 0
      %p581 = por %p579, %p580
      %p582 = scmp.ne.s32.totalorder %s570, %s571
      %p583 = scmp.eq.s32.totalorder %s52, 1
      %p584 = por %p582, %p583
      %p586 = scmp.ne.s32.totalorder %s571, %s585
      %p587 = scmp.eq.s32.totalorder %s52, 0
      %p588 = por %p586, %p587
      %s590 = sadd.s32 %s589, 1
      %p593 = scmp.eq.s32.totalorder %s46, 1
      %p594 = scmp.ne.s32.totalorder %s589, %s591
      %p595 = scmp.eq.s32.totalorder %s46, 0
      %p596 = por %p594, %p595
      %p597 = scmp.ne.s32.totalorder %s589, %s591
      %p598 = scmp.eq.s32.totalorder %s51, 1
      %p599 = por %p597, %p598
      %p600 = scmp.ne.s32.totalorder %s591, %s592
      %p601 = scmp.eq.s32.totalorder %s51, 0
      %p602 = por %p600, %p601
      %p603 = scmp.ne.s32.totalorder %s591, %s592
      %p604 = scmp.eq.s32.totalorder %s52, 1
      %p605 = por %p603, %p604
      %p607 = scmp.ne.s32.totalorder %s592, %s606
      %p608 = scmp.eq.s32.totalorder %s52, 0
      %p609 = por %p607, %p608
      %s610 = ssub.s32 %s46, %s53
      %p611 = scmp.eq.s32.totalorder %s610, 0
      %s613 = sadd.s32 %s612, 1
      %s614 = scalar_select %p611, %s612, %s613
      %p617 = pneg %p611
      %p618 = scmp.eq.s32.totalorder %s46, 1
      %p619 = por %p617, %p618
      %p620 = scmp.ne.s32.totalorder %s612, %s615
      %p621 = scmp.eq.s32.totalorder %s46, 0
      %p622 = por %p620, %p621
      %p623 = scmp.ne.s32.totalorder %s612, %s615
      %p624 = scmp.eq.s32.totalorder %s51, 1
      %p625 = por %p623, %p624
      %p626 = scmp.ne.s32.totalorder %s615, %s616
      %p627 = scmp.eq.s32.totalorder %s51, 0
      %p628 = por %p626, %p627
      %p629 = scmp.ne.s32.totalorder %s615, %s616
      %p630 = scmp.eq.s32.totalorder %s52, 1
      %p631 = por %p629, %p630
      %p633 = scmp.ne.s32.totalorder %s616, %s632
      %p634 = scmp.eq.s32.totalorder %s52, 0
      %p635 = por %p633, %p634
      %p636 = scmp.le.s32.totalorder 1, %s46
      %p637 = scmp.lt.s32.totalorder %s46, 3
      %p638 = pnand %p636, %p637
      %p639 = pneg %p638
      // Predicated region
      $region9: #{tpu_custom_call.1} parent=5 // pred_check
        _
      $region10: #{tpu_custom_call.1} parent=5 // pred_check_branch
        %641 = sbr.rel (%p638) target = $region12
      $region11: #{tpu_custom_call.1} parent=5 // pred_region
        %s642 = ssub.s32 %s46, 1
        // Predicated region
        $region13: #{tpu_custom_call.1} parent=11 // pred_check
          %p643 = pneg %p119
        $region14: #{tpu_custom_call.1} parent=11 // pred_check_branch
          %645 = sbr.rel (%p643) target = $region16
        $region15: #{tpu_custom_call.1} parent=11 // pred_region
          %s647 = ssub.s32 128, 128
          %648 = vsyncadd [#allocation7], %s647
          %s650 = sshll.u32 [#allocation8], 4
          %s651 = int_to_ptr.vmem [resolvable:$true] %s650
          %653 = dma.hbm_to_vmem [thread:$0]  %s2, 128, %s651, [#allocation7]
        $region16: #{tpu_custom_call.1} parent=11 // pred_fallthru
          _
        // Predicated region
        $region17: #{tpu_custom_call.1} parent=11 // pred_check
          %p654 = pneg %p140
        $region18: #{tpu_custom_call.1} parent=11 // pred_check_branch
          %656 = sbr.rel (%p654) target = $region20
        $region19: #{tpu_custom_call.1} parent=11 // pred_region
          %s658 = ssub.s32 128, 128
          %659 = vsyncadd [#allocation10], %s658
          %s661 = sshll.u32 [#allocation9], 4
          %s662 = int_to_ptr.vmem [resolvable:$true] %s661
          %664 = dma.hbm_to_vmem [thread:$0]  %s3, 128, %s662, [#allocation10]
        $region20: #{tpu_custom_call.1} parent=11 // pred_fallthru
          _
        // Predicated region
        $region21: #{tpu_custom_call.1} parent=11 // pred_check
          %p665 = pneg %p161
        $region22: #{tpu_custom_call.1} parent=11 // pred_check_branch
          %667 = sbr.rel (%p665) target = $region24
        $region23: #{tpu_custom_call.1} parent=11 // pred_region
          %s669 = ssub.s32 2048, 2048
          %670 = vsyncadd [#allocation10], %s669
          %s671 = sshll.u32 [#allocation11], 4
          %s672 = int_to_ptr.vmem [resolvable:$true] %s671
          %677 = dma.hbm_to_vmem [thread:$0]  %s4, 2048, %s672, [#allocation10], 128, 128, 8
        $region24: #{tpu_custom_call.1} parent=11 // pred_fallthru
          _
        // Predicated region
        $region25: #{tpu_custom_call.1} parent=11 // pred_check
          %p678 = pneg %p182
        $region26: #{tpu_custom_call.1} parent=11 // pred_check_branch
          %680 = sbr.rel (%p678) target = $region28
        $region27: #{tpu_custom_call.1} parent=11 // pred_region
          _
        $region28: #{tpu_custom_call.1} parent=11 // pred_fallthru
          _
        // Predicated region
        $region29: #{tpu_custom_call.1} parent=11 // pred_check
          %p681 = pneg %p203
        $region30: #{tpu_custom_call.1} parent=11 // pred_check_branch
          %683 = sbr.rel (%p681) target = $region32
        $region31: #{tpu_custom_call.1} parent=11 // pred_region
          %s685 = ssub.s32 4096, 4096
          %686 = vsyncadd [#allocation13], %s685
          %s687 = sshll.u32 [#allocation12], 4
          %s688 = int_to_ptr.vmem [resolvable:$true] %s687
          %693 = dma.hbm_to_vmem [thread:$0]  %s6, 4096, %s688, [#allocation13], 256, 256, 16
        $region32: #{tpu_custom_call.1} parent=11 // pred_fallthru
          _
        // Predicated region
        $region33: #{tpu_custom_call.1} parent=11 // pred_check
          %p694 = pneg %p224
        $region34: #{tpu_custom_call.1} parent=11 // pred_check_branch
          %696 = sbr.rel (%p694) target = $region36
        $region35: #{tpu_custom_call.1} parent=11 // pred_region
          _
        $region36: #{tpu_custom_call.1} parent=11 // pred_fallthru
          _
        // Predicated region
        $region37: #{tpu_custom_call.1} parent=11 // pred_check
          %p697 = pneg %p245
        $region38: #{tpu_custom_call.1} parent=11 // pred_check_branch
          %699 = sbr.rel (%p697) target = $region40
        $region39: #{tpu_custom_call.1} parent=11 // pred_region
          %s701 = ssub.s32 2048, 2048
          %702 = vsyncadd [#allocation13], %s701
          %s703 = sshll.u32 [#allocation14], 4
          %s704 = int_to_ptr.vmem [resolvable:$true] %s703
          %709 = dma.hbm_to_vmem [thread:$0]  %s8, 2048, %s704, [#allocation13], 128, 128, 8
        $region40: #{tpu_custom_call.1} parent=11 // pred_fallthru
          _
        // Predicated region
        $region41: #{tpu_custom_call.1} parent=11 // pred_check
          %p710 = pneg %p266
        $region42: #{tpu_custom_call.1} parent=11 // pred_check_branch
          %712 = sbr.rel (%p710) target = $region44
        $region43: #{tpu_custom_call.1} parent=11 // pred_region
          _
        $region44: #{tpu_custom_call.1} parent=11 // pred_fallthru
          _
        // Predicated region
        $region45: #{tpu_custom_call.1} parent=11 // pred_check
          %p713 = pneg %p287
        $region46: #{tpu_custom_call.1} parent=11 // pred_check_branch
          %715 = sbr.rel (%p713) target = $region48
        $region47: #{tpu_custom_call.1} parent=11 // pred_region
          _
        $region48: #{tpu_custom_call.1} parent=11 // pred_fallthru
          _
        // Predicated region
        $region49: #{tpu_custom_call.1} parent=11 // pred_check
          %p716 = pneg %p308
        $region50: #{tpu_custom_call.1} parent=11 // pred_check_branch
          %718 = sbr.rel (%p716) target = $region52
        $region51: #{tpu_custom_call.1} parent=11 // pred_region
          _
        $region52: #{tpu_custom_call.1} parent=11 // pred_fallthru
          _
        // Predicated region
        $region53: #{tpu_custom_call.1} parent=11 // pred_check
          %p719 = pneg %p329
        $region54: #{tpu_custom_call.1} parent=11 // pred_check_branch
          %721 = sbr.rel (%p719) target = $region56
        $region55: #{tpu_custom_call.1} parent=11 // pred_region
          %s723 = ssub.s32 2048, 2048
          %724 = vsyncadd [#allocation16], %s723
          %s725 = sshll.u32 [#allocation15], 4
          %s726 = int_to_ptr.vmem [resolvable:$true] %s725
          %731 = dma.hbm_to_vmem [thread:$0]  %s12, 2048, %s726, [#allocation16], 128, 128, 8
        $region56: #{tpu_custom_call.1} parent=11 // pred_fallthru
          _
        // Predicated region
        $region57: #{tpu_custom_call.1} parent=11 // pred_check
          %p732 = pneg %p350
        $region58: #{tpu_custom_call.1} parent=11 // pred_check_branch
          %734 = sbr.rel (%p732) target = $region60
        $region59: #{tpu_custom_call.1} parent=11 // pred_region
          _
        $region60: #{tpu_custom_call.1} parent=11 // pred_fallthru
          _
        // Predicated region
        $region61: #{tpu_custom_call.1} parent=11 // pred_check
          %p735 = pneg %p371
        $region62: #{tpu_custom_call.1} parent=11 // pred_check_branch
          %737 = sbr.rel (%p735) target = $region64
        $region63: #{tpu_custom_call.1} parent=11 // pred_region
          %s739 = ssub.s32 4096, 4096
          %740 = vsyncadd [#allocation16], %s739
          %s741 = sshll.u32 [#allocation17], 4
          %s742 = int_to_ptr.vmem [resolvable:$true] %s741
          %747 = dma.hbm_to_vmem [thread:$0]  %s14, 4096, %s742, [#allocation16], 256, 256, 16
        $region64: #{tpu_custom_call.1} parent=11 // pred_fallthru
          _
        // Predicated region
        $region65: #{tpu_custom_call.1} parent=11 // pred_check
          %p748 = pneg %p392
        $region66: #{tpu_custom_call.1} parent=11 // pred_check_branch
          %750 = sbr.rel (%p748) target = $region68
        $region67: #{tpu_custom_call.1} parent=11 // pred_region
          _
        $region68: #{tpu_custom_call.1} parent=11 // pred_fallthru
          _
        // Predicated region
        $region69: #{tpu_custom_call.1} parent=11 // pred_check
          %p751 = pneg %p413
        $region70: #{tpu_custom_call.1} parent=11 // pred_check_branch
          %753 = sbr.rel (%p751) target = $region72
        $region71: #{tpu_custom_call.1} parent=11 // pred_region
          %s755 = ssub.s32 2048, 2048
          %756 = vsyncadd [#allocation19], %s755
          %s757 = sshll.u32 [#allocation18], 4
          %s758 = int_to_ptr.vmem [resolvable:$true] %s757
          %763 = dma.hbm_to_vmem [thread:$0]  %s16, 2048, %s758, [#allocation19], 128, 128, 8
        $region72: #{tpu_custom_call.1} parent=11 // pred_fallthru
          _
        // Predicated region
        $region73: #{tpu_custom_call.1} parent=11 // pred_check
          %p764 = pneg %p434
        $region74: #{tpu_custom_call.1} parent=11 // pred_check_branch
          %766 = sbr.rel (%p764) target = $region76
        $region75: #{tpu_custom_call.1} parent=11 // pred_region
          _
        $region76: #{tpu_custom_call.1} parent=11 // pred_fallthru
          _
        // Predicated region
        $region77: #{tpu_custom_call.1} parent=11 // pred_check
          %p767 = pneg %p455
        $region78: #{tpu_custom_call.1} parent=11 // pred_check_branch
          %769 = sbr.rel (%p767) target = $region80
        $region79: #{tpu_custom_call.1} parent=11 // pred_region
          _
        $region80: #{tpu_custom_call.1} parent=11 // pred_fallthru
          _
        // Predicated region
        $region81: #{tpu_custom_call.1} parent=11 // pred_check
          %p770 = pneg %p476
        $region82: #{tpu_custom_call.1} parent=11 // pred_check_branch
          %772 = sbr.rel (%p770) target = $region84
        $region83: #{tpu_custom_call.1} parent=11 // pred_region
          _
        $region84: #{tpu_custom_call.1} parent=11 // pred_fallthru
          _
        // Predicated region
        $region85: #{tpu_custom_call.1} parent=11 // pred_check
          %p773 = pneg %p497
        $region86: #{tpu_custom_call.1} parent=11 // pred_check_branch
          %775 = sbr.rel (%p773) target = $region88
        $region87: #{tpu_custom_call.1} parent=11 // pred_region
          %s777 = ssub.s32 4096, 4096
          %778 = vsyncadd [#allocation19], %s777
          %s779 = sshll.u32 [#allocation20], 4
          %s780 = int_to_ptr.vmem [resolvable:$true] %s779
          %785 = dma.hbm_to_vmem [thread:$0]  %s20, 4096, %s780, [#allocation19], 256, 256, 16
        $region88: #{tpu_custom_call.1} parent=11 // pred_fallthru
          _
        // Predicated region
        $region89: #{tpu_custom_call.1} parent=11 // pred_check
          %p786 = pneg %p518
        $region90: #{tpu_custom_call.1} parent=11 // pred_check_branch
          %788 = sbr.rel (%p786) target = $region92
        $region91: #{tpu_custom_call.1} parent=11 // pred_region
          _
        $region92: #{tpu_custom_call.1} parent=11 // pred_fallthru
          _
        // Predicated region
        $region93: #{tpu_custom_call.1} parent=11 // pred_check
          %p789 = pneg %p539
        $region94: #{tpu_custom_call.1} parent=11 // pred_check_branch
          %791 = sbr.rel (%p789) target = $region96
        $region95: #{tpu_custom_call.1} parent=11 // pred_region
          %s793 = ssub.s32 4096, 4096
          %794 = vsyncadd [#allocation22], %s793
          %s795 = sshll.u32 [#allocation21], 4
          %s796 = int_to_ptr.vmem [resolvable:$true] %s795
          %801 = dma.hbm_to_vmem [thread:$0]  %s22, 4096, %s796, [#allocation22], 128, 128, 8
        $region96: #{tpu_custom_call.1} parent=11 // pred_fallthru
          _
        // Predicated region
        $region97: #{tpu_custom_call.1} parent=11 // pred_check
          %p802 = pneg %p560
        $region98: #{tpu_custom_call.1} parent=11 // pred_check_branch
          %804 = sbr.rel (%p802) target = $region100
        $region99: #{tpu_custom_call.1} parent=11 // pred_region
          _
        $region100: #{tpu_custom_call.1} parent=11 // pred_fallthru
          _
        // Predicated region
        $region101: #{tpu_custom_call.1} parent=11 // pred_check
          %p805 = pneg %p581
        $region102: #{tpu_custom_call.1} parent=11 // pred_check_branch
          %807 = sbr.rel (%p805) target = $region104
        $region103: #{tpu_custom_call.1} parent=11 // pred_region
          _
        $region104: #{tpu_custom_call.1} parent=11 // pred_fallthru
          _
        // Predicated region
        $region105: #{tpu_custom_call.1} parent=11 // pred_check
          %p808 = pneg %p602
        $region106: #{tpu_custom_call.1} parent=11 // pred_check_branch
          %810 = sbr.rel (%p808) target = $region108
        $region107: #{tpu_custom_call.1} parent=11 // pred_region
          _
        $region108: #{tpu_custom_call.1} parent=11 // pred_fallthru
          _
      $region12: #{tpu_custom_call.1} parent=5 // pred_fallthru
        _
      %p811 = scmp.lt.s32.totalorder %s46, 2
      // Predicated region
      $region109: #{tpu_custom_call.1} parent=5 // pred_check
        %p812 = pneg %p811
      $region110: #{tpu_custom_call.1} parent=5 // pred_check_branch
        %814 = sbr.rel (%p812) target = $region112
      $region111: #{tpu_custom_call.1} parent=5 // pred_region
        // Predicated region
        $region113: #{tpu_custom_call.1} parent=111 // pred_check
          %p815 = pneg %p66
        $region114: #{tpu_custom_call.1} parent=111 // pred_check_branch
          %817 = sbr.rel (%p815) target = $region116
        $region115: #{tpu_custom_call.1} parent=111 // pred_region
          %s818 = sand.u32 %s56, 1
          %s819 = scalar_lea.sflag [#allocation4], %s818
          %s820 = sand.u32 %s56, 1
          %s821 = smul.addr %s820, 8
          %s822 = scalar_lea.vmem [#allocation3], %s821
          %s824 = ssub.s32 128, 128
          %825 = vsyncadd %s819, %s824
          %s826 = smul.addr %s46, 128
          %s827 = scalar_lea.hbm %s0, %s826
          %s829 = sshll.u32 %s822, 4
          %s830 = int_to_ptr.vmem [resolvable:$true] %s829
          %832 = dma.hbm_to_vmem [thread:$0]  %s827, 128, %s830, %s819
        $region116: #{tpu_custom_call.1} parent=111 // pred_fallthru
          _
        // Predicated region
        $region117: #{tpu_custom_call.1} parent=111 // pred_check
          %p833 = pneg %p92
        $region118: #{tpu_custom_call.1} parent=111 // pred_check_branch
          %835 = sbr.rel (%p833) target = $region120
        $region119: #{tpu_custom_call.1} parent=111 // pred_region
          %s836 = sand.u32 %s46, 1
          %s837 = scalar_lea.sflag [#allocation7], %s836
          %s838 = sand.u32 %s82, 1
          %s839 = smul.addr %s838, 8
          %s840 = scalar_lea.vmem [#allocation6], %s839
          %s842 = ssub.s32 128, 128
          %843 = vsyncadd %s837, %s842
          %s844 = smul.addr %s46, 128
          %s845 = scalar_lea.hbm %s1, %s844
          %s847 = sshll.u32 %s840, 4
          %s848 = int_to_ptr.vmem [resolvable:$true] %s847
          %850 = dma.hbm_to_vmem [thread:$0]  %s845, 128, %s848, %s837
        $region120: #{tpu_custom_call.1} parent=111 // pred_fallthru
          _
      $region112: #{tpu_custom_call.1} parent=5 // pred_fallthru
        _
      %p851 = scmp.le.s32.totalorder 1, %s46
      %p852 = scmp.lt.s32.totalorder %s46, 3
      %p853 = pnand %p851, %p852
      %p854 = pneg %p853
      // Predicated region
      $region121: #{tpu_custom_call.1} parent=5 // pred_check
        _
      $region122: #{tpu_custom_call.1} parent=5 // pred_check_branch
        %856 = sbr.rel (%p853) target = $region124
      $region123: #{tpu_custom_call.1} parent=5 // pred_region
        %s857 = ssub.s32 %s46, 1
        %s858 = sand.u32 %s59, 1
        %s859 = scalar_lea.sflag [#allocation4], %s858
        %s860 = sand.u32 %s59, 1
        %s861 = smul.addr %s860, 8
        %s862 = scalar_lea.vmem [#allocation3], %s861
        // Predicated region
        $region125: #{tpu_custom_call.1} parent=123 // pred_check
          %p863 = pneg %p72
        $region126: #{tpu_custom_call.1} parent=123 // pred_check_branch
          %865 = sbr.rel (%p863) target = $region128
        $region127: #{tpu_custom_call.1} parent=123 // pred_region
          %866 = dma.done %s859, 128
        $region128: #{tpu_custom_call.1} parent=123 // pred_fallthru
          _
        %s867 = sand.u32 %s51, 1
        %s868 = scalar_lea.sflag [#allocation7], %s867
        %s869 = sand.u32 %s85, 1
        %s870 = smul.addr %s869, 8
        %s871 = scalar_lea.vmem [#allocation6], %s870
        // Predicated region
        $region129: #{tpu_custom_call.1} parent=123 // pred_check
          %p872 = pneg %p98
        $region130: #{tpu_custom_call.1} parent=123 // pred_check_branch
          %874 = sbr.rel (%p872) target = $region132
        $region131: #{tpu_custom_call.1} parent=123 // pred_region
          %875 = dma.done %s868, 128
        $region132: #{tpu_custom_call.1} parent=123 // pred_fallthru
          _
        // Predicated region
        $region133: #{tpu_custom_call.1} parent=123 // pred_check
          %p876 = pneg %p119
        $region134: #{tpu_custom_call.1} parent=123 // pred_check_branch
          %878 = sbr.rel (%p876) target = $region136
        $region135: #{tpu_custom_call.1} parent=123 // pred_region
          %879 = dma.done [#allocation7], 128
        $region136: #{tpu_custom_call.1} parent=123 // pred_fallthru
          _
        // Predicated region
        $region137: #{tpu_custom_call.1} parent=123 // pred_check
          %p880 = pneg %p140
        $region138: #{tpu_custom_call.1} parent=123 // pred_check_branch
          %882 = sbr.rel (%p880) target = $region140
        $region139: #{tpu_custom_call.1} parent=123 // pred_region
          %883 = dma.done [#allocation10], 128
        $region140: #{tpu_custom_call.1} parent=123 // pred_fallthru
          _
        // Predicated region
        $region141: #{tpu_custom_call.1} parent=123 // pred_check
          %p884 = pneg %p161
        $region142: #{tpu_custom_call.1} parent=123 // pred_check_branch
          %886 = sbr.rel (%p884) target = $region144
        $region143: #{tpu_custom_call.1} parent=123 // pred_region
          %887 = dma.done [#allocation10], 2048
        $region144: #{tpu_custom_call.1} parent=123 // pred_fallthru
          _
        // Predicated region
        $region145: #{tpu_custom_call.1} parent=123 // pred_check
          %p888 = pneg %p203
        $region146: #{tpu_custom_call.1} parent=123 // pred_check_branch
          %890 = sbr.rel (%p888) target = $region148
        $region147: #{tpu_custom_call.1} parent=123 // pred_region
          %891 = dma.done [#allocation13], 4096
        $region148: #{tpu_custom_call.1} parent=123 // pred_fallthru
          _
        // Predicated region
        $region149: #{tpu_custom_call.1} parent=123 // pred_check
          %p892 = pneg %p245
        $region150: #{tpu_custom_call.1} parent=123 // pred_check_branch
          %894 = sbr.rel (%p892) target = $region152
        $region151: #{tpu_custom_call.1} parent=123 // pred_region
          %895 = dma.done [#allocation13], 2048
        $region152: #{tpu_custom_call.1} parent=123 // pred_fallthru
          _
        // Predicated region
        $region153: #{tpu_custom_call.1} parent=123 // pred_check
          %p896 = pneg %p329
        $region154: #{tpu_custom_call.1} parent=123 // pred_check_branch
          %898 = sbr.rel (%p896) target = $region156
        $region155: #{tpu_custom_call.1} parent=123 // pred_region
          %899 = dma.done [#allocation16], 2048
        $region156: #{tpu_custom_call.1} parent=123 // pred_fallthru
          _
        // Predicated region
        $region157: #{tpu_custom_call.1} parent=123 // pred_check
          %p900 = pneg %p371
        $region158: #{tpu_custom_call.1} parent=123 // pred_check_branch
          %902 = sbr.rel (%p900) target = $region160
        $region159: #{tpu_custom_call.1} parent=123 // pred_region
          %903 = dma.done [#allocation16], 4096
        $region160: #{tpu_custom_call.1} parent=123 // pred_fallthru
          _
        // Predicated region
        $region161: #{tpu_custom_call.1} parent=123 // pred_check
          %p904 = pneg %p413
        $region162: #{tpu_custom_call.1} parent=123 // pred_check_branch
          %906 = sbr.rel (%p904) target = $region164
        $region163: #{tpu_custom_call.1} parent=123 // pred_region
          %907 = dma.done [#allocation19], 2048
        $region164: #{tpu_custom_call.1} parent=123 // pred_fallthru
          _
        // Predicated region
        $region165: #{tpu_custom_call.1} parent=123 // pred_check
          %p908 = pneg %p497
        $region166: #{tpu_custom_call.1} parent=123 // pred_check_branch
          %910 = sbr.rel (%p908) target = $region168
        $region167: #{tpu_custom_call.1} parent=123 // pred_region
          %911 = dma.done [#allocation19], 4096
        $region168: #{tpu_custom_call.1} parent=123 // pred_fallthru
          _
        // Predicated region
        $region169: #{tpu_custom_call.1} parent=123 // pred_check
          %p912 = pneg %p539
        $region170: #{tpu_custom_call.1} parent=123 // pred_check_branch
          %914 = sbr.rel (%p912) target = $region172
        $region171: #{tpu_custom_call.1} parent=123 // pred_region
          %915 = dma.done [#allocation22], 4096
        $region172: #{tpu_custom_call.1} parent=123 // pred_fallthru
          _
        %s916 = sand.u32 %s59, 1
        %s917 = scalar_lea.sflag [#allocation4], %s916
        %s918 = sand.u32 %s59, 1
        %s919 = smul.addr %s918, 8
        %s920 = scalar_lea.vmem [#allocation3], %s919
        %p921 = pneg %p72
        %p922 = pneg %p69
        %s923 = sand.u32 %s51, 1
        %s924 = scalar_lea.sflag [#allocation7], %s923
        %s925 = sand.u32 %s85, 1
        %s926 = smul.addr %s925, 8
        %s927 = scalar_lea.vmem [#allocation6], %s926
        %p928 = pneg %p98
        %p929 = pneg %p95
        %p930 = pneg %p119
        %p931 = pneg %p116
        %p932 = pneg %p140
        %p933 = pneg %p137
        %p934 = pneg %p161
        %p935 = pneg %p158
        %p936 = pneg %p182
        %p937 = pneg %p179
        %p938 = pneg %p203
        %p939 = pneg %p200
        %p940 = pneg %p224
        %p941 = pneg %p221
        %p942 = pneg %p245
        %p943 = pneg %p242
        %p944 = pneg %p266
        %p945 = pneg %p263
        %p946 = pneg %p287
        %p947 = pneg %p284
        %p948 = pneg %p308
        %p949 = pneg %p305
        %p950 = pneg %p329
        %p951 = pneg %p326
        %p952 = pneg %p350
        %p953 = pneg %p347
        %p954 = pneg %p371
        %p955 = pneg %p368
        %p956 = pneg %p392
        %p957 = pneg %p389
        %p958 = pneg %p413
        %p959 = pneg %p410
        %p960 = pneg %p434
        %p961 = pneg %p431
        %p962 = pneg %p455
        %p963 = pneg %p452
        %p964 = pneg %p476
        %p965 = pneg %p473
        %p966 = pneg %p497
        %p967 = pneg %p494
        %p968 = pneg %p518
        %p969 = pneg %p515
        %p970 = pneg %p539
        %p971 = pneg %p536
        %p972 = pneg %p560
        %p973 = pneg %p557
        %p974 = pneg %p581
        %p975 = pneg %p578
        %p976 = pneg %p602
        %p977 = pneg %p599
        %p978 = pneg %p628
        %p979 = pneg %p625
        %s980 = sand.u32 %s615, 1
        %s981 = scalar_lea.sflag [#allocation5], %s980
        %s982 = sand.u32 %s615, 1
        %s983 = smul.addr %s982, 8
        %s984 = scalar_lea.vmem [#allocation23], %s983
        %v986 = vld [vmem:[%s862] sm:$0xff]
        %v987 = vld [vmem:[%s871] sm:$0xff]
        %v988 = vld [vmem:[#allocation8] sm:$0xff]
        %vm989 = vcmp.gt.f32.partialorder %v988, 0.0
        %v990 = vsel %vm989, 0.0, -1e+09
        %v991 = vld [vmem:[#allocation11] sm:$0xff]
        %v992 = vld [vmem:[#allocation11 + $0x8] sm:$0xff]
        %v993 = vld [vmem:[#allocation11 + $0x10] sm:$0xff]
        %v994 = vld [vmem:[#allocation11 + $0x18] sm:$0xff]
        %v995 = vld [vmem:[#allocation11 + $0x20] sm:$0xff]
        %v996 = vld [vmem:[#allocation11 + $0x28] sm:$0xff]
        %v997 = vld [vmem:[#allocation11 + $0x30] sm:$0xff]
        %v998 = vld [vmem:[#allocation11 + $0x38] sm:$0xff]
        %v999 = vld [vmem:[#allocation11 + $0x40] sm:$0xff]
        %v1000 = vld [vmem:[#allocation11 + $0x48] sm:$0xff]
        %v1001 = vld [vmem:[#allocation11 + $0x50] sm:$0xff]
        %v1002 = vld [vmem:[#allocation11 + $0x58] sm:$0xff]
        %v1003 = vld [vmem:[#allocation11 + $0x60] sm:$0xff]
        %v1004 = vld [vmem:[#allocation11 + $0x68] sm:$0xff]
        %v1005 = vld [vmem:[#allocation11 + $0x70] sm:$0xff]
        %v1006 = vld [vmem:[#allocation11 + $0x78] sm:$0xff]
        %v1007 = vpack.c.bf16 %v986, %v986
        %v1008 = vpack.c.bf16 %v992, %v991
        %v1009 = vpack.c.bf16 %v994, %v993
        %v1010 = vpack.c.bf16 %v996, %v995
        %v1011 = vpack.c.bf16 %v998, %v997
        %v1012 = vpack.c.bf16 %v1000, %v999
        %v1013 = vpack.c.bf16 %v1002, %v1001
        %v1014 = vpack.c.bf16 %v1004, %v1003
        %v1015 = vpack.c.bf16 %v1006, %v1005
        %v1016 = vld [vmem:[%s5] sm:$0x1]
        %v1018 = vlaneseq
        %v1019 = vshrl.u32 %v1018, 7
        %v1020 = vsub.s32 0, %v1019
        %v1021 = vrot.slane %v1016, %v1020
        %1023 = vmatprep.subr.bf16.mxu0 0
        %1024 = vmatpush1.bf16.msra.mxu0 %v1015
        %1025 = vmatprep.subr.bf16.mxu0 0
        %1026 = vmatpush1.bf16.msra.mxu0 %v1014
        %1027 = vmatprep.subr.bf16.mxu0 0
        %1028 = vmatpush1.bf16.msra.mxu0 %v1013
        %1029 = vmatprep.subr.bf16.mxu0 0
        %1030 = vmatpush1.bf16.msra.mxu0 %v1012
        %1031 = vmatprep.subr.bf16.mxu0 0
        %1032 = vmatpush1.bf16.msra.mxu0 %v1011
        %1033 = vmatprep.subr.bf16.mxu0 0
        %1034 = vmatpush1.bf16.msra.mxu0 %v1010
        %1035 = vmatprep.subr.bf16.mxu0 0
        %1036 = vmatpush1.bf16.msra.mxu0 %v1009
        %1037 = vmatprep.subr.bf16.mxu0 0
        %1038 = vmatpush1.bf16.msra.mxu0 %v1008
        %1039 = vmatprep.subr.bf16.mxu0 0
        %1040 = vmatpush2.bf16.msra.mxu0 0
        %1041 = vmatprep.subr.bf16.mxu0 0
        %1042 = vmatpush2.bf16.msra.mxu0 0
        %1043 = vmatprep.subr.bf16.mxu0 0
        %1044 = vmatpush2.bf16.msra.mxu0 0
        %1045 = vmatprep.subr.bf16.mxu0 0
        %1046 = vmatpush2.bf16.msra.mxu0 0
        %1047 = vmatprep.subr.bf16.mxu0 0
        %1048 = vmatpush2.bf16.msra.mxu0 0
        %1049 = vmatprep.subr.bf16.mxu0 0
        %1050 = vmatpush2.bf16.msra.mxu0 0
        %1051 = vmatprep.subr.bf16.mxu0 0
        %1052 = vmatpush2.bf16.msra.mxu0 0
        %1053 = vmatprep.subr.bf16.mxu0 0
        %1054 = vmatpush2.bf16.msra.mxu0 0
        %1055 = vmatprep.mubr.bf16.mxu0 0
        %1056 = vmatmul.mubr.bf16.gmra.mxu0 %v1007
        %v1057 = vpop.f32.mrf.mxu0
        %v1058 = vadd.f32 %v1021, %v1057
        %v1059 = vpop.f32.mrf.mxu0
        %v1060 = vpop.f32.mrf.mxu0
        %v1061 = vpop.f32.mrf.mxu0
        %1062 = vdwg.mxu0
        %v1063 = vld [vmem:[#allocation12] sm:$0xff]
        %v1064 = vld [vmem:[#allocation12 + $0x8] sm:$0xff]
        %v1065 = vld [vmem:[#allocation12 + $0x10] sm:$0xff]
        %v1066 = vld [vmem:[#allocation12 + $0x18] sm:$0xff]
        %v1067 = vld [vmem:[#allocation12 + $0x20] sm:$0xff]
        %v1068 = vld [vmem:[#allocation12 + $0x28] sm:$0xff]
        %v1069 = vld [vmem:[#allocation12 + $0x30] sm:$0xff]
        %v1070 = vld [vmem:[#allocation12 + $0x38] sm:$0xff]
        %v1071 = vld [vmem:[#allocation12 + $0x40] sm:$0xff]
        %v1072 = vld [vmem:[#allocation12 + $0x48] sm:$0xff]
        %v1073 = vld [vmem:[#allocation12 + $0x50] sm:$0xff]
        %v1074 = vld [vmem:[#allocation12 + $0x58] sm:$0xff]
        %v1075 = vld [vmem:[#allocation12 + $0x60] sm:$0xff]
        %v1076 = vld [vmem:[#allocation12 + $0x68] sm:$0xff]
        %v1077 = vld [vmem:[#allocation12 + $0x70] sm:$0xff]
        %v1078 = vld [vmem:[#allocation12 + $0x78] sm:$0xff]
        %v1079 = vld [vmem:[#allocation12 + $0x80] sm:$0xff]
        %v1080 = vld [vmem:[#allocation12 + $0x88] sm:$0xff]
        %v1081 = vld [vmem:[#allocation12 + $0x90] sm:$0xff]
        %v1082 = vld [vmem:[#allocation12 + $0x98] sm:$0xff]
        %v1083 = vld [vmem:[#allocation12 + $0xa0] sm:$0xff]
        %v1084 = vld [vmem:[#allocation12 + $0xa8] sm:$0xff]
        %v1085 = vld [vmem:[#allocation12 + $0xb0] sm:$0xff]
        %v1086 = vld [vmem:[#allocation12 + $0xb8] sm:$0xff]
        %v1087 = vld [vmem:[#allocation12 + $0xc0] sm:$0xff]
        %v1088 = vld [vmem:[#allocation12 + $0xc8] sm:$0xff]
        %v1089 = vld [vmem:[#allocation12 + $0xd0] sm:$0xff]
        %v1090 = vld [vmem:[#allocation12 + $0xd8] sm:$0xff]
        %v1091 = vld [vmem:[#allocation12 + $0xe0] sm:$0xff]
        %v1092 = vld [vmem:[#allocation12 + $0xe8] sm:$0xff]
        %v1093 = vld [vmem:[#allocation12 + $0xf0] sm:$0xff]
        %v1094 = vld [vmem:[#allocation12 + $0xf8] sm:$0xff]
        %v1095 = vpack.c.bf16 %v1065, %v1063
        %v1096 = vpack.c.bf16 %v1066, %v1064
        %v1097 = vpack.c.bf16 %v1069, %v1067
        %v1098 = vpack.c.bf16 %v1070, %v1068
        %v1099 = vpack.c.bf16 %v1073, %v1071
        %v1100 = vpack.c.bf16 %v1074, %v1072
        %v1101 = vpack.c.bf16 %v1077, %v1075
        %v1102 = vpack.c.bf16 %v1078, %v1076
        %v1103 = vpack.c.bf16 %v1081, %v1079
        %v1104 = vpack.c.bf16 %v1082, %v1080
        %v1105 = vpack.c.bf16 %v1085, %v1083
        %v1106 = vpack.c.bf16 %v1086, %v1084
        %v1107 = vpack.c.bf16 %v1089, %v1087
        %v1108 = vpack.c.bf16 %v1090, %v1088
        %v1109 = vpack.c.bf16 %v1093, %v1091
        %v1110 = vpack.c.bf16 %v1094, %v1092
        %v1111 = vld [vmem:[%s7] sm:$0x3]
        %v1113 = vlaneseq
        %v1114 = vshrl.u32 %v1113, 7
        %v1115 = vsub.s32 0, %v1114
        %v1116 = vrot.slane %v1111, %v1115
        %v1117 = vlaneseq
        %v1118 = vshrl.u32 %v1117, 7
        %v1119 = vsub.s32 1, %v1118
        %v1120 = vrot.slane %v1111, %v1119
        %1123 = vmatprep.subr.bf16.mxu0 %v1110
        %1124 = vmatpush1.bf16.msra.mxu0 %v1109
        %1125 = vmatprep.subr.bf16.mxu0 %v1108
        %1126 = vmatpush1.bf16.msra.mxu0 %v1107
        %1127 = vmatprep.subr.bf16.mxu0 %v1106
        %1128 = vmatpush1.bf16.msra.mxu0 %v1105
        %1129 = vmatprep.subr.bf16.mxu0 %v1104
        %1130 = vmatpush1.bf16.msra.mxu0 %v1103
        %1131 = vmatprep.subr.bf16.mxu0 %v1102
        %1132 = vmatpush1.bf16.msra.mxu0 %v1101
        %1133 = vmatprep.subr.bf16.mxu0 %v1100
        %1134 = vmatpush1.bf16.msra.mxu0 %v1099
        %1135 = vmatprep.subr.bf16.mxu0 %v1098
        %1136 = vmatpush1.bf16.msra.mxu0 %v1097
        %1137 = vmatprep.subr.bf16.mxu0 %v1096
        %1138 = vmatpush1.bf16.msra.mxu0 %v1095
        %1139 = vmatprep.subr.bf16.mxu0 0
        %1140 = vmatpush2.bf16.msra.mxu0 0
        %1141 = vmatprep.subr.bf16.mxu0 0
        %1142 = vmatpush2.bf16.msra.mxu0 0
        %1143 = vmatprep.subr.bf16.mxu0 0
        %1144 = vmatpush2.bf16.msra.mxu0 0
        %1145 = vmatprep.subr.bf16.mxu0 0
        %1146 = vmatpush2.bf16.msra.mxu0 0
        %1147 = vmatprep.subr.bf16.mxu0 0
        %1148 = vmatpush2.bf16.msra.mxu0 0
        %1149 = vmatprep.subr.bf16.mxu0 0
        %1150 = vmatpush2.bf16.msra.mxu0 0
        %1151 = vmatprep.subr.bf16.mxu0 0
        %1152 = vmatpush2.bf16.msra.mxu0 0
        %1153 = vmatprep.subr.bf16.mxu0 0
        %1154 = vmatpush2.bf16.msra.mxu0 0
        %1155 = vmatprep.mubr.bf16.mxu0 0
        %1156 = vmatmul.mubr.bf16.gmra.mxu0 %v1007
        %v1157 = vpop.f32.mrf.mxu0
        %v1158 = vadd.f32 %v1116, %v1157
        %v1159 = vpop.f32.mrf.mxu0
        %v1160 = vadd.f32 %v1120, %v1159
        %v1161 = vpop.f32.mrf.mxu0
        %v1162 = vpop.f32.mrf.mxu0
        %1163 = vdwg.mxu0
        %v1164 = vpack.c.bf16 %v1058, %v1058
        %v1165 = vpack.c.bf16 %v1158, %v1158
        %v1166 = vpack.c.bf16 %v1160, %v1160
        %vm1167 = vcmask 261120
        %v1169 = vsel %vm1167, %v1164, 0
        %v1172 = vsel %vm1167, %v1165, 0
        %1174 = vmatprep.subr.bf16.mxu0 0
        %1175 = vmatpush1.bf16.xpose.msra.mxu0 0
        %1176 = vmatprep.subr.bf16.mxu0 0
        %1177 = vmatpush1.bf16.xpose.msra.mxu0 0
        %1178 = vmatprep.subr.bf16.mxu0 0
        %1179 = vmatpush1.bf16.xpose.msra.mxu0 0
        %1180 = vmatprep.subr.bf16.mxu0 0
        %1181 = vmatpush1.bf16.xpose.msra.mxu0 0
        %1182 = vmatprep.subr.bf16.mxu0 0
        %1183 = vmatpush1.bf16.xpose.msra.mxu0 0
        %1184 = vmatprep.subr.bf16.mxu0 0
        %1185 = vmatpush1.bf16.xpose.msra.mxu0 0
        %1186 = vmatprep.subr.bf16.mxu0 0
        %1187 = vmatpush1.bf16.xpose.msra.mxu0 0
        %1188 = vmatprep.subr.bf16.mxu0 0
        %1189 = vmatpush1.bf16.xpose.msra.mxu0 %v1172
        %1190 = vmatprep.subr.bf16.mxu0 0
        %1191 = vmatpush2.bf16.xpose.msra.mxu0 0
        %1192 = vmatprep.subr.bf16.mxu0 0
        %1193 = vmatpush2.bf16.xpose.msra.mxu0 0
        %1194 = vmatprep.subr.bf16.mxu0 0
        %1195 = vmatpush2.bf16.xpose.msra.mxu0 0
        %1196 = vmatprep.subr.bf16.mxu0 0
        %1197 = vmatpush2.bf16.xpose.msra.mxu0 0
        %1198 = vmatprep.subr.bf16.mxu0 0
        %1199 = vmatpush2.bf16.xpose.msra.mxu0 0
        %1200 = vmatprep.subr.bf16.mxu0 0
        %1201 = vmatpush2.bf16.xpose.msra.mxu0 0
        %1202 = vmatprep.subr.bf16.mxu0 0
        %1203 = vmatpush2.bf16.xpose.msra.mxu0 0
        %1204 = vmatprep.subr.bf16.mxu0 0
        %1205 = vmatpush2.bf16.xpose.msra.mxu0 0
        %1206 = vmatprep.mubr.bf16.mxu0 0
        %1207 = vmatmul.mubr.bf16.gmra.mxu0 %v1169
        %v1208 = vpop.f32.mrf.mxu0
        %v1209 = vadd.f32 0.0, %v1208
        %v1210 = vpop.f32.mrf.mxu0
        %v1211 = vpop.f32.mrf.mxu0
        %v1212 = vpop.f32.mrf.mxu0
        %1213 = vdwg.mxu0
        %v1214 = vmul.f32 %v1209, 0.17677669
        %v1215 = vadd.f32 %v1214, %v990
        %vm1216 = vcmask 64512
        %v1217 = vsel %vm1216, %v1215, -inf
        %1218 = vmax.xlane.f32.xlu0 %v1217
        %v1219 = vpop.xlane.xlu0 %1218
        %v1220 = vsub.f32 %v1215, %v1219
        %v1221 = vmul.f32 %v1220, 1.442695
        %v1222 = vpow.pop %v1221
        %v1223 = vsel %vm1216, %v1222, 0.0
        %1224 = vadd.xlane.f32.xlu0 %v1223
        %v1225 = vpop.xlane.xlu0 %1224
        %v1226 = vrcp.pop %v1225
        %v1227 = vmul.f32 %v1222, %v1226
        %v1228 = vpack.c.bf16 %v1227, %v1227
        %v1230 = vsel %vm1216, %v1228, 0
        %vm1232 = vcmask 1043456
        %v1234 = vsel %vm1232, %v1166, 0
        %1236 = vmatprep.subr.bf16.mxu0 0
        %1237 = vmatpush1.bf16.msra.mxu0 0
        %1238 = vmatprep.subr.bf16.mxu0 0
        %1239 = vmatpush1.bf16.msra.mxu0 0
        %1240 = vmatprep.subr.bf16.mxu0 0
        %1241 = vmatpush1.bf16.msra.mxu0 0
        %1242 = vmatprep.subr.bf16.mxu0 0
        %1243 = vmatpush1.bf16.msra.mxu0 0
        %1244 = vmatprep.subr.bf16.mxu0 0
        %1245 = vmatpush1.bf16.msra.mxu0 0
        %1246 = vmatprep.subr.bf16.mxu0 0
        %1247 = vmatpush1.bf16.msra.mxu0 0
        %1248 = vmatprep.subr.bf16.mxu0 0
        %1249 = vmatpush1.bf16.msra.mxu0 0
        %1250 = vmatprep.subr.bf16.mxu0 0
        %1251 = vmatpush1.bf16.msra.mxu0 %v1234
        %1252 = vmatprep.subr.bf16.mxu0 0
        %1253 = vmatpush2.bf16.msra.mxu0 0
        %1254 = vmatprep.subr.bf16.mxu0 0
        %1255 = vmatpush2.bf16.msra.mxu0 0
        %1256 = vmatprep.subr.bf16.mxu0 0
        %1257 = vmatpush2.bf16.msra.mxu0 0
        %1258 = vmatprep.subr.bf16.mxu0 0
        %1259 = vmatpush2.bf16.msra.mxu0 0
        %1260 = vmatprep.subr.bf16.mxu0 0
        %1261 = vmatpush2.bf16.msra.mxu0 0
        %1262 = vmatprep.subr.bf16.mxu0 0
        %1263 = vmatpush2.bf16.msra.mxu0 0
        %1264 = vmatprep.subr.bf16.mxu0 0
        %1265 = vmatpush2.bf16.msra.mxu0 0
        %1266 = vmatprep.subr.bf16.mxu0 0
        %1267 = vmatpush2.bf16.msra.mxu0 0
        %1268 = vmatprep.mubr.bf16.mxu0 0
        %1269 = vmatmul.mubr.bf16.gmra.mxu0 %v1230
        %v1270 = vpop.f32.mrf.mxu0
        %v1271 = vadd.f32 0.0, %v1270
        %v1272 = vpop.f32.mrf.mxu0
        %v1273 = vpop.f32.mrf.mxu0
        %v1274 = vpop.f32.mrf.mxu0
        %1275 = vdwg.mxu0
        %1276 = vst.msk [vmem:[#allocation2] sm:$0xff] %vm1167, %v1271
        %1278 = vrot.lane.b32.xlu0 %v1164, 96
        %v1279 = vpop.permute.xlu0 %1278
        %1281 = vrot.lane.b32.xlu0 %v1165, 96
        %v1282 = vpop.permute.xlu0 %1281
        %v1284 = vsel %vm1167, %v1279, 0
        %v1287 = vsel %vm1167, %v1282, 0
        %1289 = vmatprep.subr.bf16.mxu0 0
        %1290 = vmatpush1.bf16.xpose.msra.mxu0 0
        %1291 = vmatprep.subr.bf16.mxu0 0
        %1292 = vmatpush1.bf16.xpose.msra.mxu0 0
        %1293 = vmatprep.subr.bf16.mxu0 0
        %1294 = vmatpush1.bf16.xpose.msra.mxu0 0
        %1295 = vmatprep.subr.bf16.mxu0 0
        %1296 = vmatpush1.bf16.xpose.msra.mxu0 0
        %1297 = vmatprep.subr.bf16.mxu0 0
        %1298 = vmatpush1.bf16.xpose.msra.mxu0 0
        %1299 = vmatprep.subr.bf16.mxu0 0
        %1300 = vmatpush1.bf16.xpose.msra.mxu0 0
        %1301 = vmatprep.subr.bf16.mxu0 0
        %1302 = vmatpush1.bf16.xpose.msra.mxu0 0
        %1303 = vmatprep.subr.bf16.mxu0 0
        %1304 = vmatpush1.bf16.xpose.msra.mxu0 %v1287
        %1305 = vmatprep.subr.bf16.mxu0 0
        %1306 = vmatpush2.bf16.xpose.msra.mxu0 0
        %1307 = vmatprep.subr.bf16.mxu0 0
        %1308 = vmatpush2.bf16.xpose.msra.mxu0 0
        %1309 = vmatprep.subr.bf16.mxu0 0
        %1310 = vmatpush2.bf16.xpose.msra.mxu0 0
        %1311 = vmatprep.subr.bf16.mxu0 0
        %1312 = vmatpush2.bf16.xpose.msra.mxu0 0
        %1313 = vmatprep.subr.bf16.mxu0 0
        %1314 = vmatpush2.bf16.xpose.msra.mxu0 0
        %1315 = vmatprep.subr.bf16.mxu0 0
        %1316 = vmatpush2.bf16.xpose.msra.mxu0 0
        %1317 = vmatprep.subr.bf16.mxu0 0
        %1318 = vmatpush2.bf16.xpose.msra.mxu0 0
        %1319 = vmatprep.subr.bf16.mxu0 0
        %1320 = vmatpush2.bf16.xpose.msra.mxu0 0
        %1321 = vmatprep.mubr.bf16.mxu0 0
        %1322 = vmatmul.mubr.bf16.gmra.mxu0 %v1284
        %v1323 = vpop.f32.mrf.mxu0
        %v1324 = vadd.f32 0.0, %v1323
        %v1325 = vpop.f32.mrf.mxu0
        %v1326 = vpop.f32.mrf.mxu0
        %v1327 = vpop.f32.mrf.mxu0
        %1328 = vdwg.mxu0
        %v1329 = vmul.f32 %v1324, 0.17677669
        %v1330 = vadd.f32 %v1329, %v990
        %v1331 = vsel %vm1216, %v1330, -inf
        %1332 = vmax.xlane.f32.xlu0 %v1331
        %v1333 = vpop.xlane.xlu0 %1332
        %v1334 = vsub.f32 %v1330, %v1333
        %v1335 = vmul.f32 %v1334, 1.442695
        %v1336 = vpow.pop %v1335
        %v1337 = vsel %vm1216, %v1336, 0.0
        %1338 = vadd.xlane.f32.xlu0 %v1337
        %v1339 = vpop.xlane.xlu0 %1338
        %v1340 = vrcp.pop %v1339
        %v1341 = vmul.f32 %v1336, %v1340
        %v1342 = vpack.c.bf16 %v1341, %v1341
        %1344 = vrot.lane.b32.xlu0 %v1166, 96
        %v1345 = vpop.permute.xlu0 %1344
        %v1347 = vsel %vm1216, %v1342, 0
        %v1350 = vsel %vm1232, %v1345, 0
        %1352 = vmatprep.subr.bf16.mxu0 0
        %1353 = vmatpush1.bf16.msra.mxu0 0
        %1354 = vmatprep.subr.bf16.mxu0 0
        %1355 = vmatpush1.bf16.msra.mxu0 0
        %1356 = vmatprep.subr.bf16.mxu0 0
        %1357 = vmatpush1.bf16.msra.mxu0 0
        %1358 = vmatprep.subr.bf16.mxu0 0
        %1359 = vmatpush1.bf16.msra.mxu0 0
        %1360 = vmatprep.subr.bf16.mxu0 0
        %1361 = vmatpush1.bf16.msra.mxu0 0
        %1362 = vmatprep.subr.bf16.mxu0 0
        %1363 = vmatpush1.bf16.msra.mxu0 0
        %1364 = vmatprep.subr.bf16.mxu0 0
        %1365 = vmatpush1.bf16.msra.mxu0 0
        %1366 = vmatprep.subr.bf16.mxu0 0
        %1367 = vmatpush1.bf16.msra.mxu0 %v1350
        %1368 = vmatprep.subr.bf16.mxu0 0
        %1369 = vmatpush2.bf16.msra.mxu0 0
        %1370 = vmatprep.subr.bf16.mxu0 0
        %1371 = vmatpush2.bf16.msra.mxu0 0
        %1372 = vmatprep.subr.bf16.mxu0 0
        %1373 = vmatpush2.bf16.msra.mxu0 0
        %1374 = vmatprep.subr.bf16.mxu0 0
        %1375 = vmatpush2.bf16.msra.mxu0 0
        %1376 = vmatprep.subr.bf16.mxu0 0
        %1377 = vmatpush2.bf16.msra.mxu0 0
        %1378 = vmatprep.subr.bf16.mxu0 0
        %1379 = vmatpush2.bf16.msra.mxu0 0
        %1380 = vmatprep.subr.bf16.mxu0 0
        %1381 = vmatpush2.bf16.msra.mxu0 0
        %1382 = vmatprep.subr.bf16.mxu0 0
        %1383 = vmatpush2.bf16.msra.mxu0 0
        %1384 = vmatprep.mubr.bf16.mxu0 0
        %1385 = vmatmul.mubr.bf16.gmra.mxu0 %v1347
        %v1386 = vpop.f32.mrf.mxu0
        %v1387 = vadd.f32 0.0, %v1386
        %v1388 = vpop.f32.mrf.mxu0
        %v1389 = vpop.f32.mrf.mxu0
        %v1390 = vpop.f32.mrf.mxu0
        %1391 = vdwg.mxu0
        %1393 = vrot.lane.b32.xlu0 %v1387, 32
        %v1394 = vpop.permute.xlu0 %1393
        %vm1396 = vcmask 523520
        %1397 = vst.msk [vmem:[#allocation2] sm:$0xff] %vm1396, %v1394
        %1398 = vrot.lane.b32.xlu0 %v1164, 64
        %v1399 = vpop.permute.xlu0 %1398
        %1400 = vrot.lane.b32.xlu0 %v1165, 64
        %v1401 = vpop.permute.xlu0 %1400
        %v1403 = vsel %vm1167, %v1399, 0
        %v1406 = vsel %vm1167, %v1401, 0
        %1408 = vmatprep.subr.bf16.mxu0 0
        %1409 = vmatpush1.bf16.xpose.msra.mxu0 0
        %1410 = vmatprep.subr.bf16.mxu0 0
        %1411 = vmatpush1.bf16.xpose.msra.mxu0 0
        %1412 = vmatprep.subr.bf16.mxu0 0
        %1413 = vmatpush1.bf16.xpose.msra.mxu0 0
        %1414 = vmatprep.subr.bf16.mxu0 0
        %1415 = vmatpush1.bf16.xpose.msra.mxu0 0
        %1416 = vmatprep.subr.bf16.mxu0 0
        %1417 = vmatpush1.bf16.xpose.msra.mxu0 0
        %1418 = vmatprep.subr.bf16.mxu0 0
        %1419 = vmatpush1.bf16.xpose.msra.mxu0 0
        %1420 = vmatprep.subr.bf16.mxu0 0
        %1421 = vmatpush1.bf16.xpose.msra.mxu0 0
        %1422 = vmatprep.subr.bf16.mxu0 0
        %1423 = vmatpush1.bf16.xpose.msra.mxu0 %v1406
        %1424 = vmatprep.subr.bf16.mxu0 0
        %1425 = vmatpush2.bf16.xpose.msra.mxu0 0
        %1426 = vmatprep.subr.bf16.mxu0 0
        %1427 = vmatpush2.bf16.xpose.msra.mxu0 0
        %1428 = vmatprep.subr.bf16.mxu0 0
        %1429 = vmatpush2.bf16.xpose.msra.mxu0 0
        %1430 = vmatprep.subr.bf16.mxu0 0
        %1431 = vmatpush2.bf16.xpose.msra.mxu0 0
        %1432 = vmatprep.subr.bf16.mxu0 0
        %1433 = vmatpush2.bf16.xpose.msra.mxu0 0
        %1434 = vmatprep.subr.bf16.mxu0 0
        %1435 = vmatpush2.bf16.xpose.msra.mxu0 0
        %1436 = vmatprep.subr.bf16.mxu0 0
        %1437 = vmatpush2.bf16.xpose.msra.mxu0 0
        %1438 = vmatprep.subr.bf16.mxu0 0
        %1439 = vmatpush2.bf16.xpose.msra.mxu0 0
        %1440 = vmatprep.mubr.bf16.mxu0 0
        %1441 = vmatmul.mubr.bf16.gmra.mxu0 %v1403
        %v1442 = vpop.f32.mrf.mxu0
        %v1443 = vadd.f32 0.0, %v1442
        %v1444 = vpop.f32.mrf.mxu0
        %v1445 = vpop.f32.mrf.mxu0
        %v1446 = vpop.f32.mrf.mxu0
        %1447 = vdwg.mxu0
        %v1448 = vmul.f32 %v1443, 0.17677669
        %v1449 = vadd.f32 %v1448, %v990
        %v1450 = vsel %vm1216, %v1449, -inf
        %1451 = vmax.xlane.f32.xlu0 %v1450
        %v1452 = vpop.xlane.xlu0 %1451
        %v1453 = vsub.f32 %v1449, %v1452
        %v1454 = vmul.f32 %v1453, 1.442695
        %v1455 = vpow.pop %v1454
        %v1456 = vsel %vm1216, %v1455, 0.0
        %1457 = vadd.xlane.f32.xlu0 %v1456
        %v1458 = vpop.xlane.xlu0 %1457
        %v1459 = vrcp.pop %v1458
        %v1460 = vmul.f32 %v1455, %v1459
        %v1461 = vpack.c.bf16 %v1460, %v1460
        %1462 = vrot.lane.b32.xlu0 %v1166, 64
        %v1463 = vpop.permute.xlu0 %1462
        %v1465 = vsel %vm1216, %v1461, 0
        %v1468 = vsel %vm1232, %v1463, 0
        %1470 = vmatprep.subr.bf16.mxu0 0
        %1471 = vmatpush1.bf16.msra.mxu0 0
        %1472 = vmatprep.subr.bf16.mxu0 0
        %1473 = vmatpush1.bf16.msra.mxu0 0
        %1474 = vmatprep.subr.bf16.mxu0 0
        %1475 = vmatpush1.bf16.msra.mxu0 0
        %1476 = vmatprep.subr.bf16.mxu0 0
        %1477 = vmatpush1.bf16.msra.mxu0 0
        %1478 = vmatprep.subr.bf16.mxu0 0
        %1479 = vmatpush1.bf16.msra.mxu0 0
        %1480 = vmatprep.subr.bf16.mxu0 0
        %1481 = vmatpush1.bf16.msra.mxu0 0
        %1482 = vmatprep.subr.bf16.mxu0 0
        %1483 = vmatpush1.bf16.msra.mxu0 0
        %1484 = vmatprep.subr.bf16.mxu0 0
        %1485 = vmatpush1.bf16.msra.mxu0 %v1468
        %1486 = vmatprep.subr.bf16.mxu0 0
        %1487 = vmatpush2.bf16.msra.mxu0 0
        %1488 = vmatprep.subr.bf16.mxu0 0
        %1489 = vmatpush2.bf16.msra.mxu0 0
        %1490 = vmatprep.subr.bf16.mxu0 0
        %1491 = vmatpush2.bf16.msra.mxu0 0
        %1492 = vmatprep.subr.bf16.mxu0 0
        %1493 = vmatpush2.bf16.msra.mxu0 0
        %1494 = vmatprep.subr.bf16.mxu0 0
        %1495 = vmatpush2.bf16.msra.mxu0 0
        %1496 = vmatprep.subr.bf16.mxu0 0
        %1497 = vmatpush2.bf16.msra.mxu0 0
        %1498 = vmatprep.subr.bf16.mxu0 0
        %1499 = vmatpush2.bf16.msra.mxu0 0
        %1500 = vmatprep.subr.bf16.mxu0 0
        %1501 = vmatpush2.bf16.msra.mxu0 0
        %1502 = vmatprep.mubr.bf16.mxu0 0
        %1503 = vmatmul.mubr.bf16.gmra.mxu0 %v1465
        %v1504 = vpop.f32.mrf.mxu0
        %v1505 = vadd.f32 0.0, %v1504
        %v1506 = vpop.f32.mrf.mxu0
        %v1507 = vpop.f32.mrf.mxu0
        %v1508 = vpop.f32.mrf.mxu0
        %1509 = vdwg.mxu0
        %1511 = vrot.lane.b32.xlu0 %v1505, 64
        %v1512 = vpop.permute.xlu0 %1511
        %vm1514 = vcmask 785920
        %1515 = vst.msk [vmem:[#allocation2] sm:$0xff] %vm1514, %v1512
        %1516 = vrot.lane.b32.xlu0 %v1164, 32
        %v1517 = vpop.permute.xlu0 %1516
        %1518 = vrot.lane.b32.xlu0 %v1165, 32
        %v1519 = vpop.permute.xlu0 %1518
        %v1521 = vsel %vm1167, %v1517, 0
        %v1524 = vsel %vm1167, %v1519, 0
        %1526 = vmatprep.subr.bf16.mxu0 0
        %1527 = vmatpush1.bf16.xpose.msra.mxu0 0
        %1528 = vmatprep.subr.bf16.mxu0 0
        %1529 = vmatpush1.bf16.xpose.msra.mxu0 0
        %1530 = vmatprep.subr.bf16.mxu0 0
        %1531 = vmatpush1.bf16.xpose.msra.mxu0 0
        %1532 = vmatprep.subr.bf16.mxu0 0
        %1533 = vmatpush1.bf16.xpose.msra.mxu0 0
        %1534 = vmatprep.subr.bf16.mxu0 0
        %1535 = vmatpush1.bf16.xpose.msra.mxu0 0
        %1536 = vmatprep.subr.bf16.mxu0 0
        %1537 = vmatpush1.bf16.xpose.msra.mxu0 0
        %1538 = vmatprep.subr.bf16.mxu0 0
        %1539 = vmatpush1.bf16.xpose.msra.mxu0 0
        %1540 = vmatprep.subr.bf16.mxu0 0
        %1541 = vmatpush1.bf16.xpose.msra.mxu0 %v1524
        %1542 = vmatprep.subr.bf16.mxu0 0
        %1543 = vmatpush2.bf16.xpose.msra.mxu0 0
        %1544 = vmatprep.subr.bf16.mxu0 0
        %1545 = vmatpush2.bf16.xpose.msra.mxu0 0
        %1546 = vmatprep.subr.bf16.mxu0 0
        %1547 = vmatpush2.bf16.xpose.msra.mxu0 0
        %1548 = vmatprep.subr.bf16.mxu0 0
        %1549 = vmatpush2.bf16.xpose.msra.mxu0 0
        %1550 = vmatprep.subr.bf16.mxu0 0
        %1551 = vmatpush2.bf16.xpose.msra.mxu0 0
        %1552 = vmatprep.subr.bf16.mxu0 0
        %1553 = vmatpush2.bf16.xpose.msra.mxu0 0
        %1554 = vmatprep.subr.bf16.mxu0 0
        %1555 = vmatpush2.bf16.xpose.msra.mxu0 0
        %1556 = vmatprep.subr.bf16.mxu0 0
        %1557 = vmatpush2.bf16.xpose.msra.mxu0 0
        %1558 = vmatprep.mubr.bf16.mxu0 0
        %1559 = vmatmul.mubr.bf16.gmra.mxu0 %v1521
        %v1560 = vpop.f32.mrf.mxu0
        %v1561 = vadd.f32 0.0, %v1560
        %v1562 = vpop.f32.mrf.mxu0
        %v1563 = vpop.f32.mrf.mxu0
        %v1564 = vpop.f32.mrf.mxu0
        %1565 = vdwg.mxu0
        %v1566 = vmul.f32 %v1561, 0.17677669
        %v1567 = vadd.f32 %v1566, %v990
        %v1568 = vsel %vm1216, %v1567, -inf
        %1569 = vmax.xlane.f32.xlu0 %v1568
        %v1570 = vpop.xlane.xlu0 %1569
        %v1571 = vsub.f32 %v1567, %v1570
        %v1572 = vmul.f32 %v1571, 1.442695
        %v1573 = vpow.pop %v1572
        %v1574 = vsel %vm1216, %v1573, 0.0
        %1575 = vadd.xlane.f32.xlu0 %v1574
        %v1576 = vpop.xlane.xlu0 %1575
        %v1577 = vrcp.pop %v1576
        %v1578 = vmul.f32 %v1573, %v1577
        %v1579 = vpack.c.bf16 %v1578, %v1578
        %1580 = vrot.lane.b32.xlu0 %v1166, 32
        %v1581 = vpop.permute.xlu0 %1580
        %v1583 = vsel %vm1216, %v1579, 0
        %v1586 = vsel %vm1232, %v1581, 0
        %1588 = vmatprep.subr.bf16.mxu0 0
        %1589 = vmatpush1.bf16.msra.mxu0 0
        %1590 = vmatprep.subr.bf16.mxu0 0
        %1591 = vmatpush1.bf16.msra.mxu0 0
        %1592 = vmatprep.subr.bf16.mxu0 0
        %1593 = vmatpush1.bf16.msra.mxu0 0
        %1594 = vmatprep.subr.bf16.mxu0 0
        %1595 = vmatpush1.bf16.msra.mxu0 0
        %1596 = vmatprep.subr.bf16.mxu0 0
        %1597 = vmatpush1.bf16.msra.mxu0 0
        %1598 = vmatprep.subr.bf16.mxu0 0
        %1599 = vmatpush1.bf16.msra.mxu0 0
        %1600 = vmatprep.subr.bf16.mxu0 0
        %1601 = vmatpush1.bf16.msra.mxu0 0
        %1602 = vmatprep.subr.bf16.mxu0 0
        %1603 = vmatpush1.bf16.msra.mxu0 %v1586
        %1604 = vmatprep.subr.bf16.mxu0 0
        %1605 = vmatpush2.bf16.msra.mxu0 0
        %1606 = vmatprep.subr.bf16.mxu0 0
        %1607 = vmatpush2.bf16.msra.mxu0 0
        %1608 = vmatprep.subr.bf16.mxu0 0
        %1609 = vmatpush2.bf16.msra.mxu0 0
        %1610 = vmatprep.subr.bf16.mxu0 0
        %1611 = vmatpush2.bf16.msra.mxu0 0
        %1612 = vmatprep.subr.bf16.mxu0 0
        %1613 = vmatpush2.bf16.msra.mxu0 0
        %1614 = vmatprep.subr.bf16.mxu0 0
        %1615 = vmatpush2.bf16.msra.mxu0 0
        %1616 = vmatprep.subr.bf16.mxu0 0
        %1617 = vmatpush2.bf16.msra.mxu0 0
        %1618 = vmatprep.subr.bf16.mxu0 0
        %1619 = vmatpush2.bf16.msra.mxu0 0
        %1620 = vmatprep.mubr.bf16.mxu0 0
        %1621 = vmatmul.mubr.bf16.gmra.mxu0 %v1583
        %v1622 = vpop.f32.mrf.mxu0
        %v1623 = vadd.f32 0.0, %v1622
        %v1624 = vpop.f32.mrf.mxu0
        %v1625 = vpop.f32.mrf.mxu0
        %v1626 = vpop.f32.mrf.mxu0
        %1627 = vdwg.mxu0
        %1629 = vrot.lane.b32.xlu0 %v1623, 96
        %v1630 = vpop.permute.xlu0 %1629
        %vm1632 = vcmask 1048320
        %1633 = vst.msk [vmem:[#allocation2] sm:$0xff] %vm1632, %v1630
        %v1634 = vld [vmem:[#allocation2] sm:$0xff]
        %v1635 = vld [vmem:[#allocation14] sm:$0xff]
        %v1636 = vld [vmem:[#allocation14 + $0x8] sm:$0xff]
        %v1637 = vld [vmem:[#allocation14 + $0x10] sm:$0xff]
        %v1638 = vld [vmem:[#allocation14 + $0x18] sm:$0xff]
        %v1639 = vld [vmem:[#allocation14 + $0x20] sm:$0xff]
        %v1640 = vld [vmem:[#allocation14 + $0x28] sm:$0xff]
        %v1641 = vld [vmem:[#allocation14 + $0x30] sm:$0xff]
        %v1642 = vld [vmem:[#allocation14 + $0x38] sm:$0xff]
        %v1643 = vld [vmem:[#allocation14 + $0x40] sm:$0xff]
        %v1644 = vld [vmem:[#allocation14 + $0x48] sm:$0xff]
        %v1645 = vld [vmem:[#allocation14 + $0x50] sm:$0xff]
        %v1646 = vld [vmem:[#allocation14 + $0x58] sm:$0xff]
        %v1647 = vld [vmem:[#allocation14 + $0x60] sm:$0xff]
        %v1648 = vld [vmem:[#allocation14 + $0x68] sm:$0xff]
        %v1649 = vld [vmem:[#allocation14 + $0x70] sm:$0xff]
        %v1650 = vld [vmem:[#allocation14 + $0x78] sm:$0xff]
        %v1651 = vpack.c.bf16 %v1634, %v1634
        %v1652 = vpack.c.bf16 %v1636, %v1635
        %v1653 = vpack.c.bf16 %v1638, %v1637
        %v1654 = vpack.c.bf16 %v1640, %v1639
        %v1655 = vpack.c.bf16 %v1642, %v1641
        %v1656 = vpack.c.bf16 %v1644, %v1643
        %v1657 = vpack.c.bf16 %v1646, %v1645
        %v1658 = vpack.c.bf16 %v1648, %v1647
        %v1659 = vpack.c.bf16 %v1650, %v1649
        %v1660 = vld [vmem:[%s9] sm:$0x1]
        %v1662 = vlaneseq
        %v1663 = vshrl.u32 %v1662, 7
        %v1664 = vsub.s32 0, %v1663
        %v1665 = vrot.slane %v1660, %v1664
        %1667 = vmatprep.subr.bf16.mxu0 0
        %1668 = vmatpush1.bf16.msra.mxu0 %v1659
        %1669 = vmatprep.subr.bf16.mxu0 0
        %1670 = vmatpush1.bf16.msra.mxu0 %v1658
        %1671 = vmatprep.subr.bf16.mxu0 0
        %1672 = vmatpush1.bf16.msra.mxu0 %v1657
        %1673 = vmatprep.subr.bf16.mxu0 0
        %1674 = vmatpush1.bf16.msra.mxu0 %v1656
        %1675 = vmatprep.subr.bf16.mxu0 0
        %1676 = vmatpush1.bf16.msra.mxu0 %v1655
        %1677 = vmatprep.subr.bf16.mxu0 0
        %1678 = vmatpush1.bf16.msra.mxu0 %v1654
        %1679 = vmatprep.subr.bf16.mxu0 0
        %1680 = vmatpush1.bf16.msra.mxu0 %v1653
        %1681 = vmatprep.subr.bf16.mxu0 0
        %1682 = vmatpush1.bf16.msra.mxu0 %v1652
        %1683 = vmatprep.subr.bf16.mxu0 0
        %1684 = vmatpush2.bf16.msra.mxu0 0
        %1685 = vmatprep.subr.bf16.mxu0 0
        %1686 = vmatpush2.bf16.msra.mxu0 0
        %1687 = vmatprep.subr.bf16.mxu0 0
        %1688 = vmatpush2.bf16.msra.mxu0 0
        %1689 = vmatprep.subr.bf16.mxu0 0
        %1690 = vmatpush2.bf16.msra.mxu0 0
        %1691 = vmatprep.subr.bf16.mxu0 0
        %1692 = vmatpush2.bf16.msra.mxu0 0
        %1693 = vmatprep.subr.bf16.mxu0 0
        %1694 = vmatpush2.bf16.msra.mxu0 0
        %1695 = vmatprep.subr.bf16.mxu0 0
        %1696 = vmatpush2.bf16.msra.mxu0 0
        %1697 = vmatprep.subr.bf16.mxu0 0
        %1698 = vmatpush2.bf16.msra.mxu0 0
        %1699 = vmatprep.mubr.bf16.mxu0 0
        %1700 = vmatmul.mubr.bf16.gmra.mxu0 %v1651
        %v1701 = vpop.f32.mrf.mxu0
        %v1702 = vadd.f32 %v1665, %v1701
        %v1703 = vpop.f32.mrf.mxu0
        %v1704 = vpop.f32.mrf.mxu0
        %v1705 = vpop.f32.mrf.mxu0
        %1706 = vdwg.mxu0
        %v1707 = vadd.f32 %v986, %v1702
        %v1708 = vld [vmem:[%s10] sm:$0x1]
        %v1709 = vld [vmem:[%s11] sm:$0x1]
        %1710 = vadd.xlane.f32.xlu0 %v1707
        %v1711 = vpop.xlane.xlu0 %1710
        %v1712 = vrcp.pop 128.0
        %v1713 = vmul.f32 %v1711, %v1712
        %v1714 = vsub.f32 %v1707, %v1713
        %v1715 = vmul.f32 %v1714, %v1714
        %1716 = vadd.xlane.f32.xlu0 %v1715
        %v1717 = vpop.xlane.xlu0 %1716
        %v1718 = vmul.f32 %v1717, %v1712
        %v1719 = vadd.f32 %v1718, 1e-05
        %v1720 = vrsqrt.pop %v1719
        %v1721 = vmul.f32 %v1714, %v1720
        %v1723 = vlaneseq
        %v1724 = vshrl.u32 %v1723, 7
        %v1725 = vsub.s32 0, %v1724
        %v1726 = vrot.slane %v1708, %v1725
        %v1728 = vmul.f32 %v1721, %v1726
        %v1730 = vlaneseq
        %v1731 = vshrl.u32 %v1730, 7
        %v1732 = vsub.s32 0, %v1731
        %v1733 = vrot.slane %v1709, %v1732
        %v1735 = vadd.f32 %v1728, %v1733
        %v1736 = vld [vmem:[#allocation9] sm:$0xff]
        %vm1737 = vcmp.gt.f32.partialorder %v1736, 0.0
        %v1738 = vsel %vm1737, 0.0, -1e+09
        %v1739 = vld [vmem:[#allocation15] sm:$0xff]
        %v1740 = vld [vmem:[#allocation15 + $0x8] sm:$0xff]
        %v1741 = vld [vmem:[#allocation15 + $0x10] sm:$0xff]
        %v1742 = vld [vmem:[#allocation15 + $0x18] sm:$0xff]
        %v1743 = vld [vmem:[#allocation15 + $0x20] sm:$0xff]
        %v1744 = vld [vmem:[#allocation15 + $0x28] sm:$0xff]
        %v1745 = vld [vmem:[#allocation15 + $0x30] sm:$0xff]
        %v1746 = vld [vmem:[#allocation15 + $0x38] sm:$0xff]
        %v1747 = vld [vmem:[#allocation15 + $0x40] sm:$0xff]
        %v1748 = vld [vmem:[#allocation15 + $0x48] sm:$0xff]
        %v1749 = vld [vmem:[#allocation15 + $0x50] sm:$0xff]
        %v1750 = vld [vmem:[#allocation15 + $0x58] sm:$0xff]
        %v1751 = vld [vmem:[#allocation15 + $0x60] sm:$0xff]
        %v1752 = vld [vmem:[#allocation15 + $0x68] sm:$0xff]
        %v1753 = vld [vmem:[#allocation15 + $0x70] sm:$0xff]
        %v1754 = vld [vmem:[#allocation15 + $0x78] sm:$0xff]
        %v1755 = vpack.c.bf16 %v1735, %v1735
        %v1756 = vpack.c.bf16 %v1740, %v1739
        %v1757 = vpack.c.bf16 %v1742, %v1741
        %v1758 = vpack.c.bf16 %v1744, %v1743
        %v1759 = vpack.c.bf16 %v1746, %v1745
        %v1760 = vpack.c.bf16 %v1748, %v1747
        %v1761 = vpack.c.bf16 %v1750, %v1749
        %v1762 = vpack.c.bf16 %v1752, %v1751
        %v1763 = vpack.c.bf16 %v1754, %v1753
        %v1764 = vld [vmem:[%s13] sm:$0x1]
        %v1766 = vlaneseq
        %v1767 = vshrl.u32 %v1766, 7
        %v1768 = vsub.s32 0, %v1767
        %v1769 = vrot.slane %v1764, %v1768
        %1771 = vmatprep.subr.bf16.mxu0 0
        %1772 = vmatpush1.bf16.msra.mxu0 %v1763
        %1773 = vmatprep.subr.bf16.mxu0 0
        %1774 = vmatpush1.bf16.msra.mxu0 %v1762
        %1775 = vmatprep.subr.bf16.mxu0 0
        %1776 = vmatpush1.bf16.msra.mxu0 %v1761
        %1777 = vmatprep.subr.bf16.mxu0 0
        %1778 = vmatpush1.bf16.msra.mxu0 %v1760
        %1779 = vmatprep.subr.bf16.mxu0 0
        %1780 = vmatpush1.bf16.msra.mxu0 %v1759
        %1781 = vmatprep.subr.bf16.mxu0 0
        %1782 = vmatpush1.bf16.msra.mxu0 %v1758
        %1783 = vmatprep.subr.bf16.mxu0 0
        %1784 = vmatpush1.bf16.msra.mxu0 %v1757
        %1785 = vmatprep.subr.bf16.mxu0 0
        %1786 = vmatpush1.bf16.msra.mxu0 %v1756
        %1787 = vmatprep.subr.bf16.mxu0 0
        %1788 = vmatpush2.bf16.msra.mxu0 0
        %1789 = vmatprep.subr.bf16.mxu0 0
        %1790 = vmatpush2.bf16.msra.mxu0 0
        %1791 = vmatprep.subr.bf16.mxu0 0
        %1792 = vmatpush2.bf16.msra.mxu0 0
        %1793 = vmatprep.subr.bf16.mxu0 0
        %1794 = vmatpush2.bf16.msra.mxu0 0
        %1795 = vmatprep.subr.bf16.mxu0 0
        %1796 = vmatpush2.bf16.msra.mxu0 0
        %1797 = vmatprep.subr.bf16.mxu0 0
        %1798 = vmatpush2.bf16.msra.mxu0 0
        %1799 = vmatprep.subr.bf16.mxu0 0
        %1800 = vmatpush2.bf16.msra.mxu0 0
        %1801 = vmatprep.subr.bf16.mxu0 0
        %1802 = vmatpush2.bf16.msra.mxu0 0
        %1803 = vmatprep.mubr.bf16.mxu0 0
        %1804 = vmatmul.mubr.bf16.gmra.mxu0 %v1755
        %v1805 = vpop.f32.mrf.mxu0
        %v1806 = vadd.f32 %v1769, %v1805
        %v1807 = vpop.f32.mrf.mxu0
        %v1808 = vpop.f32.mrf.mxu0
        %v1809 = vpop.f32.mrf.mxu0
        %1810 = vdwg.mxu0
        %v1811 = vld [vmem:[#allocation17] sm:$0xff]
        %v1812 = vld [vmem:[#allocation17 + $0x8] sm:$0xff]
        %v1813 = vld [vmem:[#allocation17 + $0x10] sm:$0xff]
        %v1814 = vld [vmem:[#allocation17 + $0x18] sm:$0xff]
        %v1815 = vld [vmem:[#allocation17 + $0x20] sm:$0xff]
        %v1816 = vld [vmem:[#allocation17 + $0x28] sm:$0xff]
        %v1817 = vld [vmem:[#allocation17 + $0x30] sm:$0xff]
        %v1818 = vld [vmem:[#allocation17 + $0x38] sm:$0xff]
        %v1819 = vld [vmem:[#allocation17 + $0x40] sm:$0xff]
        %v1820 = vld [vmem:[#allocation17 + $0x48] sm:$0xff]
        %v1821 = vld [vmem:[#allocation17 + $0x50] sm:$0xff]
        %v1822 = vld [vmem:[#allocation17 + $0x58] sm:$0xff]
        %v1823 = vld [vmem:[#allocation17 + $0x60] sm:$0xff]
        %v1824 = vld [vmem:[#allocation17 + $0x68] sm:$0xff]
        %v1825 = vld [vmem:[#allocation17 + $0x70] sm:$0xff]
        %v1826 = vld [vmem:[#allocation17 + $0x78] sm:$0xff]
        %v1827 = vld [vmem:[#allocation17 + $0x80] sm:$0xff]
        %v1828 = vld [vmem:[#allocation17 + $0x88] sm:$0xff]
        %v1829 = vld [vmem:[#allocation17 + $0x90] sm:$0xff]
        %v1830 = vld [vmem:[#allocation17 + $0x98] sm:$0xff]
        %v1831 = vld [vmem:[#allocation17 + $0xa0] sm:$0xff]
        %v1832 = vld [vmem:[#allocation17 + $0xa8] sm:$0xff]
        %v1833 = vld [vmem:[#allocation17 + $0xb0] sm:$0xff]
        %v1834 = vld [vmem:[#allocation17 + $0xb8] sm:$0xff]
        %v1835 = vld [vmem:[#allocation17 + $0xc0] sm:$0xff]
        %v1836 = vld [vmem:[#allocation17 + $0xc8] sm:$0xff]
        %v1837 = vld [vmem:[#allocation17 + $0xd0] sm:$0xff]
        %v1838 = vld [vmem:[#allocation17 + $0xd8] sm:$0xff]
        %v1839 = vld [vmem:[#allocation17 + $0xe0] sm:$0xff]
        %v1840 = vld [vmem:[#allocation17 + $0xe8] sm:$0xff]
        %v1841 = vld [vmem:[#allocation17 + $0xf0] sm:$0xff]
        %v1842 = vld [vmem:[#allocation17 + $0xf8] sm:$0xff]
        %v1843 = vpack.c.bf16 %v987, %v987
        %v1844 = vpack.c.bf16 %v1813, %v1811
        %v1845 = vpack.c.bf16 %v1814, %v1812
        %v1846 = vpack.c.bf16 %v1817, %v1815
        %v1847 = vpack.c.bf16 %v1818, %v1816
        %v1848 = vpack.c.bf16 %v1821, %v1819
        %v1849 = vpack.c.bf16 %v1822, %v1820
        %v1850 = vpack.c.bf16 %v1825, %v1823
        %v1851 = vpack.c.bf16 %v1826, %v1824
        %v1852 = vpack.c.bf16 %v1829, %v1827
        %v1853 = vpack.c.bf16 %v1830, %v1828
        %v1854 = vpack.c.bf16 %v1833, %v1831
        %v1855 = vpack.c.bf16 %v1834, %v1832
        %v1856 = vpack.c.bf16 %v1837, %v1835
        %v1857 = vpack.c.bf16 %v1838, %v1836
        %v1858 = vpack.c.bf16 %v1841, %v1839
        %v1859 = vpack.c.bf16 %v1842, %v1840
        %v1860 = vld [vmem:[%s15] sm:$0x3]
        %v1862 = vlaneseq
        %v1863 = vshrl.u32 %v1862, 7
        %v1864 = vsub.s32 0, %v1863
        %v1865 = vrot.slane %v1860, %v1864
        %v1866 = vlaneseq
        %v1867 = vshrl.u32 %v1866, 7
        %v1868 = vsub.s32 1, %v1867
        %v1869 = vrot.slane %v1860, %v1868
        %1872 = vmatprep.subr.bf16.mxu0 %v1859
        %1873 = vmatpush1.bf16.msra.mxu0 %v1858
        %1874 = vmatprep.subr.bf16.mxu0 %v1857
        %1875 = vmatpush1.bf16.msra.mxu0 %v1856
        %1876 = vmatprep.subr.bf16.mxu0 %v1855
        %1877 = vmatpush1.bf16.msra.mxu0 %v1854
        %1878 = vmatprep.subr.bf16.mxu0 %v1853
        %1879 = vmatpush1.bf16.msra.mxu0 %v1852
        %1880 = vmatprep.subr.bf16.mxu0 %v1851
        %1881 = vmatpush1.bf16.msra.mxu0 %v1850
        %1882 = vmatprep.subr.bf16.mxu0 %v1849
        %1883 = vmatpush1.bf16.msra.mxu0 %v1848
        %1884 = vmatprep.subr.bf16.mxu0 %v1847
        %1885 = vmatpush1.bf16.msra.mxu0 %v1846
        %1886 = vmatprep.subr.bf16.mxu0 %v1845
        %1887 = vmatpush1.bf16.msra.mxu0 %v1844
        %1888 = vmatprep.subr.bf16.mxu0 0
        %1889 = vmatpush2.bf16.msra.mxu0 0
        %1890 = vmatprep.subr.bf16.mxu0 0
        %1891 = vmatpush2.bf16.msra.mxu0 0
        %1892 = vmatprep.subr.bf16.mxu0 0
        %1893 = vmatpush2.bf16.msra.mxu0 0
        %1894 = vmatprep.subr.bf16.mxu0 0
        %1895 = vmatpush2.bf16.msra.mxu0 0
        %1896 = vmatprep.subr.bf16.mxu0 0
        %1897 = vmatpush2.bf16.msra.mxu0 0
        %1898 = vmatprep.subr.bf16.mxu0 0
        %1899 = vmatpush2.bf16.msra.mxu0 0
        %1900 = vmatprep.subr.bf16.mxu0 0
        %1901 = vmatpush2.bf16.msra.mxu0 0
        %1902 = vmatprep.subr.bf16.mxu0 0
        %1903 = vmatpush2.bf16.msra.mxu0 0
        %1904 = vmatprep.mubr.bf16.mxu0 0
        %1905 = vmatmul.mubr.bf16.gmra.mxu0 %v1843
        %v1906 = vpop.f32.mrf.mxu0
        %v1907 = vadd.f32 %v1865, %v1906
        %v1908 = vpop.f32.mrf.mxu0
        %v1909 = vadd.f32 %v1869, %v1908
        %v1910 = vpop.f32.mrf.mxu0
        %v1911 = vpop.f32.mrf.mxu0
        %1912 = vdwg.mxu0
        %v1913 = vpack.c.bf16 %v1806, %v1806
        %v1914 = vpack.c.bf16 %v1907, %v1907
        %v1915 = vpack.c.bf16 %v1909, %v1909
        %v1917 = vsel %vm1167, %v1913, 0
        %v1920 = vsel %vm1167, %v1914, 0
        %1922 = vmatprep.subr.bf16.mxu0 0
        %1923 = vmatpush1.bf16.xpose.msra.mxu0 0
        %1924 = vmatprep.subr.bf16.mxu0 0
        %1925 = vmatpush1.bf16.xpose.msra.mxu0 0
        %1926 = vmatprep.subr.bf16.mxu0 0
        %1927 = vmatpush1.bf16.xpose.msra.mxu0 0
        %1928 = vmatprep.subr.bf16.mxu0 0
        %1929 = vmatpush1.bf16.xpose.msra.mxu0 0
        %1930 = vmatprep.subr.bf16.mxu0 0
        %1931 = vmatpush1.bf16.xpose.msra.mxu0 0
        %1932 = vmatprep.subr.bf16.mxu0 0
        %1933 = vmatpush1.bf16.xpose.msra.mxu0 0
        %1934 = vmatprep.subr.bf16.mxu0 0
        %1935 = vmatpush1.bf16.xpose.msra.mxu0 0
        %1936 = vmatprep.subr.bf16.mxu0 0
        %1937 = vmatpush1.bf16.xpose.msra.mxu0 %v1920
        %1938 = vmatprep.subr.bf16.mxu0 0
        %1939 = vmatpush2.bf16.xpose.msra.mxu0 0
        %1940 = vmatprep.subr.bf16.mxu0 0
        %1941 = vmatpush2.bf16.xpose.msra.mxu0 0
        %1942 = vmatprep.subr.bf16.mxu0 0
        %1943 = vmatpush2.bf16.xpose.msra.mxu0 0
        %1944 = vmatprep.subr.bf16.mxu0 0
        %1945 = vmatpush2.bf16.xpose.msra.mxu0 0
        %1946 = vmatprep.subr.bf16.mxu0 0
        %1947 = vmatpush2.bf16.xpose.msra.mxu0 0
        %1948 = vmatprep.subr.bf16.mxu0 0
        %1949 = vmatpush2.bf16.xpose.msra.mxu0 0
        %1950 = vmatprep.subr.bf16.mxu0 0
        %1951 = vmatpush2.bf16.xpose.msra.mxu0 0
        %1952 = vmatprep.subr.bf16.mxu0 0
        %1953 = vmatpush2.bf16.xpose.msra.mxu0 0
        %1954 = vmatprep.mubr.bf16.mxu0 0
        %1955 = vmatmul.mubr.bf16.gmra.mxu0 %v1917
        %v1956 = vpop.f32.mrf.mxu0
        %v1957 = vadd.f32 0.0, %v1956
        %v1958 = vpop.f32.mrf.mxu0
        %v1959 = vpop.f32.mrf.mxu0
        %v1960 = vpop.f32.mrf.mxu0
        %1961 = vdwg.mxu0
        %v1962 = vmul.f32 %v1957, 0.17677669
        %v1963 = vadd.f32 %v1962, %v1738
        %v1964 = vsel %vm1216, %v1963, -inf
        %1965 = vmax.xlane.f32.xlu0 %v1964
        %v1966 = vpop.xlane.xlu0 %1965
        %v1967 = vsub.f32 %v1963, %v1966
        %v1968 = vmul.f32 %v1967, 1.442695
        %v1969 = vpow.pop %v1968
        %v1970 = vsel %vm1216, %v1969, 0.0
        %1971 = vadd.xlane.f32.xlu0 %v1970
        %v1972 = vpop.xlane.xlu0 %1971
        %v1973 = vrcp.pop %v1972
        %v1974 = vmul.f32 %v1969, %v1973
        %v1975 = vpack.c.bf16 %v1974, %v1974
        %v1977 = vsel %vm1216, %v1975, 0
        %v1980 = vsel %vm1232, %v1915, 0
        %1982 = vmatprep.subr.bf16.mxu0 0
        %1983 = vmatpush1.bf16.msra.mxu0 0
        %1984 = vmatprep.subr.bf16.mxu0 0
        %1985 = vmatpush1.bf16.msra.mxu0 0
        %1986 = vmatprep.subr.bf16.mxu0 0
        %1987 = vmatpush1.bf16.msra.mxu0 0
        %1988 = vmatprep.subr.bf16.mxu0 0
        %1989 = vmatpush1.bf16.msra.mxu0 0
        %1990 = vmatprep.subr.bf16.mxu0 0
        %1991 = vmatpush1.bf16.msra.mxu0 0
        %1992 = vmatprep.subr.bf16.mxu0 0
        %1993 = vmatpush1.bf16.msra.mxu0 0
        %1994 = vmatprep.subr.bf16.mxu0 0
        %1995 = vmatpush1.bf16.msra.mxu0 0
        %1996 = vmatprep.subr.bf16.mxu0 0
        %1997 = vmatpush1.bf16.msra.mxu0 %v1980
        %1998 = vmatprep.subr.bf16.mxu0 0
        %1999 = vmatpush2.bf16.msra.mxu0 0
        %2000 = vmatprep.subr.bf16.mxu0 0
        %2001 = vmatpush2.bf16.msra.mxu0 0
        %2002 = vmatprep.subr.bf16.mxu0 0
        %2003 = vmatpush2.bf16.msra.mxu0 0
        %2004 = vmatprep.subr.bf16.mxu0 0
        %2005 = vmatpush2.bf16.msra.mxu0 0
        %2006 = vmatprep.subr.bf16.mxu0 0
        %2007 = vmatpush2.bf16.msra.mxu0 0
        %2008 = vmatprep.subr.bf16.mxu0 0
        %2009 = vmatpush2.bf16.msra.mxu0 0
        %2010 = vmatprep.subr.bf16.mxu0 0
        %2011 = vmatpush2.bf16.msra.mxu0 0
        %2012 = vmatprep.subr.bf16.mxu0 0
        %2013 = vmatpush2.bf16.msra.mxu0 0
        %2014 = vmatprep.mubr.bf16.mxu0 0
        %2015 = vmatmul.mubr.bf16.gmra.mxu0 %v1977
        %v2016 = vpop.f32.mrf.mxu0
        %v2017 = vadd.f32 0.0, %v2016
        %v2018 = vpop.f32.mrf.mxu0
        %v2019 = vpop.f32.mrf.mxu0
        %v2020 = vpop.f32.mrf.mxu0
        %2021 = vdwg.mxu0
        %2022 = vst.msk [vmem:[#allocation2] sm:$0xff] %vm1167, %v2017
        %2024 = vrot.lane.b32.xlu0 %v1913, 96
        %v2025 = vpop.permute.xlu0 %2024
        %2027 = vrot.lane.b32.xlu0 %v1914, 96
        %v2028 = vpop.permute.xlu0 %2027
        %v2030 = vsel %vm1167, %v2025, 0
        %v2033 = vsel %vm1167, %v2028, 0
        %2035 = vmatprep.subr.bf16.mxu0 0
        %2036 = vmatpush1.bf16.xpose.msra.mxu0 0
        %2037 = vmatprep.subr.bf16.mxu0 0
        %2038 = vmatpush1.bf16.xpose.msra.mxu0 0
        %2039 = vmatprep.subr.bf16.mxu0 0
        %2040 = vmatpush1.bf16.xpose.msra.mxu0 0
        %2041 = vmatprep.subr.bf16.mxu0 0
        %2042 = vmatpush1.bf16.xpose.msra.mxu0 0
        %2043 = vmatprep.subr.bf16.mxu0 0
        %2044 = vmatpush1.bf16.xpose.msra.mxu0 0
        %2045 = vmatprep.subr.bf16.mxu0 0
        %2046 = vmatpush1.bf16.xpose.msra.mxu0 0
        %2047 = vmatprep.subr.bf16.mxu0 0
        %2048 = vmatpush1.bf16.xpose.msra.mxu0 0
        %2049 = vmatprep.subr.bf16.mxu0 0
        %2050 = vmatpush1.bf16.xpose.msra.mxu0 %v2033
        %2051 = vmatprep.subr.bf16.mxu0 0
        %2052 = vmatpush2.bf16.xpose.msra.mxu0 0
        %2053 = vmatprep.subr.bf16.mxu0 0
        %2054 = vmatpush2.bf16.xpose.msra.mxu0 0
        %2055 = vmatprep.subr.bf16.mxu0 0
        %2056 = vmatpush2.bf16.xpose.msra.mxu0 0
        %2057 = vmatprep.subr.bf16.mxu0 0
        %2058 = vmatpush2.bf16.xpose.msra.mxu0 0
        %2059 = vmatprep.subr.bf16.mxu0 0
        %2060 = vmatpush2.bf16.xpose.msra.mxu0 0
        %2061 = vmatprep.subr.bf16.mxu0 0
        %2062 = vmatpush2.bf16.xpose.msra.mxu0 0
        %2063 = vmatprep.subr.bf16.mxu0 0
        %2064 = vmatpush2.bf16.xpose.msra.mxu0 0
        %2065 = vmatprep.subr.bf16.mxu0 0
        %2066 = vmatpush2.bf16.xpose.msra.mxu0 0
        %2067 = vmatprep.mubr.bf16.mxu0 0
        %2068 = vmatmul.mubr.bf16.gmra.mxu0 %v2030
        %v2069 = vpop.f32.mrf.mxu0
        %v2070 = vadd.f32 0.0, %v2069
        %v2071 = vpop.f32.mrf.mxu0
        %v2072 = vpop.f32.mrf.mxu0
        %v2073 = vpop.f32.mrf.mxu0
        %2074 = vdwg.mxu0
        %v2075 = vmul.f32 %v2070, 0.17677669
        %v2076 = vadd.f32 %v2075, %v1738
        %v2077 = vsel %vm1216, %v2076, -inf
        %2078 = vmax.xlane.f32.xlu0 %v2077
        %v2079 = vpop.xlane.xlu0 %2078
        %v2080 = vsub.f32 %v2076, %v2079
        %v2081 = vmul.f32 %v2080, 1.442695
        %v2082 = vpow.pop %v2081
        %v2083 = vsel %vm1216, %v2082, 0.0
        %2084 = vadd.xlane.f32.xlu0 %v2083
        %v2085 = vpop.xlane.xlu0 %2084
        %v2086 = vrcp.pop %v2085
        %v2087 = vmul.f32 %v2082, %v2086
        %v2088 = vpack.c.bf16 %v2087, %v2087
        %2090 = vrot.lane.b32.xlu0 %v1915, 96
        %v2091 = vpop.permute.xlu0 %2090
        %v2093 = vsel %vm1216, %v2088, 0
        %v2096 = vsel %vm1232, %v2091, 0
        %2098 = vmatprep.subr.bf16.mxu0 0
        %2099 = vmatpush1.bf16.msra.mxu0 0
        %2100 = vmatprep.subr.bf16.mxu0 0
        %2101 = vmatpush1.bf16.msra.mxu0 0
        %2102 = vmatprep.subr.bf16.mxu0 0
        %2103 = vmatpush1.bf16.msra.mxu0 0
        %2104 = vmatprep.subr.bf16.mxu0 0
        %2105 = vmatpush1.bf16.msra.mxu0 0
        %2106 = vmatprep.subr.bf16.mxu0 0
        %2107 = vmatpush1.bf16.msra.mxu0 0
        %2108 = vmatprep.subr.bf16.mxu0 0
        %2109 = vmatpush1.bf16.msra.mxu0 0
        %2110 = vmatprep.subr.bf16.mxu0 0
        %2111 = vmatpush1.bf16.msra.mxu0 0
        %2112 = vmatprep.subr.bf16.mxu0 0
        %2113 = vmatpush1.bf16.msra.mxu0 %v2096
        %2114 = vmatprep.subr.bf16.mxu0 0
        %2115 = vmatpush2.bf16.msra.mxu0 0
        %2116 = vmatprep.subr.bf16.mxu0 0
        %2117 = vmatpush2.bf16.msra.mxu0 0
        %2118 = vmatprep.subr.bf16.mxu0 0
        %2119 = vmatpush2.bf16.msra.mxu0 0
        %2120 = vmatprep.subr.bf16.mxu0 0
        %2121 = vmatpush2.bf16.msra.mxu0 0
        %2122 = vmatprep.subr.bf16.mxu0 0
        %2123 = vmatpush2.bf16.msra.mxu0 0
        %2124 = vmatprep.subr.bf16.mxu0 0
        %2125 = vmatpush2.bf16.msra.mxu0 0
        %2126 = vmatprep.subr.bf16.mxu0 0
        %2127 = vmatpush2.bf16.msra.mxu0 0
        %2128 = vmatprep.subr.bf16.mxu0 0
        %2129 = vmatpush2.bf16.msra.mxu0 0
        %2130 = vmatprep.mubr.bf16.mxu0 0
        %2131 = vmatmul.mubr.bf16.gmra.mxu0 %v2093
        %v2132 = vpop.f32.mrf.mxu0
        %v2133 = vadd.f32 0.0, %v2132
        %v2134 = vpop.f32.mrf.mxu0
        %v2135 = vpop.f32.mrf.mxu0
        %v2136 = vpop.f32.mrf.mxu0
        %2137 = vdwg.mxu0
        %2139 = vrot.lane.b32.xlu0 %v2133, 32
        %v2140 = vpop.permute.xlu0 %2139
        %2142 = vst.msk [vmem:[#allocation2] sm:$0xff] %vm1396, %v2140
        %2143 = vrot.lane.b32.xlu0 %v1913, 64
        %v2144 = vpop.permute.xlu0 %2143
        %2145 = vrot.lane.b32.xlu0 %v1914, 64
        %v2146 = vpop.permute.xlu0 %2145
        %v2148 = vsel %vm1167, %v2144, 0
        %v2151 = vsel %vm1167, %v2146, 0
        %2153 = vmatprep.subr.bf16.mxu0 0
        %2154 = vmatpush1.bf16.xpose.msra.mxu0 0
        %2155 = vmatprep.subr.bf16.mxu0 0
        %2156 = vmatpush1.bf16.xpose.msra.mxu0 0
        %2157 = vmatprep.subr.bf16.mxu0 0
        %2158 = vmatpush1.bf16.xpose.msra.mxu0 0
        %2159 = vmatprep.subr.bf16.mxu0 0
        %2160 = vmatpush1.bf16.xpose.msra.mxu0 0
        %2161 = vmatprep.subr.bf16.mxu0 0
        %2162 = vmatpush1.bf16.xpose.msra.mxu0 0
        %2163 = vmatprep.subr.bf16.mxu0 0
        %2164 = vmatpush1.bf16.xpose.msra.mxu0 0
        %2165 = vmatprep.subr.bf16.mxu0 0
        %2166 = vmatpush1.bf16.xpose.msra.mxu0 0
        %2167 = vmatprep.subr.bf16.mxu0 0
        %2168 = vmatpush1.bf16.xpose.msra.mxu0 %v2151
        %2169 = vmatprep.subr.bf16.mxu0 0
        %2170 = vmatpush2.bf16.xpose.msra.mxu0 0
        %2171 = vmatprep.subr.bf16.mxu0 0
        %2172 = vmatpush2.bf16.xpose.msra.mxu0 0
        %2173 = vmatprep.subr.bf16.mxu0 0
        %2174 = vmatpush2.bf16.xpose.msra.mxu0 0
        %2175 = vmatprep.subr.bf16.mxu0 0
        %2176 = vmatpush2.bf16.xpose.msra.mxu0 0
        %2177 = vmatprep.subr.bf16.mxu0 0
        %2178 = vmatpush2.bf16.xpose.msra.mxu0 0
        %2179 = vmatprep.subr.bf16.mxu0 0
        %2180 = vmatpush2.bf16.xpose.msra.mxu0 0
        %2181 = vmatprep.subr.bf16.mxu0 0
        %2182 = vmatpush2.bf16.xpose.msra.mxu0 0
        %2183 = vmatprep.subr.bf16.mxu0 0
        %2184 = vmatpush2.bf16.xpose.msra.mxu0 0
        %2185 = vmatprep.mubr.bf16.mxu0 0
        %2186 = vmatmul.mubr.bf16.gmra.mxu0 %v2148
        %v2187 = vpop.f32.mrf.mxu0
        %v2188 = vadd.f32 0.0, %v2187
        %v2189 = vpop.f32.mrf.mxu0
        %v2190 = vpop.f32.mrf.mxu0
        %v2191 = vpop.f32.mrf.mxu0
        %2192 = vdwg.mxu0
        %v2193 = vmul.f32 %v2188, 0.17677669
        %v2194 = vadd.f32 %v2193, %v1738
        %v2195 = vsel %vm1216, %v2194, -inf
        %2196 = vmax.xlane.f32.xlu0 %v2195
        %v2197 = vpop.xlane.xlu0 %2196
        %v2198 = vsub.f32 %v2194, %v2197
        %v2199 = vmul.f32 %v2198, 1.442695
        %v2200 = vpow.pop %v2199
        %v2201 = vsel %vm1216, %v2200, 0.0
        %2202 = vadd.xlane.f32.xlu0 %v2201
        %v2203 = vpop.xlane.xlu0 %2202
        %v2204 = vrcp.pop %v2203
        %v2205 = vmul.f32 %v2200, %v2204
        %v2206 = vpack.c.bf16 %v2205, %v2205
        %2207 = vrot.lane.b32.xlu0 %v1915, 64
        %v2208 = vpop.permute.xlu0 %2207
        %v2210 = vsel %vm1216, %v2206, 0
        %v2213 = vsel %vm1232, %v2208, 0
        %2215 = vmatprep.subr.bf16.mxu0 0
        %2216 = vmatpush1.bf16.msra.mxu0 0
        %2217 = vmatprep.subr.bf16.mxu0 0
        %2218 = vmatpush1.bf16.msra.mxu0 0
        %2219 = vmatprep.subr.bf16.mxu0 0
        %2220 = vmatpush1.bf16.msra.mxu0 0
        %2221 = vmatprep.subr.bf16.mxu0 0
        %2222 = vmatpush1.bf16.msra.mxu0 0
        %2223 = vmatprep.subr.bf16.mxu0 0
        %2224 = vmatpush1.bf16.msra.mxu0 0
        %2225 = vmatprep.subr.bf16.mxu0 0
        %2226 = vmatpush1.bf16.msra.mxu0 0
        %2227 = vmatprep.subr.bf16.mxu0 0
        %2228 = vmatpush1.bf16.msra.mxu0 0
        %2229 = vmatprep.subr.bf16.mxu0 0
        %2230 = vmatpush1.bf16.msra.mxu0 %v2213
        %2231 = vmatprep.subr.bf16.mxu0 0
        %2232 = vmatpush2.bf16.msra.mxu0 0
        %2233 = vmatprep.subr.bf16.mxu0 0
        %2234 = vmatpush2.bf16.msra.mxu0 0
        %2235 = vmatprep.subr.bf16.mxu0 0
        %2236 = vmatpush2.bf16.msra.mxu0 0
        %2237 = vmatprep.subr.bf16.mxu0 0
        %2238 = vmatpush2.bf16.msra.mxu0 0
        %2239 = vmatprep.subr.bf16.mxu0 0
        %2240 = vmatpush2.bf16.msra.mxu0 0
        %2241 = vmatprep.subr.bf16.mxu0 0
        %2242 = vmatpush2.bf16.msra.mxu0 0
        %2243 = vmatprep.subr.bf16.mxu0 0
        %2244 = vmatpush2.bf16.msra.mxu0 0
        %2245 = vmatprep.subr.bf16.mxu0 0
        %2246 = vmatpush2.bf16.msra.mxu0 0
        %2247 = vmatprep.mubr.bf16.mxu0 0
        %2248 = vmatmul.mubr.bf16.gmra.mxu0 %v2210
        %v2249 = vpop.f32.mrf.mxu0
        %v2250 = vadd.f32 0.0, %v2249
        %v2251 = vpop.f32.mrf.mxu0
        %v2252 = vpop.f32.mrf.mxu0
        %v2253 = vpop.f32.mrf.mxu0
        %2254 = vdwg.mxu0
        %2256 = vrot.lane.b32.xlu0 %v2250, 64
        %v2257 = vpop.permute.xlu0 %2256
        %2259 = vst.msk [vmem:[#allocation2] sm:$0xff] %vm1514, %v2257
        %2260 = vrot.lane.b32.xlu0 %v1913, 32
        %v2261 = vpop.permute.xlu0 %2260
        %2262 = vrot.lane.b32.xlu0 %v1914, 32
        %v2263 = vpop.permute.xlu0 %2262
        %v2265 = vsel %vm1167, %v2261, 0
        %v2268 = vsel %vm1167, %v2263, 0
        %2270 = vmatprep.subr.bf16.mxu0 0
        %2271 = vmatpush1.bf16.xpose.msra.mxu0 0
        %2272 = vmatprep.subr.bf16.mxu0 0
        %2273 = vmatpush1.bf16.xpose.msra.mxu0 0
        %2274 = vmatprep.subr.bf16.mxu0 0
        %2275 = vmatpush1.bf16.xpose.msra.mxu0 0
        %2276 = vmatprep.subr.bf16.mxu0 0
        %2277 = vmatpush1.bf16.xpose.msra.mxu0 0
        %2278 = vmatprep.subr.bf16.mxu0 0
        %2279 = vmatpush1.bf16.xpose.msra.mxu0 0
        %2280 = vmatprep.subr.bf16.mxu0 0
        %2281 = vmatpush1.bf16.xpose.msra.mxu0 0
        %2282 = vmatprep.subr.bf16.mxu0 0
        %2283 = vmatpush1.bf16.xpose.msra.mxu0 0
        %2284 = vmatprep.subr.bf16.mxu0 0
        %2285 = vmatpush1.bf16.xpose.msra.mxu0 %v2268
        %2286 = vmatprep.subr.bf16.mxu0 0
        %2287 = vmatpush2.bf16.xpose.msra.mxu0 0
        %2288 = vmatprep.subr.bf16.mxu0 0
        %2289 = vmatpush2.bf16.xpose.msra.mxu0 0
        %2290 = vmatprep.subr.bf16.mxu0 0
        %2291 = vmatpush2.bf16.xpose.msra.mxu0 0
        %2292 = vmatprep.subr.bf16.mxu0 0
        %2293 = vmatpush2.bf16.xpose.msra.mxu0 0
        %2294 = vmatprep.subr.bf16.mxu0 0
        %2295 = vmatpush2.bf16.xpose.msra.mxu0 0
        %2296 = vmatprep.subr.bf16.mxu0 0
        %2297 = vmatpush2.bf16.xpose.msra.mxu0 0
        %2298 = vmatprep.subr.bf16.mxu0 0
        %2299 = vmatpush2.bf16.xpose.msra.mxu0 0
        %2300 = vmatprep.subr.bf16.mxu0 0
        %2301 = vmatpush2.bf16.xpose.msra.mxu0 0
        %2302 = vmatprep.mubr.bf16.mxu0 0
        %2303 = vmatmul.mubr.bf16.gmra.mxu0 %v2265
        %v2304 = vpop.f32.mrf.mxu0
        %v2305 = vadd.f32 0.0, %v2304
        %v2306 = vpop.f32.mrf.mxu0
        %v2307 = vpop.f32.mrf.mxu0
        %v2308 = vpop.f32.mrf.mxu0
        %2309 = vdwg.mxu0
        %v2310 = vmul.f32 %v2305, 0.17677669
        %v2311 = vadd.f32 %v2310, %v1738
        %v2312 = vsel %vm1216, %v2311, -inf
        %2313 = vmax.xlane.f32.xlu0 %v2312
        %v2314 = vpop.xlane.xlu0 %2313
        %v2315 = vsub.f32 %v2311, %v2314
        %v2316 = vmul.f32 %v2315, 1.442695
        %v2317 = vpow.pop %v2316
        %v2318 = vsel %vm1216, %v2317, 0.0
        %2319 = vadd.xlane.f32.xlu0 %v2318
        %v2320 = vpop.xlane.xlu0 %2319
        %v2321 = vrcp.pop %v2320
        %v2322 = vmul.f32 %v2317, %v2321
        %v2323 = vpack.c.bf16 %v2322, %v2322
        %2324 = vrot.lane.b32.xlu0 %v1915, 32
        %v2325 = vpop.permute.xlu0 %2324
        %v2327 = vsel %vm1216, %v2323, 0
        %v2330 = vsel %vm1232, %v2325, 0
        %2332 = vmatprep.subr.bf16.mxu0 0
        %2333 = vmatpush1.bf16.msra.mxu0 0
        %2334 = vmatprep.subr.bf16.mxu0 0
        %2335 = vmatpush1.bf16.msra.mxu0 0
        %2336 = vmatprep.subr.bf16.mxu0 0
        %2337 = vmatpush1.bf16.msra.mxu0 0
        %2338 = vmatprep.subr.bf16.mxu0 0
        %2339 = vmatpush1.bf16.msra.mxu0 0
        %2340 = vmatprep.subr.bf16.mxu0 0
        %2341 = vmatpush1.bf16.msra.mxu0 0
        %2342 = vmatprep.subr.bf16.mxu0 0
        %2343 = vmatpush1.bf16.msra.mxu0 0
        %2344 = vmatprep.subr.bf16.mxu0 0
        %2345 = vmatpush1.bf16.msra.mxu0 0
        %2346 = vmatprep.subr.bf16.mxu0 0
        %2347 = vmatpush1.bf16.msra.mxu0 %v2330
        %2348 = vmatprep.subr.bf16.mxu0 0
        %2349 = vmatpush2.bf16.msra.mxu0 0
        %2350 = vmatprep.subr.bf16.mxu0 0
        %2351 = vmatpush2.bf16.msra.mxu0 0
        %2352 = vmatprep.subr.bf16.mxu0 0
        %2353 = vmatpush2.bf16.msra.mxu0 0
        %2354 = vmatprep.subr.bf16.mxu0 0
        %2355 = vmatpush2.bf16.msra.mxu0 0
        %2356 = vmatprep.subr.bf16.mxu0 0
        %2357 = vmatpush2.bf16.msra.mxu0 0
        %2358 = vmatprep.subr.bf16.mxu0 0
        %2359 = vmatpush2.bf16.msra.mxu0 0
        %2360 = vmatprep.subr.bf16.mxu0 0
        %2361 = vmatpush2.bf16.msra.mxu0 0
        %2362 = vmatprep.subr.bf16.mxu0 0
        %2363 = vmatpush2.bf16.msra.mxu0 0
        %2364 = vmatprep.mubr.bf16.mxu0 0
        %2365 = vmatmul.mubr.bf16.gmra.mxu0 %v2327
        %v2366 = vpop.f32.mrf.mxu0
        %v2367 = vadd.f32 0.0, %v2366
        %v2368 = vpop.f32.mrf.mxu0
        %v2369 = vpop.f32.mrf.mxu0
        %v2370 = vpop.f32.mrf.mxu0
        %2371 = vdwg.mxu0
        %2373 = vrot.lane.b32.xlu0 %v2367, 96
        %v2374 = vpop.permute.xlu0 %2373
        %2376 = vst.msk [vmem:[#allocation2] sm:$0xff] %vm1632, %v2374
        %v2377 = vld [vmem:[#allocation2] sm:$0xff]
        %v2378 = vld [vmem:[#allocation18] sm:$0xff]
        %v2379 = vld [vmem:[#allocation18 + $0x8] sm:$0xff]
        %v2380 = vld [vmem:[#allocation18 + $0x10] sm:$0xff]
        %v2381 = vld [vmem:[#allocation18 + $0x18] sm:$0xff]
        %v2382 = vld [vmem:[#allocation18 + $0x20] sm:$0xff]
        %v2383 = vld [vmem:[#allocation18 + $0x28] sm:$0xff]
        %v2384 = vld [vmem:[#allocation18 + $0x30] sm:$0xff]
        %v2385 = vld [vmem:[#allocation18 + $0x38] sm:$0xff]
        %v2386 = vld [vmem:[#allocation18 + $0x40] sm:$0xff]
        %v2387 = vld [vmem:[#allocation18 + $0x48] sm:$0xff]
        %v2388 = vld [vmem:[#allocation18 + $0x50] sm:$0xff]
        %v2389 = vld [vmem:[#allocation18 + $0x58] sm:$0xff]
        %v2390 = vld [vmem:[#allocation18 + $0x60] sm:$0xff]
        %v2391 = vld [vmem:[#allocation18 + $0x68] sm:$0xff]
        %v2392 = vld [vmem:[#allocation18 + $0x70] sm:$0xff]
        %v2393 = vld [vmem:[#allocation18 + $0x78] sm:$0xff]
        %v2394 = vpack.c.bf16 %v2377, %v2377
        %v2395 = vpack.c.bf16 %v2379, %v2378
        %v2396 = vpack.c.bf16 %v2381, %v2380
        %v2397 = vpack.c.bf16 %v2383, %v2382
        %v2398 = vpack.c.bf16 %v2385, %v2384
        %v2399 = vpack.c.bf16 %v2387, %v2386
        %v2400 = vpack.c.bf16 %v2389, %v2388
        %v2401 = vpack.c.bf16 %v2391, %v2390
        %v2402 = vpack.c.bf16 %v2393, %v2392
        %v2403 = vld [vmem:[%s17] sm:$0x1]
        %v2405 = vlaneseq
        %v2406 = vshrl.u32 %v2405, 7
        %v2407 = vsub.s32 0, %v2406
        %v2408 = vrot.slane %v2403, %v2407
        %2410 = vmatprep.subr.bf16.mxu0 0
        %2411 = vmatpush1.bf16.msra.mxu0 %v2402
        %2412 = vmatprep.subr.bf16.mxu0 0
        %2413 = vmatpush1.bf16.msra.mxu0 %v2401
        %2414 = vmatprep.subr.bf16.mxu0 0
        %2415 = vmatpush1.bf16.msra.mxu0 %v2400
        %2416 = vmatprep.subr.bf16.mxu0 0
        %2417 = vmatpush1.bf16.msra.mxu0 %v2399
        %2418 = vmatprep.subr.bf16.mxu0 0
        %2419 = vmatpush1.bf16.msra.mxu0 %v2398
        %2420 = vmatprep.subr.bf16.mxu0 0
        %2421 = vmatpush1.bf16.msra.mxu0 %v2397
        %2422 = vmatprep.subr.bf16.mxu0 0
        %2423 = vmatpush1.bf16.msra.mxu0 %v2396
        %2424 = vmatprep.subr.bf16.mxu0 0
        %2425 = vmatpush1.bf16.msra.mxu0 %v2395
        %2426 = vmatprep.subr.bf16.mxu0 0
        %2427 = vmatpush2.bf16.msra.mxu0 0
        %2428 = vmatprep.subr.bf16.mxu0 0
        %2429 = vmatpush2.bf16.msra.mxu0 0
        %2430 = vmatprep.subr.bf16.mxu0 0
        %2431 = vmatpush2.bf16.msra.mxu0 0
        %2432 = vmatprep.subr.bf16.mxu0 0
        %2433 = vmatpush2.bf16.msra.mxu0 0
        %2434 = vmatprep.subr.bf16.mxu0 0
        %2435 = vmatpush2.bf16.msra.mxu0 0
        %2436 = vmatprep.subr.bf16.mxu0 0
        %2437 = vmatpush2.bf16.msra.mxu0 0
        %2438 = vmatprep.subr.bf16.mxu0 0
        %2439 = vmatpush2.bf16.msra.mxu0 0
        %2440 = vmatprep.subr.bf16.mxu0 0
        %2441 = vmatpush2.bf16.msra.mxu0 0
        %2442 = vmatprep.mubr.bf16.mxu0 0
        %2443 = vmatmul.mubr.bf16.gmra.mxu0 %v2394
        %v2444 = vpop.f32.mrf.mxu0
        %v2445 = vadd.f32 %v2408, %v2444
        %v2446 = vpop.f32.mrf.mxu0
        %v2447 = vpop.f32.mrf.mxu0
        %v2448 = vpop.f32.mrf.mxu0
        %2449 = vdwg.mxu0
        %v2450 = vadd.f32 %v1735, %v2445
        %v2451 = vld [vmem:[%s18] sm:$0x1]
        %v2452 = vld [vmem:[%s19] sm:$0x1]
        %2453 = vadd.xlane.f32.xlu0 %v2450
        %v2454 = vpop.xlane.xlu0 %2453
        %v2455 = vmul.f32 %v2454, %v1712
        %v2456 = vsub.f32 %v2450, %v2455
        %v2457 = vmul.f32 %v2456, %v2456
        %2458 = vadd.xlane.f32.xlu0 %v2457
        %v2459 = vpop.xlane.xlu0 %2458
        %v2460 = vmul.f32 %v2459, %v1712
        %v2461 = vadd.f32 %v2460, 1e-05
        %v2462 = vrsqrt.pop %v2461
        %v2463 = vmul.f32 %v2456, %v2462
        %v2465 = vlaneseq
        %v2466 = vshrl.u32 %v2465, 7
        %v2467 = vsub.s32 0, %v2466
        %v2468 = vrot.slane %v2451, %v2467
        %v2470 = vmul.f32 %v2463, %v2468
        %v2472 = vlaneseq
        %v2473 = vshrl.u32 %v2472, 7
        %v2474 = vsub.s32 0, %v2473
        %v2475 = vrot.slane %v2452, %v2474
        %v2477 = vadd.f32 %v2470, %v2475
        %v2478 = vld [vmem:[#allocation20] sm:$0xff]
        %v2479 = vld [vmem:[#allocation20 + $0x8] sm:$0xff]
        %v2480 = vld [vmem:[#allocation20 + $0x10] sm:$0xff]
        %v2481 = vld [vmem:[#allocation20 + $0x18] sm:$0xff]
        %v2482 = vld [vmem:[#allocation20 + $0x20] sm:$0xff]
        %v2483 = vld [vmem:[#allocation20 + $0x28] sm:$0xff]
        %v2484 = vld [vmem:[#allocation20 + $0x30] sm:$0xff]
        %v2485 = vld [vmem:[#allocation20 + $0x38] sm:$0xff]
        %v2486 = vld [vmem:[#allocation20 + $0x40] sm:$0xff]
        %v2487 = vld [vmem:[#allocation20 + $0x48] sm:$0xff]
        %v2488 = vld [vmem:[#allocation20 + $0x50] sm:$0xff]
        %v2489 = vld [vmem:[#allocation20 + $0x58] sm:$0xff]
        %v2490 = vld [vmem:[#allocation20 + $0x60] sm:$0xff]
        %v2491 = vld [vmem:[#allocation20 + $0x68] sm:$0xff]
        %v2492 = vld [vmem:[#allocation20 + $0x70] sm:$0xff]
        %v2493 = vld [vmem:[#allocation20 + $0x78] sm:$0xff]
        %v2494 = vld [vmem:[#allocation20 + $0x80] sm:$0xff]
        %v2495 = vld [vmem:[#allocation20 + $0x88] sm:$0xff]
        %v2496 = vld [vmem:[#allocation20 + $0x90] sm:$0xff]
        %v2497 = vld [vmem:[#allocation20 + $0x98] sm:$0xff]
        %v2498 = vld [vmem:[#allocation20 + $0xa0] sm:$0xff]
        %v2499 = vld [vmem:[#allocation20 + $0xa8] sm:$0xff]
        %v2500 = vld [vmem:[#allocation20 + $0xb0] sm:$0xff]
        %v2501 = vld [vmem:[#allocation20 + $0xb8] sm:$0xff]
        %v2502 = vld [vmem:[#allocation20 + $0xc0] sm:$0xff]
        %v2503 = vld [vmem:[#allocation20 + $0xc8] sm:$0xff]
        %v2504 = vld [vmem:[#allocation20 + $0xd0] sm:$0xff]
        %v2505 = vld [vmem:[#allocation20 + $0xd8] sm:$0xff]
        %v2506 = vld [vmem:[#allocation20 + $0xe0] sm:$0xff]
        %v2507 = vld [vmem:[#allocation20 + $0xe8] sm:$0xff]
        %v2508 = vld [vmem:[#allocation20 + $0xf0] sm:$0xff]
        %v2509 = vld [vmem:[#allocation20 + $0xf8] sm:$0xff]
        %v2510 = vpack.c.bf16 %v2477, %v2477
        %v2511 = vpack.c.bf16 %v2480, %v2478
        %v2512 = vpack.c.bf16 %v2481, %v2479
        %v2513 = vpack.c.bf16 %v2484, %v2482
        %v2514 = vpack.c.bf16 %v2485, %v2483
        %v2515 = vpack.c.bf16 %v2488, %v2486
        %v2516 = vpack.c.bf16 %v2489, %v2487
        %v2517 = vpack.c.bf16 %v2492, %v2490
        %v2518 = vpack.c.bf16 %v2493, %v2491
        %v2519 = vpack.c.bf16 %v2496, %v2494
        %v2520 = vpack.c.bf16 %v2497, %v2495
        %v2521 = vpack.c.bf16 %v2500, %v2498
        %v2522 = vpack.c.bf16 %v2501, %v2499
        %v2523 = vpack.c.bf16 %v2504, %v2502
        %v2524 = vpack.c.bf16 %v2505, %v2503
        %v2525 = vpack.c.bf16 %v2508, %v2506
        %v2526 = vpack.c.bf16 %v2509, %v2507
        %v2527 = vld [vmem:[%s21] sm:$0x3]
        %v2529 = vlaneseq
        %v2530 = vshrl.u32 %v2529, 7
        %v2531 = vsub.s32 0, %v2530
        %v2532 = vrot.slane %v2527, %v2531
        %v2533 = vlaneseq
        %v2534 = vshrl.u32 %v2533, 7
        %v2535 = vsub.s32 1, %v2534
        %v2536 = vrot.slane %v2527, %v2535
        %2539 = vmatprep.subr.bf16.mxu0 %v2526
        %2540 = vmatpush1.bf16.msra.mxu0 %v2525
        %2541 = vmatprep.subr.bf16.mxu0 %v2524
        %2542 = vmatpush1.bf16.msra.mxu0 %v2523
        %2543 = vmatprep.subr.bf16.mxu0 %v2522
        %2544 = vmatpush1.bf16.msra.mxu0 %v2521
        %2545 = vmatprep.subr.bf16.mxu0 %v2520
        %2546 = vmatpush1.bf16.msra.mxu0 %v2519
        %2547 = vmatprep.subr.bf16.mxu0 %v2518
        %2548 = vmatpush1.bf16.msra.mxu0 %v2517
        %2549 = vmatprep.subr.bf16.mxu0 %v2516
        %2550 = vmatpush1.bf16.msra.mxu0 %v2515
        %2551 = vmatprep.subr.bf16.mxu0 %v2514
        %2552 = vmatpush1.bf16.msra.mxu0 %v2513
        %2553 = vmatprep.subr.bf16.mxu0 %v2512
        %2554 = vmatpush1.bf16.msra.mxu0 %v2511
        %2555 = vmatprep.subr.bf16.mxu0 0
        %2556 = vmatpush2.bf16.msra.mxu0 0
        %2557 = vmatprep.subr.bf16.mxu0 0
        %2558 = vmatpush2.bf16.msra.mxu0 0
        %2559 = vmatprep.subr.bf16.mxu0 0
        %2560 = vmatpush2.bf16.msra.mxu0 0
        %2561 = vmatprep.subr.bf16.mxu0 0
        %2562 = vmatpush2.bf16.msra.mxu0 0
        %2563 = vmatprep.subr.bf16.mxu0 0
        %2564 = vmatpush2.bf16.msra.mxu0 0
        %2565 = vmatprep.subr.bf16.mxu0 0
        %2566 = vmatpush2.bf16.msra.mxu0 0
        %2567 = vmatprep.subr.bf16.mxu0 0
        %2568 = vmatpush2.bf16.msra.mxu0 0
        %2569 = vmatprep.subr.bf16.mxu0 0
        %2570 = vmatpush2.bf16.msra.mxu0 0
        %2571 = vmatprep.mubr.bf16.mxu0 0
        %2572 = vmatmul.mubr.bf16.gmra.mxu0 %v2510
        %v2573 = vpop.f32.mrf.mxu0
        %v2574 = vadd.f32 %v2532, %v2573
        %v2575 = vpop.f32.mrf.mxu0
        %v2576 = vadd.f32 %v2536, %v2575
        %v2577 = vpop.f32.mrf.mxu0
        %v2578 = vpop.f32.mrf.mxu0
        %2579 = vdwg.mxu0
        %v2580 = vmax.f32 %v2574, 0.0
        %v2581 = vmax.f32 %v2576, 0.0
        %v2582 = vld [vmem:[#allocation21] sm:$0xff]
        %v2583 = vld [vmem:[#allocation21 + $0x8] sm:$0xff]
        %v2584 = vld [vmem:[#allocation21 + $0x10] sm:$0xff]
        %v2585 = vld [vmem:[#allocation21 + $0x18] sm:$0xff]
        %v2586 = vld [vmem:[#allocation21 + $0x20] sm:$0xff]
        %v2587 = vld [vmem:[#allocation21 + $0x28] sm:$0xff]
        %v2588 = vld [vmem:[#allocation21 + $0x30] sm:$0xff]
        %v2589 = vld [vmem:[#allocation21 + $0x38] sm:$0xff]
        %v2590 = vld [vmem:[#allocation21 + $0x40] sm:$0xff]
        %v2591 = vld [vmem:[#allocation21 + $0x48] sm:$0xff]
        %v2592 = vld [vmem:[#allocation21 + $0x50] sm:$0xff]
        %v2593 = vld [vmem:[#allocation21 + $0x58] sm:$0xff]
        %v2594 = vld [vmem:[#allocation21 + $0x60] sm:$0xff]
        %v2595 = vld [vmem:[#allocation21 + $0x68] sm:$0xff]
        %v2596 = vld [vmem:[#allocation21 + $0x70] sm:$0xff]
        %v2597 = vld [vmem:[#allocation21 + $0x78] sm:$0xff]
        %v2598 = vld [vmem:[#allocation21 + $0x80] sm:$0xff]
        %v2599 = vld [vmem:[#allocation21 + $0x88] sm:$0xff]
        %v2600 = vld [vmem:[#allocation21 + $0x90] sm:$0xff]
        %v2601 = vld [vmem:[#allocation21 + $0x98] sm:$0xff]
        %v2602 = vld [vmem:[#allocation21 + $0xa0] sm:$0xff]
        %v2603 = vld [vmem:[#allocation21 + $0xa8] sm:$0xff]
        %v2604 = vld [vmem:[#allocation21 + $0xb0] sm:$0xff]
        %v2605 = vld [vmem:[#allocation21 + $0xb8] sm:$0xff]
        %v2606 = vld [vmem:[#allocation21 + $0xc0] sm:$0xff]
        %v2607 = vld [vmem:[#allocation21 + $0xc8] sm:$0xff]
        %v2608 = vld [vmem:[#allocation21 + $0xd0] sm:$0xff]
        %v2609 = vld [vmem:[#allocation21 + $0xd8] sm:$0xff]
        %v2610 = vld [vmem:[#allocation21 + $0xe0] sm:$0xff]
        %v2611 = vld [vmem:[#allocation21 + $0xe8] sm:$0xff]
        %v2612 = vld [vmem:[#allocation21 + $0xf0] sm:$0xff]
        %v2613 = vld [vmem:[#allocation21 + $0xf8] sm:$0xff]
        %v2614 = vpack.c.bf16 %v2580, %v2580
        %v2615 = vpack.c.bf16 %v2581, %v2581
        %v2616 = vpack.c.bf16 %v2583, %v2582
        %v2617 = vpack.c.bf16 %v2585, %v2584
        %v2618 = vpack.c.bf16 %v2587, %v2586
        %v2619 = vpack.c.bf16 %v2589, %v2588
        %v2620 = vpack.c.bf16 %v2591, %v2590
        %v2621 = vpack.c.bf16 %v2593, %v2592
        %v2622 = vpack.c.bf16 %v2595, %v2594
        %v2623 = vpack.c.bf16 %v2597, %v2596
        %v2624 = vpack.c.bf16 %v2599, %v2598
        %v2625 = vpack.c.bf16 %v2601, %v2600
        %v2626 = vpack.c.bf16 %v2603, %v2602
        %v2627 = vpack.c.bf16 %v2605, %v2604
        %v2628 = vpack.c.bf16 %v2607, %v2606
        %v2629 = vpack.c.bf16 %v2609, %v2608
        %v2630 = vpack.c.bf16 %v2611, %v2610
        %v2631 = vpack.c.bf16 %v2613, %v2612
        %v2632 = vld [vmem:[%s23] sm:$0x1]
        %v2634 = vlaneseq
        %v2635 = vshrl.u32 %v2634, 7
        %v2636 = vsub.s32 0, %v2635
        %v2637 = vrot.slane %v2632, %v2636
        %2639 = vmatprep.subr.bf16.mxu0 0
        %2640 = vmatpush1.bf16.msra.mxu0 %v2623
        %2641 = vmatprep.subr.bf16.mxu0 0
        %2642 = vmatpush1.bf16.msra.mxu0 %v2622
        %2643 = vmatprep.subr.bf16.mxu0 0
        %2644 = vmatpush1.bf16.msra.mxu0 %v2621
        %2645 = vmatprep.subr.bf16.mxu0 0
        %2646 = vmatpush1.bf16.msra.mxu0 %v2620
        %2647 = vmatprep.subr.bf16.mxu0 0
        %2648 = vmatpush1.bf16.msra.mxu0 %v2619
        %2649 = vmatprep.subr.bf16.mxu0 0
        %2650 = vmatpush1.bf16.msra.mxu0 %v2618
        %2651 = vmatprep.subr.bf16.mxu0 0
        %2652 = vmatpush1.bf16.msra.mxu0 %v2617
        %2653 = vmatprep.subr.bf16.mxu0 0
        %2654 = vmatpush1.bf16.msra.mxu0 %v2616
        %2655 = vmatprep.subr.bf16.mxu0 0
        %2656 = vmatpush2.bf16.msra.mxu0 %v2631
        %2657 = vmatprep.subr.bf16.mxu0 0
        %2658 = vmatpush2.bf16.msra.mxu0 %v2630
        %2659 = vmatprep.subr.bf16.mxu0 0
        %2660 = vmatpush2.bf16.msra.mxu0 %v2629
        %2661 = vmatprep.subr.bf16.mxu0 0
        %2662 = vmatpush2.bf16.msra.mxu0 %v2628
        %2663 = vmatprep.subr.bf16.mxu0 0
        %2664 = vmatpush2.bf16.msra.mxu0 %v2627
        %2665 = vmatprep.subr.bf16.mxu0 0
        %2666 = vmatpush2.bf16.msra.mxu0 %v2626
        %2667 = vmatprep.subr.bf16.mxu0 0
        %2668 = vmatpush2.bf16.msra.mxu0 %v2625
        %2669 = vmatprep.subr.bf16.mxu0 0
        %2670 = vmatpush2.bf16.msra.mxu0 %v2624
        %2671 = vmatprep.mubr.bf16.mxu0 %v2615
        %2672 = vmatmul.mubr.bf16.gmra.mxu0 %v2614
        %v2673 = vpop.f32.mrf.mxu0
        %v2674 = vadd.f32 %v2637, %v2673
        %v2675 = vpop.f32.mrf.mxu0
        %v2676 = vpop.f32.mrf.mxu0
        %v2677 = vpop.f32.mrf.mxu0
        %2678 = vdwg.mxu0
        %v2679 = vadd.f32 %v2477, %v2674
        %v2680 = vld [vmem:[%s24] sm:$0x1]
        %v2681 = vld [vmem:[%s25] sm:$0x1]
        %2682 = vadd.xlane.f32.xlu0 %v2679
        %v2683 = vpop.xlane.xlu0 %2682
        %v2684 = vmul.f32 %v2683, %v1712
        %v2685 = vsub.f32 %v2679, %v2684
        %v2686 = vmul.f32 %v2685, %v2685
        %2687 = vadd.xlane.f32.xlu0 %v2686
        %v2688 = vpop.xlane.xlu0 %2687
        %v2689 = vmul.f32 %v2688, %v1712
        %v2690 = vadd.f32 %v2689, 1e-05
        %v2691 = vrsqrt.pop %v2690
        %v2692 = vmul.f32 %v2685, %v2691
        %v2694 = vlaneseq
        %v2695 = vshrl.u32 %v2694, 7
        %v2696 = vsub.s32 0, %v2695
        %v2697 = vrot.slane %v2680, %v2696
        %v2699 = vmul.f32 %v2692, %v2697
        %v2701 = vlaneseq
        %v2702 = vshrl.u32 %v2701, 7
        %v2703 = vsub.s32 0, %v2702
        %v2704 = vrot.slane %v2681, %v2703
        %v2706 = vadd.f32 %v2699, %v2704
        %2707 = vst [vmem:[%s984] sm:$0xff] %v2706
        %s2708 = sand.u32 %s615, 1
        %s2709 = scalar_lea.sflag [#allocation5], %s2708
        %s2710 = sand.u32 %s615, 1
        %s2711 = smul.addr %s2710, 8
        %s2712 = scalar_lea.vmem [#allocation23], %s2711
        // Predicated region
        $region173: #{tpu_custom_call.1} parent=123 // pred_check
          %p2713 = pneg %p625
        $region174: #{tpu_custom_call.1} parent=123 // pred_check_branch
          %2715 = sbr.rel (%p2713) target = $region176
        $region175: #{tpu_custom_call.1} parent=123 // pred_region
          %s2717 = ssub.s32 128, 128
          %2718 = vsyncadd %s2709, %s2717
          %s2719 = smul.addr %s51, 128
          %s2720 = scalar_lea.hbm %s26, %s2719
          %s2722 = sshll.u32 %s2712, 4
          %s2723 = int_to_ptr.vmem [resolvable:$true] %s2722
          %2725 = dma.vmem_to_hbm [thread:$0]  %s2723, 128, %s2720, %s2709
        $region176: #{tpu_custom_call.1} parent=123 // pred_fallthru
          _
      $region124: #{tpu_custom_call.1} parent=5 // pred_fallthru
        _
      %p2726 = scmp.le.s32.totalorder 2, %s46
      // Predicated region
      $region177: #{tpu_custom_call.1} parent=5 // pred_check
        %p2727 = pneg %p2726
      $region178: #{tpu_custom_call.1} parent=5 // pred_check_branch
        %2729 = sbr.rel (%p2727) target = $region180
      $region179: #{tpu_custom_call.1} parent=5 // pred_region
        %s2730 = ssub.s32 %s46, 2
        // Predicated region
        $region181: #{tpu_custom_call.1} parent=179 // pred_check
          %p2731 = pneg %p631
        $region182: #{tpu_custom_call.1} parent=179 // pred_check_branch
          %2733 = sbr.rel (%p2731) target = $region184
        $region183: #{tpu_custom_call.1} parent=179 // pred_region
          %s2734 = sand.u32 %s616, 1
          %s2735 = scalar_lea.sflag [#allocation5], %s2734
          %s2736 = sand.u32 %s616, 1
          %s2737 = smul.addr %s2736, 8
          %s2738 = scalar_lea.vmem [#allocation23], %s2737
          %2739 = dma.done %s2735, 128
        $region184: #{tpu_custom_call.1} parent=179 // pred_fallthru
          _
      $region180: #{tpu_custom_call.1} parent=5 // pred_fallthru
        _
    $region6: #{tpu_custom_call.1} parent=1 // loop_footer
      %s50 = sadd.s32 1, %s46
    $region7: #{tpu_custom_call.1} parent=1 // loop_footer_branch
      %45 = sbr.rel target = $region3
    $region8: #{tpu_custom_call.1} parent=1 // loop_exit
      _
    %2740 = vsyncpa [#allocation4], 1
    %s2741 = scalar_lea.sflag [#allocation4], 1
    %2742 = vsyncpa %s2741, 1
    %2743 = vsyncpa [#allocation7], 1
    %s2744 = scalar_lea.sflag [#allocation7], 1
    %2745 = vsyncpa %s2744, 1
    %2746 = vsyncpa [#allocation10], 1
    %2747 = vsyncpa [#allocation13], 1
    %2748 = vsyncpa [#allocation16], 1
    %2749 = vsyncpa [#allocation19], 1
    %2750 = vsyncpa [#allocation22], 1
    %2751 = vsyncpa [#allocation5], 1
    %s2752 = scalar_lea.sflag [#allocation5], 1
    %2753 = vsyncpa %s2752, 1

</llo_original>
